<compile_context>
chip_gen: v6e
topology: v6e:2x2x1
jax: 0.10.0
libtpu: 0.0.40
codegen_flags: <defaults>
</compile_context>

<pallas_src>
import functools

import jax
import jax.numpy as jnp
import numpy as np
from jax.experimental import pallas as pl
from jax.experimental.pallas import tpu as pltpu


def _resblock_kernel(x_ref, w1_ref, w2_ref, b1_ref, b2_ref, out_ref, *,
                     dx_concat):
    # x_ref  : (NB, H, W, C) f32   unpadded NHWC input block (also the residual)
    # w*_ref : dx_concat -> (3, 3C, C) bf16 (BN scale folded, dx taps stacked
    #          along the contraction dim);  else (3, 3, C, C) bf16 HWIO.
    # b*_ref : (1, C) f32          folded BN bias (incl. conv bias)
    # out_ref: (NB, H, W, C) f32
    NB, H, W, C = x_ref.shape
    M = NB * H * W
    bf16 = jnp.bfloat16

    x_f32 = x_ref[...]                       # exact f32 residual
    x_bf = x_f32.astype(bf16)                # bf16 for the MXU

    def pad_hw(z):
        # Zero-pad H and W by 1 at value level (no padded HBM copy / scratch).
        zh = jnp.zeros((NB, 1, W, C), bf16)
        zp = jnp.concatenate([zh, z, zh], axis=1)        # (NB, H+2, W, C)
        zw = jnp.zeros((NB, H + 2, 1, C), bf16)
        return jnp.concatenate([zw, zp, zw], axis=2)     # (NB, H+2, W+2, C)

    def conv3x3(z_bf, w_ref):
        zpad = pad_hw(z_bf)
        acc = None
        if dx_concat:
            # dx lane-concat hoisted out of the dy loop: built once per conv.
            cat = jnp.concatenate(
                [zpad[:, :, 0:W], zpad[:, :, 1:W + 1], zpad[:, :, 2:W + 2]],
                axis=-1)                                  # (NB, H+2, W, 3C)
            for dy in range(3):
                lhs = cat[:, dy:dy + H].reshape(M, 3 * C)     # free H slice
                part = jnp.dot(lhs, w_ref[dy],
                               preferred_element_type=jnp.float32)
                acc = part if acc is None else acc + part
        else:
            # v5e: K = C = 128 already fills the 128-deep MXU; skip the concat.
            for dy in range(3):
                for dx in range(3):
                    lhs = zpad[:, dy:dy + H, dx:dx + W].reshape(M, C)
                    part = jnp.dot(lhs, w_ref[dy, dx],
                                   preferred_element_type=jnp.float32)
                    acc = part if acc is None else acc + part
        return acc                                        # (M, C) f32

    # conv1 (+ folded BN scale in weights) + bias + ReLU
    y1 = jnp.maximum(conv3x3(x_bf, w1_ref) + b1_ref[...], 0.0)
    # conv2 (+ folded BN scale in weights) + bias
    y2 = conv3x3(y1.reshape(NB, H, W, C).astype(bf16), w2_ref) + b2_ref[...]
    # residual add (exact f32 x) + final ReLU
    out = jnp.maximum(x_f32.reshape(M, C) + y2, 0.0)
    out_ref[...] = out.reshape(NB, H, W, C).astype(out_ref.dtype)


def _pick_batch_block(n, h, w, c, vmem_budget_bytes=20 << 20):
    """Pick the per-step batch block NB (a divisor of N).

    Targets enough rows (M = NB*H*W <= ~1024) to fill the MXU M dimension
    while staying under a conservative per-step VMEM working-set budget that
    fits every generation (v7x has only 64 MiB physical VMEM).  Keeps >= 2
    grid blocks (for v7x megacore sharding) only when that does not drop M
    below ~256 rows; on single-TC v5e/v6e the grid is a serial loop, so a
    single large block is preferred for small N.
    """
    per_image = h * w * c * 48  # rough f32-equivalent in-kernel bytes / image
    divisors = [d for d in range(1, n + 1) if n % d == 0]
    fits = [d for d in divisors
            if d * per_image <= vmem_budget_bytes and d * h * w <= 1024]
    if not fits:
        fits = [divisors[0]]
    nb = max(fits)
    smaller = [d for d in fits if n // d >= 2 and d * h * w >= 256]
    if n // nb < 2 and smaller:
        nb = max(smaller)
    return nb


def _is_v5e():
    try:
        kind = jax.devices()[0].device_kind.lower()
    except Exception:
        return False
    return ("v5 lite" in kind) or ("v5e" in kind) or ("v5lite" in kind)


@functools.partial(jax.jit, static_argnames=("dx_concat",))
def _resblock_pallas_impl(x_nchw, params, *, dx_concat):
    (w1, b1, g1, beta1, m1, v1,
     w2, b2, g2, beta2, m2, v2) = params
    eps = 1e-5
    N, C, H, W = x_nchw.shape
    NB = _pick_batch_block(N, H, W, C)

    # Fold eval-mode BN + conv bias:
    #   bn(conv(x;W) + b) = conv(x; W*s) + ((b - mean)*s + beta),  s = g/sqrt(v+eps)
    s1 = g1 / jnp.sqrt(v1 + eps)
    s2 = g2 / jnp.sqrt(v2 + eps)
    sb1 = (b1 - m1) * s1 + beta1
    sb2 = (b2 - m2) * s2 + beta2
    w1s = (w1 * s1).astype(jnp.bfloat16)     # (3,3,Cin,Cout) HWIO, scale folded
    w2s = (w2 * s2).astype(jnp.bfloat16)

    if dx_concat:
        # Stack the 3 dx taps along the contraction dim: (3, 3C, C).
        w1_t = w1s.reshape(3, 3 * C, C)
        w2_t = w2s.reshape(3, 3 * C, C)
        w_spec = pl.BlockSpec((3, 3 * C, C), lambda n: (0, 0, 0))
    else:
        w1_t, w2_t = w1s, w2s
        w_spec = pl.BlockSpec((3, 3, C, C), lambda n: (0, 0, 0, 0))

    # NCHW -> NHWC, kept in f32 (residual exact; kernel casts to bf16 for MXU).
    x_nhwc = jnp.transpose(x_nchw, (0, 2, 3, 1))

    out_nhwc = pl.pallas_call(
        functools.partial(_resblock_kernel, dx_concat=dx_concat),
        out_shape=jax.ShapeDtypeStruct((N, H, W, C), x_nchw.dtype),
        grid_spec=pltpu.PrefetchScalarGridSpec(
            num_scalar_prefetch=0,
            grid=(N // NB,),
            in_specs=[
                pl.BlockSpec((NB, H, W, C), lambda n: (n, 0, 0, 0)),
                w_spec,
                w_spec,
                pl.BlockSpec((1, C), lambda n: (0, 0)),
                pl.BlockSpec((1, C), lambda n: (0, 0)),
            ],
            out_specs=pl.BlockSpec((NB, H, W, C), lambda n: (n, 0, 0, 0)),
        ),
        compiler_params=pltpu.CompilerParams(
            dimension_semantics=("parallel",),
            vmem_limit_bytes=32 * 1024 * 1024),
    )(x_nhwc, w1_t, w2_t, sb1.reshape(1, C), sb2.reshape(1, C))

    return jnp.transpose(out_nhwc, (0, 3, 1, 2))


def resblock_pallas(x_nchw, params):
    """x_nchw: (N, C, H, W) float32 (PyTorch layout). Returns (N, C, H, W)."""
    return _resblock_pallas_impl(x_nchw, params, dx_concat=not _is_v5e())


def resblock_ref(x_nchw, params):
    """Pure-JAX f32 reference (same semantics, eval-mode BN)."""
    (w1, b1, g1, beta1, m1, v1,
     w2, b2, g2, beta2, m2, v2) = params
    eps = 1e-5
    x = jnp.transpose(x_nchw, (0, 2, 3, 1))

    def conv(z, w, b):
        y = jax.lax.conv_general_dilated(
            z, w, window_strides=(1, 1), padding="SAME",
            dimension_numbers=("NHWC", "HWIO", "NHWC"),
            precision=jax.lax.Precision.HIGHEST)
        return y + b

    def bn(z, g, beta, m, v):
        return (z - m) / jnp.sqrt(v + eps) * g + beta

    y = jax.nn.relu(bn(conv(x, w1, b1), g1, beta1, m1, v1))
    y = bn(conv(y, w2, b2), g2, beta2, m2, v2)
    y = jax.nn.relu(x + y)
    return jnp.transpose(y, (0, 3, 1, 2))


if __name__ == "__main__":
    # Small version of the ResBlock (module default num_filters=256).
    N, C, H, W = 8, 128, 8, 8

    key = jax.random.PRNGKey(0)
    keys = jax.random.split(key, 13)
    wscale = 1.0 / np.sqrt(9 * C)

    w1 = jax.random.normal(keys[0], (3, 3, C, C), jnp.float32) * wscale
    b1 = 0.1 * jax.random.normal(keys[1], (C,), jnp.float32)
    g1 = 1.0 + 0.1 * jax.random.normal(keys[2], (C,), jnp.float32)
    beta1 = 0.1 * jax.random.normal(keys[3], (C,), jnp.float32)
    m1 = 0.1 * jax.random.normal(keys[4], (C,), jnp.float32)
    v1 = jax.nn.softplus(jax.random.normal(keys[5], (C,), jnp.float32)) + 0.5

    w2 = jax.random.normal(keys[6], (3, 3, C, C), jnp.float32) * wscale
    b2 = 0.1 * jax.random.normal(keys[7], (C,), jnp.float32)
    g2 = 1.0 + 0.1 * jax.random.normal(keys[8], (C,), jnp.float32)
    beta2 = 0.1 * jax.random.normal(keys[9], (C,), jnp.float32)
    m2 = 0.1 * jax.random.normal(keys[10], (C,), jnp.float32)
    v2 = jax.nn.softplus(jax.random.normal(keys[11], (C,), jnp.float32)) + 0.5

    x = jax.random.normal(keys[12], (N, C, H, W), jnp.float32)

    params = (w1, b1, g1, beta1, m1, v1, w2, b2, g2, beta2, m2, v2)

    out = jax.block_until_ready(resblock_pallas(x, params))
    ref = jax.block_until_ready(resblock_ref(x, params))
    # bf16 MXU inputs vs. an f32 HIGHEST-precision reference -> looser atol.
    np.testing.assert_allclose(np.asarray(out), np.asarray(ref),
                               atol=5e-2, rtol=2e-2)
    print("KERNEL_OK")
</pallas_src>

<mosaic_0001>
module attributes {stable_mosaic.version = 11 : i64} {
  func.func @_resblock_kernel(%arg0: i32, %arg1: memref<4x8x8x128xf32, #tpu.memory_space<vmem>>, %arg2: memref<3x384x128xbf16, #tpu.memory_space<vmem>>, %arg3: memref<3x384x128xbf16, #tpu.memory_space<vmem>>, %arg4: memref<1x128xf32, #tpu.memory_space<vmem>>, %arg5: memref<1x128xf32, #tpu.memory_space<vmem>>, %arg6: memref<4x8x8x128xf32, #tpu.memory_space<vmem>>) attributes {dimension_semantics = [#tpu.dimension_semantics<parallel>], iteration_bounds = array<i64: 2>, scalar_prefetch = 0 : i64, scratch_operands = 0 : i64, tpu.core_type = #tpu.core_type<tc>, window_params = [{transform_indices = @transform_0, window_bounds = array<i64: 4, 8, 8, 128>}, {pipeline_mode = #tpu.pipeline_mode<synchronous>, transform_indices = @transform_1, window_bounds = array<i64: 3, 384, 128>}, {pipeline_mode = #tpu.pipeline_mode<synchronous>, transform_indices = @transform_2, window_bounds = array<i64: 3, 384, 128>}, {pipeline_mode = #tpu.pipeline_mode<synchronous>, transform_indices = @transform_3, window_bounds = array<i64: 1, 128>}, {pipeline_mode = #tpu.pipeline_mode<synchronous>, transform_indices = @transform_4, window_bounds = array<i64: 1, 128>}, {transform_indices = @transform_5, window_bounds = array<i64: 4, 8, 8, 128>}]} {
    %c0 = arith.constant 0 : index
    %c0_0 = arith.constant 0 : index
    %c0_1 = arith.constant 0 : index
    %c0_2 = arith.constant 0 : index
    %0 = vector.load %arg1[%c0, %c0_0, %c0_1, %c0_2] : memref<4x8x8x128xf32, #tpu.memory_space<vmem>>, vector<4x8x8x128xf32>
    %1 = arith.truncf %0 : vector<4x8x8x128xf32> to vector<4x8x8x128xbf16>
    %cst = arith.constant 0.000000e+00 : bf16
    %2 = vector.broadcast %cst : bf16 to vector<4x1x8x128xbf16>
    %3 = tpu.concatenate %2, %1, %2 in 1 : vector<4x1x8x128xbf16>, vector<4x8x8x128xbf16>, vector<4x1x8x128xbf16> -> vector<4x10x8x128xbf16>
    %cst_3 = arith.constant 0.000000e+00 : bf16
    %4 = vector.broadcast %cst_3 : bf16 to vector<4x10x1x128xbf16>
    %5 = tpu.concatenate %4, %3, %4 in 2 : vector<4x10x1x128xbf16>, vector<4x10x8x128xbf16>, vector<4x10x1x128xbf16> -> vector<4x10x10x128xbf16>
    %6 = vector.extract_strided_slice %5 {offsets = [0, 0, 0, 0], sizes = [4, 10, 8, 128], strides = [1, 1, 1, 1]} : vector<4x10x10x128xbf16> to vector<4x10x8x128xbf16>
    %7 = vector.extract_strided_slice %5 {offsets = [0, 0, 1, 0], sizes = [4, 10, 8, 128], strides = [1, 1, 1, 1]} : vector<4x10x10x128xbf16> to vector<4x10x8x128xbf16>
    %8 = vector.extract_strided_slice %5 {offsets = [0, 0, 2, 0], sizes = [4, 10, 8, 128], strides = [1, 1, 1, 1]} : vector<4x10x10x128xbf16> to vector<4x10x8x128xbf16>
    %9 = tpu.concatenate %6, %7, %8 in 3 : vector<4x10x8x128xbf16>, vector<4x10x8x128xbf16>, vector<4x10x8x128xbf16> -> vector<4x10x8x384xbf16>
    %10 = vector.extract_strided_slice %9 {offsets = [0, 0, 0, 0], sizes = [4, 8, 8, 384], strides = [1, 1, 1, 1]} : vector<4x10x8x384xbf16> to vector<4x8x8x384xbf16>
    %11 = vector.shape_cast %10 : vector<4x8x8x384xbf16> to vector<256x384xbf16>
    %c0_4 = arith.constant 0 : index
    %c0_5 = arith.constant 0 : index
    %c0_6 = arith.constant 0 : index
    %12 = vector.load %arg2[%c0_4, %c0_5, %c0_6] : memref<3x384x128xbf16, #tpu.memory_space<vmem>>, vector<1x384x128xbf16>
    %13 = vector.shape_cast %12 : vector<1x384x128xbf16> to vector<384x128xbf16>
    %cst_7 = arith.constant dense<0.000000e+00> : vector<256x128xf32>
    %14 = tpu.matmul %11, %13, %cst_7 {dimension_numbers = #tpu.dot_dimension_numbers<[1], [0], [0], [1], [0, 0, 1, 1], [], []>} : vector<256x384xbf16>, vector<384x128xbf16>, vector<256x128xf32> -> vector<256x128xf32>
    %15 = vector.extract_strided_slice %9 {offsets = [0, 1, 0, 0], sizes = [4, 8, 8, 384], strides = [1, 1, 1, 1]} : vector<4x10x8x384xbf16> to vector<4x8x8x384xbf16>
    %16 = vector.shape_cast %15 : vector<4x8x8x384xbf16> to vector<256x384xbf16>
    %c1 = arith.constant 1 : index
    %c0_8 = arith.constant 0 : index
    %c0_9 = arith.constant 0 : index
    %17 = vector.load %arg2[%c1, %c0_8, %c0_9] : memref<3x384x128xbf16, #tpu.memory_space<vmem>>, vector<1x384x128xbf16>
    %18 = vector.shape_cast %17 : vector<1x384x128xbf16> to vector<384x128xbf16>
    %cst_10 = arith.constant dense<0.000000e+00> : vector<256x128xf32>
    %19 = tpu.matmul %16, %18, %cst_10 {dimension_numbers = #tpu.dot_dimension_numbers<[1], [0], [0], [1], [0, 0, 1, 1], [], []>} : vector<256x384xbf16>, vector<384x128xbf16>, vector<256x128xf32> -> vector<256x128xf32>
    %20 = arith.addf %14, %19 : vector<256x128xf32>
    %21 = vector.extract_strided_slice %9 {offsets = [0, 2, 0, 0], sizes = [4, 8, 8, 384], strides = [1, 1, 1, 1]} : vector<4x10x8x384xbf16> to vector<4x8x8x384xbf16>
    %22 = vector.shape_cast %21 : vector<4x8x8x384xbf16> to vector<256x384xbf16>
    %c2 = arith.constant 2 : index
    %c0_11 = arith.constant 0 : index
    %c0_12 = arith.constant 0 : index
    %23 = vector.load %arg2[%c2, %c0_11, %c0_12] : memref<3x384x128xbf16, #tpu.memory_space<vmem>>, vector<1x384x128xbf16>
    %24 = vector.shape_cast %23 : vector<1x384x128xbf16> to vector<384x128xbf16>
    %cst_13 = arith.constant dense<0.000000e+00> : vector<256x128xf32>
    %25 = tpu.matmul %22, %24, %cst_13 {dimension_numbers = #tpu.dot_dimension_numbers<[1], [0], [0], [1], [0, 0, 1, 1], [], []>} : vector<256x384xbf16>, vector<384x128xbf16>, vector<256x128xf32> -> vector<256x128xf32>
    %26 = arith.addf %20, %25 : vector<256x128xf32>
    %c0_14 = arith.constant 0 : index
    %c0_15 = arith.constant 0 : index
    %27 = vector.load %arg4[%c0_14, %c0_15] : memref<1x128xf32, #tpu.memory_space<vmem>>, vector<1x128xf32>
    %28 = vector.broadcast %27 : vector<1x128xf32> to vector<256x128xf32>
    %29 = arith.addf %26, %28 : vector<256x128xf32>
    %cst_16 = arith.constant 0.000000e+00 : f32
    %30 = vector.broadcast %cst_16 : f32 to vector<256x128xf32>
    %31 = arith.maximumf %29, %30 : vector<256x128xf32>
    %32 = vector.shape_cast %31 : vector<256x128xf32> to vector<4x8x8x128xf32>
    %33 = arith.truncf %32 : vector<4x8x8x128xf32> to vector<4x8x8x128xbf16>
    %cst_17 = arith.constant 0.000000e+00 : bf16
    %34 = vector.broadcast %cst_17 : bf16 to vector<4x1x8x128xbf16>
    %35 = tpu.concatenate %34, %33, %34 in 1 : vector<4x1x8x128xbf16>, vector<4x8x8x128xbf16>, vector<4x1x8x128xbf16> -> vector<4x10x8x128xbf16>
    %cst_18 = arith.constant 0.000000e+00 : bf16
    %36 = vector.broadcast %cst_18 : bf16 to vector<4x10x1x128xbf16>
    %37 = tpu.concatenate %36, %35, %36 in 2 : vector<4x10x1x128xbf16>, vector<4x10x8x128xbf16>, vector<4x10x1x128xbf16> -> vector<4x10x10x128xbf16>
    %38 = vector.extract_strided_slice %37 {offsets = [0, 0, 0, 0], sizes = [4, 10, 8, 128], strides = [1, 1, 1, 1]} : vector<4x10x10x128xbf16> to vector<4x10x8x128xbf16>
    %39 = vector.extract_strided_slice %37 {offsets = [0, 0, 1, 0], sizes = [4, 10, 8, 128], strides = [1, 1, 1, 1]} : vector<4x10x10x128xbf16> to vector<4x10x8x128xbf16>
    %40 = vector.extract_strided_slice %37 {offsets = [0, 0, 2, 0], sizes = [4, 10, 8, 128], strides = [1, 1, 1, 1]} : vector<4x10x10x128xbf16> to vector<4x10x8x128xbf16>
    %41 = tpu.concatenate %38, %39, %40 in 3 : vector<4x10x8x128xbf16>, vector<4x10x8x128xbf16>, vector<4x10x8x128xbf16> -> vector<4x10x8x384xbf16>
    %42 = vector.extract_strided_slice %41 {offsets = [0, 0, 0, 0], sizes = [4, 8, 8, 384], strides = [1, 1, 1, 1]} : vector<4x10x8x384xbf16> to vector<4x8x8x384xbf16>
    %43 = vector.shape_cast %42 : vector<4x8x8x384xbf16> to vector<256x384xbf16>
    %c0_19 = arith.constant 0 : index
    %c0_20 = arith.constant 0 : index
    %c0_21 = arith.constant 0 : index
    %44 = vector.load %arg3[%c0_19, %c0_20, %c0_21] : memref<3x384x128xbf16, #tpu.memory_space<vmem>>, vector<1x384x128xbf16>
    %45 = vector.shape_cast %44 : vector<1x384x128xbf16> to vector<384x128xbf16>
    %cst_22 = arith.constant dense<0.000000e+00> : vector<256x128xf32>
    %46 = tpu.matmul %43, %45, %cst_22 {dimension_numbers = #tpu.dot_dimension_numbers<[1], [0], [0], [1], [0, 0, 1, 1], [], []>} : vector<256x384xbf16>, vector<384x128xbf16>, vector<256x128xf32> -> vector<256x128xf32>
    %47 = vector.extract_strided_slice %41 {offsets = [0, 1, 0, 0], sizes = [4, 8, 8, 384], strides = [1, 1, 1, 1]} : vector<4x10x8x384xbf16> to vector<4x8x8x384xbf16>
    %48 = vector.shape_cast %47 : vector<4x8x8x384xbf16> to vector<256x384xbf16>
    %c1_23 = arith.constant 1 : index
    %c0_24 = arith.constant 0 : index
    %c0_25 = arith.constant 0 : index
    %49 = vector.load %arg3[%c1_23, %c0_24, %c0_25] : memref<3x384x128xbf16, #tpu.memory_space<vmem>>, vector<1x384x128xbf16>
    %50 = vector.shape_cast %49 : vector<1x384x128xbf16> to vector<384x128xbf16>
    %cst_26 = arith.constant dense<0.000000e+00> : vector<256x128xf32>
    %51 = tpu.matmul %48, %50, %cst_26 {dimension_numbers = #tpu.dot_dimension_numbers<[1], [0], [0], [1], [0, 0, 1, 1], [], []>} : vector<256x384xbf16>, vector<384x128xbf16>, vector<256x128xf32> -> vector<256x128xf32>
    %52 = arith.addf %46, %51 : vector<256x128xf32>
    %53 = vector.extract_strided_slice %41 {offsets = [0, 2, 0, 0], sizes = [4, 8, 8, 384], strides = [1, 1, 1, 1]} : vector<4x10x8x384xbf16> to vector<4x8x8x384xbf16>
    %54 = vector.shape_cast %53 : vector<4x8x8x384xbf16> to vector<256x384xbf16>
    %c2_27 = arith.constant 2 : index
    %c0_28 = arith.constant 0 : index
    %c0_29 = arith.constant 0 : index
    %55 = vector.load %arg3[%c2_27, %c0_28, %c0_29] : memref<3x384x128xbf16, #tpu.memory_space<vmem>>, vector<1x384x128xbf16>
    %56 = vector.shape_cast %55 : vector<1x384x128xbf16> to vector<384x128xbf16>
    %cst_30 = arith.constant dense<0.000000e+00> : vector<256x128xf32>
    %57 = tpu.matmul %54, %56, %cst_30 {dimension_numbers = #tpu.dot_dimension_numbers<[1], [0], [0], [1], [0, 0, 1, 1], [], []>} : vector<256x384xbf16>, vector<384x128xbf16>, vector<256x128xf32> -> vector<256x128xf32>
    %58 = arith.addf %52, %57 : vector<256x128xf32>
    %c0_31 = arith.constant 0 : index
    %c0_32 = arith.constant 0 : index
    %59 = vector.load %arg5[%c0_31, %c0_32] : memref<1x128xf32, #tpu.memory_space<vmem>>, vector<1x128xf32>
    %60 = vector.broadcast %59 : vector<1x128xf32> to vector<256x128xf32>
    %61 = arith.addf %58, %60 : vector<256x128xf32>
    %62 = vector.shape_cast %0 : vector<4x8x8x128xf32> to vector<256x128xf32>
    %63 = arith.addf %62, %61 : vector<256x128xf32>
    %cst_33 = arith.constant 0.000000e+00 : f32
    %64 = vector.broadcast %cst_33 : f32 to vector<256x128xf32>
    %65 = arith.maximumf %63, %64 : vector<256x128xf32>
    %66 = vector.shape_cast %65 : vector<256x128xf32> to vector<4x8x8x128xf32>
    %c0_34 = arith.constant 0 : index
    %c0_35 = arith.constant 0 : index
    %c0_36 = arith.constant 0 : index
    %c0_37 = arith.constant 0 : index
    %67 = vector.load %arg6[%c0_34, %c0_35, %c0_36, %c0_37] : memref<4x8x8x128xf32, #tpu.memory_space<vmem>>, vector<4x8x8x128xf32>
    tpu.vector_store %arg6[%c0_34, %c0_35, %c0_36, %c0_37], %66 {strides = array<i32>} : memref<4x8x8x128xf32, #tpu.memory_space<vmem>>, vector<4x8x8x128xf32>,
    return
  }
  func.func @transform_0(%arg0: i32) -> (i32, i32, i32, i32) {
    %c0_i32 = arith.constant 0 : i32
    %c0_i32_0 = arith.constant 0 : i32
    %c0_i32_1 = arith.constant 0 : i32
    %c0_i32_2 = arith.constant 0 : i32
    return %arg0, %c0_i32, %c0_i32_0, %c0_i32_1 : i32, i32, i32, i32
  }
  func.func @transform_1(%arg0: i32) -> (i32, i32, i32) {
    %c0_i32 = arith.constant 0 : i32
    %c0_i32_0 = arith.constant 0 : i32
    %c0_i32_1 = arith.constant 0 : i32
    %c0_i32_2 = arith.constant 0 : i32
    return %c0_i32, %c0_i32_0, %c0_i32_1 : i32, i32, i32
  }
  func.func @transform_2(%arg0: i32) -> (i32, i32, i32) {
    %c0_i32 = arith.constant 0 : i32
    %c0_i32_0 = arith.constant 0 : i32
    %c0_i32_1 = arith.constant 0 : i32
    %c0_i32_2 = arith.constant 0 : i32
    return %c0_i32, %c0_i32_0, %c0_i32_1 : i32, i32, i32
  }
  func.func @transform_3(%arg0: i32) -> (i32, i32) {
    %c0_i32 = arith.constant 0 : i32
    %c0_i32_0 = arith.constant 0 : i32
    %c0_i32_1 = arith.constant 0 : i32
    return %c0_i32, %c0_i32_0 : i32, i32
  }
  func.func @transform_4(%arg0: i32) -> (i32, i32) {
    %c0_i32 = arith.constant 0 : i32
    %c0_i32_0 = arith.constant 0 : i32
    %c0_i32_1 = arith.constant 0 : i32
    return %c0_i32, %c0_i32_0 : i32, i32
  }
  func.func @transform_5(%arg0: i32) -> (i32, i32, i32, i32) {
    %c0_i32 = arith.constant 0 : i32
    %c0_i32_0 = arith.constant 0 : i32
    %c0_i32_1 = arith.constant 0 : i32
    %c0_i32_2 = arith.constant 0 : i32
    return %arg0, %c0_i32, %c0_i32_0, %c0_i32_1 : i32, i32, i32, i32
  }
}

</mosaic_0001>

<llo_original>
// kernel: _resblock_pallas_impl.1
$region0: #{_resblock_pallas_impl.1}
  #allocation0 [shape = 'u32[]', space=smem, size = 0x4, offset = 0x4, fixed_abs, tag = 'smem constant byte address 0x4 - core index']
  #allocation1 [shape = 'u32[144,128]{1,0:T(1,128)}', space=vmem, size = 0x12000, scoped, tag = 'internal scratch']
  %s0 = inlined_call_operand.vmem [shape: f32[8,8,8,128], index: 0, kind: input, shape index: {}]
  %s1 = inlined_call_operand.vmem [shape: bf16[3,384,128], index: 1, kind: input, shape index: {}]
  %s2 = inlined_call_operand.vmem [shape: bf16[3,384,128], index: 2, kind: input, shape index: {}]
  %s3 = inlined_call_operand.vmem [shape: f32[1,128], index: 3, kind: input, shape index: {}]
  %s4 = inlined_call_operand.vmem [shape: f32[1,128], index: 4, kind: input, shape index: {}]
  %s5 = inlined_call_operand.hbm [shape: f32[8,8,8,128], index: 5, kind: output, shape index: {}]
  %s6 = sld [smem:[#allocation0]]
  $region53: #{_resblock_pallas_impl.1} parent=0
    _
  %s8 = ssub.s32 1, %s6
  %s9 = scalar_select 0, %s8, %s6
  $region1: #{_resblock_pallas_impl.1} parent=0
    #allocation2 [shape = 'u8[262144]{0}', space=vmem, size = 0x40000, scoped, tag = 'output window, operand 0']
    #allocation3 [shape = 's32[2]{0}', space=sflag, size = 0x8, scoped, tag = 'scoped memory for _resblock_pallas_impl.1']
    %10 = vsyncpa [#allocation3], 0
    %s11 = scalar_lea.sflag [#allocation3], 1
    %12 = vsyncpa %s11, 0
    loop: start=0, step=1, limit=4
    $region2: #{_resblock_pallas_impl.1} parent=1 // loop_pre_header
      _
    $region3: #{_resblock_pallas_impl.1} parent=1 // loop_header
      %s14 = sphi 0, %s18
      %p15 = scmp.ge.s32.totalorder %s14, 4
      %s24 = sphi 0, %s26
      %s27 = sphi 0, %s24
      %s28 = sphi 0, %s27
      %s44 = sphi 0, %s28
      %s48 = sphi 0, %s48
      %s50 = sphi 0, %s48
      %s51 = sphi 0, %s50
      %s65 = sphi 0, %s51
      %s69 = sphi 0, %s69
      %s71 = sphi 0, %s69
      %s72 = sphi 0, %s71
      %s86 = sphi 0, %s72
      %s90 = sphi 0, %s90
      %s92 = sphi 0, %s90
      %s93 = sphi 0, %s92
      %s107 = sphi 0, %s93
      %s111 = sphi 0, %s111
      %s113 = sphi 0, %s111
      %s114 = sphi 0, %s113
      %s128 = sphi 0, %s114
      %s134 = sphi 0, %s136
      %s137 = sphi 0, %s134
      %s138 = sphi 0, %s137
      %s154 = sphi 0, %s138
    $region4: #{_resblock_pallas_impl.1} parent=1 // loop_header_branch
      %17 = sbr.rel (%p15) target = $region8
    $region5: #{_resblock_pallas_impl.1} parent=1 // loop_body
      %s19 = ssub.s32 %s14, 1
      %s20 = ssub.s32 %s14, 2
      %s21 = sadd.s32 %s14, 1
      %s22 = ssub.s32 %s14, %s21
      %p23 = scmp.eq.s32.totalorder %s22, 0
      %s25 = sadd.s32 %s24, 1
      %s26 = scalar_select %p23, %s24, %s25
      %p29 = pneg %p23
      %p30 = scmp.eq.s32.totalorder %s14, 1
      %p31 = por %p29, %p30
      %p32 = scmp.ne.s32.totalorder %s24, %s27
      %p33 = scmp.eq.s32.totalorder %s14, 0
      %p34 = por %p32, %p33
      %p35 = scmp.ne.s32.totalorder %s24, %s27
      %p36 = scmp.eq.s32.totalorder %s19, 1
      %p37 = por %p35, %p36
      %p38 = scmp.ne.s32.totalorder %s27, %s28
      %p39 = scmp.eq.s32.totalorder %s19, 0
      %p40 = por %p38, %p39
      %p41 = scmp.ne.s32.totalorder %s27, %s28
      %p42 = scmp.eq.s32.totalorder %s20, 1
      %p43 = por %p41, %p42
      %p45 = scmp.ne.s32.totalorder %s28, %s44
      %p46 = scmp.eq.s32.totalorder %s20, 0
      %p47 = por %p45, %p46
      %s49 = sadd.s32 %s48, 1
      %p52 = scmp.eq.s32.totalorder %s14, 1
      %p53 = scmp.ne.s32.totalorder %s48, %s50
      %p54 = scmp.eq.s32.totalorder %s14, 0
      %p55 = por %p53, %p54
      %p56 = scmp.ne.s32.totalorder %s48, %s50
      %p57 = scmp.eq.s32.totalorder %s19, 1
      %p58 = por %p56, %p57
      %p59 = scmp.ne.s32.totalorder %s50, %s51
      %p60 = scmp.eq.s32.totalorder %s19, 0
      %p61 = por %p59, %p60
      %p62 = scmp.ne.s32.totalorder %s50, %s51
      %p63 = scmp.eq.s32.totalorder %s20, 1
      %p64 = por %p62, %p63
      %p66 = scmp.ne.s32.totalorder %s51, %s65
      %p67 = scmp.eq.s32.totalorder %s20, 0
      %p68 = por %p66, %p67
      %s70 = sadd.s32 %s69, 1
      %p73 = scmp.eq.s32.totalorder %s14, 1
      %p74 = scmp.ne.s32.totalorder %s69, %s71
      %p75 = scmp.eq.s32.totalorder %s14, 0
      %p76 = por %p74, %p75
      %p77 = scmp.ne.s32.totalorder %s69, %s71
      %p78 = scmp.eq.s32.totalorder %s19, 1
      %p79 = por %p77, %p78
      %p80 = scmp.ne.s32.totalorder %s71, %s72
      %p81 = scmp.eq.s32.totalorder %s19, 0
      %p82 = por %p80, %p81
      %p83 = scmp.ne.s32.totalorder %s71, %s72
      %p84 = scmp.eq.s32.totalorder %s20, 1
      %p85 = por %p83, %p84
      %p87 = scmp.ne.s32.totalorder %s72, %s86
      %p88 = scmp.eq.s32.totalorder %s20, 0
      %p89 = por %p87, %p88
      %s91 = sadd.s32 %s90, 1
      %p94 = scmp.eq.s32.totalorder %s14, 1
      %p95 = scmp.ne.s32.totalorder %s90, %s92
      %p96 = scmp.eq.s32.totalorder %s14, 0
      %p97 = por %p95, %p96
      %p98 = scmp.ne.s32.totalorder %s90, %s92
      %p99 = scmp.eq.s32.totalorder %s19, 1
      %p100 = por %p98, %p99
      %p101 = scmp.ne.s32.totalorder %s92, %s93
      %p102 = scmp.eq.s32.totalorder %s19, 0
      %p103 = por %p101, %p102
      %p104 = scmp.ne.s32.totalorder %s92, %s93
      %p105 = scmp.eq.s32.totalorder %s20, 1
      %p106 = por %p104, %p105
      %p108 = scmp.ne.s32.totalorder %s93, %s107
      %p109 = scmp.eq.s32.totalorder %s20, 0
      %p110 = por %p108, %p109
      %s112 = sadd.s32 %s111, 1
      %p115 = scmp.eq.s32.totalorder %s14, 1
      %p116 = scmp.ne.s32.totalorder %s111, %s113
      %p117 = scmp.eq.s32.totalorder %s14, 0
      %p118 = por %p116, %p117
      %p119 = scmp.ne.s32.totalorder %s111, %s113
      %p120 = scmp.eq.s32.totalorder %s19, 1
      %p121 = por %p119, %p120
      %p122 = scmp.ne.s32.totalorder %s113, %s114
      %p123 = scmp.eq.s32.totalorder %s19, 0
      %p124 = por %p122, %p123
      %p125 = scmp.ne.s32.totalorder %s113, %s114
      %p126 = scmp.eq.s32.totalorder %s20, 1
      %p127 = por %p125, %p126
      %p129 = scmp.ne.s32.totalorder %s114, %s128
      %p130 = scmp.eq.s32.totalorder %s20, 0
      %p131 = por %p129, %p130
      %s132 = ssub.s32 %s14, %s21
      %p133 = scmp.eq.s32.totalorder %s132, 0
      %s135 = sadd.s32 %s134, 1
      %s136 = scalar_select %p133, %s134, %s135
      %p139 = pneg %p133
      %p140 = scmp.eq.s32.totalorder %s14, 1
      %p141 = por %p139, %p140
      %p142 = scmp.ne.s32.totalorder %s134, %s137
      %p143 = scmp.eq.s32.totalorder %s14, 0
      %p144 = por %p142, %p143
      %p145 = scmp.ne.s32.totalorder %s134, %s137
      %p146 = scmp.eq.s32.totalorder %s19, 1
      %p147 = por %p145, %p146
      %p148 = scmp.ne.s32.totalorder %s137, %s138
      %p149 = scmp.eq.s32.totalorder %s19, 0
      %p150 = por %p148, %p149
      %p151 = scmp.ne.s32.totalorder %s137, %s138
      %p152 = scmp.eq.s32.totalorder %s20, 1
      %p153 = por %p151, %p152
      %p155 = scmp.ne.s32.totalorder %s138, %s154
      %p156 = scmp.eq.s32.totalorder %s20, 0
      %p157 = por %p155, %p156
      %p158 = scmp.le.s32.totalorder 1, %s14
      %p159 = scmp.lt.s32.totalorder %s14, 3
      %p160 = pnand %p158, %p159
      %p161 = pneg %p160
      // Predicated region
      $region9: #{_resblock_pallas_impl.1} parent=5 // pred_check
        _
      $region10: #{_resblock_pallas_impl.1} parent=5 // pred_check_branch
        %163 = sbr.rel (%p160) target = $region12
      $region11: #{_resblock_pallas_impl.1} parent=5 // pred_region
        %s164 = ssub.s32 %s14, 1
        // Predicated region
        $region13: #{_resblock_pallas_impl.1} parent=11 // pred_check
          %p165 = pneg %p61
        $region14: #{_resblock_pallas_impl.1} parent=11 // pred_check_branch
          %167 = sbr.rel (%p165) target = $region16
        $region15: #{_resblock_pallas_impl.1} parent=11 // pred_region
          _
        $region16: #{_resblock_pallas_impl.1} parent=11 // pred_fallthru
          _
        // Predicated region
        $region17: #{_resblock_pallas_impl.1} parent=11 // pred_check
          %p168 = pneg %p82
        $region18: #{_resblock_pallas_impl.1} parent=11 // pred_check_branch
          %170 = sbr.rel (%p168) target = $region20
        $region19: #{_resblock_pallas_impl.1} parent=11 // pred_region
          _
        $region20: #{_resblock_pallas_impl.1} parent=11 // pred_fallthru
          _
        // Predicated region
        $region21: #{_resblock_pallas_impl.1} parent=11 // pred_check
          %p171 = pneg %p103
        $region22: #{_resblock_pallas_impl.1} parent=11 // pred_check_branch
          %173 = sbr.rel (%p171) target = $region24
        $region23: #{_resblock_pallas_impl.1} parent=11 // pred_region
          _
        $region24: #{_resblock_pallas_impl.1} parent=11 // pred_fallthru
          _
        // Predicated region
        $region25: #{_resblock_pallas_impl.1} parent=11 // pred_check
          %p174 = pneg %p124
        $region26: #{_resblock_pallas_impl.1} parent=11 // pred_check_branch
          %176 = sbr.rel (%p174) target = $region28
        $region27: #{_resblock_pallas_impl.1} parent=11 // pred_region
          _
        $region28: #{_resblock_pallas_impl.1} parent=11 // pred_fallthru
          _
      $region12: #{_resblock_pallas_impl.1} parent=5 // pred_fallthru
        _
      %p177 = scmp.lt.s32.totalorder %s14, 2
      // Predicated region
      $region29: #{_resblock_pallas_impl.1} parent=5 // pred_check
        %p178 = pneg %p177
      $region30: #{_resblock_pallas_impl.1} parent=5 // pred_check_branch
        %180 = sbr.rel (%p178) target = $region32
      $region31: #{_resblock_pallas_impl.1} parent=5 // pred_region
        // Predicated region
        $region33: #{_resblock_pallas_impl.1} parent=31 // pred_check
          %p181 = pneg %p34
        $region34: #{_resblock_pallas_impl.1} parent=31 // pred_check_branch
          %183 = sbr.rel (%p181) target = $region36
        $region35: #{_resblock_pallas_impl.1} parent=31 // pred_region
          %s184 = smul.u32 4, %s14
          %p185 = scmp.lt.s32.totalorder %s184, 7
          %s186 = scalar_select %p185, %s184, 7
          %s187 = smul.addr %s186, 8
          %s188 = smul.addr %s187, 8
          %s189 = scalar_lea.vmem %s0, %s188
          %s190 = smul.u32 4, %s14
        $region36: #{_resblock_pallas_impl.1} parent=31 // pred_fallthru
          _
      $region32: #{_resblock_pallas_impl.1} parent=5 // pred_fallthru
        _
      %p191 = scmp.le.s32.totalorder 1, %s14
      %p192 = scmp.lt.s32.totalorder %s14, 3
      %p193 = pnand %p191, %p192
      %p194 = pneg %p193
      // Predicated region
      $region37: #{_resblock_pallas_impl.1} parent=5 // pred_check
        _
      $region38: #{_resblock_pallas_impl.1} parent=5 // pred_check_branch
        %196 = sbr.rel (%p193) target = $region40
      $region39: #{_resblock_pallas_impl.1} parent=5 // pred_region
        %s197 = ssub.s32 %s14, 1
        %s198 = smul.u32 4, %s19
        %p199 = scmp.lt.s32.totalorder %s198, 7
        %s200 = scalar_select %p199, %s198, 7
        %s201 = smul.addr %s200, 8
        %s202 = smul.addr %s201, 8
        %s203 = scalar_lea.vmem %s0, %s202
        %p204 = pneg %p40
        %p205 = pneg %p37
        %p206 = pneg %p61
        %p207 = pneg %p58
        %p208 = pneg %p82
        %p209 = pneg %p79
        %p210 = pneg %p103
        %p211 = pneg %p100
        %p212 = pneg %p124
        %p213 = pneg %p121
        %p214 = pneg %p150
        %p215 = pneg %p147
        %s216 = sand.u32 %s137, 1
        %s217 = scalar_lea.sflag [#allocation3], %s216
        %s218 = sand.u32 %s137, 1
        %s219 = smul.addr %s218, 256
        %s220 = scalar_lea.vmem [#allocation2], %s219
        %s221 = smul.u32 4, %s19
        %p222 = scmp.lt.s32.totalorder %s221, 7
        %s223 = scalar_select %p222, %s221, 7
        %s224 = smul.addr %s223, 8
        %s225 = smul.addr %s224, 8
        %s226 = scalar_lea.vmem %s0, %s225
        %s227 = smul.u32 4, %s19
        %s228 = smul.u32 4, %s19
        %v230 = vld [vmem:[%s226] sm:$0xff]
        %v231 = vld [vmem:[%s226 + $0x8] sm:$0xff]
        %v232 = vld [vmem:[%s226 + $0x10] sm:$0xff]
        %v233 = vld [vmem:[%s226 + $0x18] sm:$0xff]
        %v234 = vld [vmem:[%s226 + $0x20] sm:$0xff]
        %v235 = vld [vmem:[%s226 + $0x28] sm:$0xff]
        %v236 = vld [vmem:[%s226 + $0x30] sm:$0xff]
        %v237 = vld [vmem:[%s226 + $0x38] sm:$0xff]
        %v238 = vld [vmem:[%s226 + $0x40] sm:$0xff]
        %v239 = vld [vmem:[%s226 + $0x48] sm:$0xff]
        %v240 = vld [vmem:[%s226 + $0x50] sm:$0xff]
        %v241 = vld [vmem:[%s226 + $0x58] sm:$0xff]
        %v242 = vld [vmem:[%s226 + $0x60] sm:$0xff]
        %v243 = vld [vmem:[%s226 + $0x68] sm:$0xff]
        %v244 = vld [vmem:[%s226 + $0x70] sm:$0xff]
        %v245 = vld [vmem:[%s226 + $0x78] sm:$0xff]
        %v246 = vld [vmem:[%s226 + $0x80] sm:$0xff]
        %v247 = vld [vmem:[%s226 + $0x88] sm:$0xff]
        %v248 = vld [vmem:[%s226 + $0x90] sm:$0xff]
        %v249 = vld [vmem:[%s226 + $0x98] sm:$0xff]
        %v250 = vld [vmem:[%s226 + $0xa0] sm:$0xff]
        %v251 = vld [vmem:[%s226 + $0xa8] sm:$0xff]
        %v252 = vld [vmem:[%s226 + $0xb0] sm:$0xff]
        %v253 = vld [vmem:[%s226 + $0xb8] sm:$0xff]
        %v254 = vld [vmem:[%s226 + $0xc0] sm:$0xff]
        %v255 = vld [vmem:[%s226 + $0xc8] sm:$0xff]
        %v256 = vld [vmem:[%s226 + $0xd0] sm:$0xff]
        %v257 = vld [vmem:[%s226 + $0xd8] sm:$0xff]
        %v258 = vld [vmem:[%s226 + $0xe0] sm:$0xff]
        %v259 = vld [vmem:[%s226 + $0xe8] sm:$0xff]
        %v260 = vld [vmem:[%s226 + $0xf0] sm:$0xff]
        %v261 = vld [vmem:[%s226 + $0xf8] sm:$0xff]
        %v262 = vpack.c.bf16 %v230, %v230
        %v263 = vpack.c.bf16 %v231, %v231
        %v264 = vpack.c.bf16 %v232, %v232
        %v265 = vpack.c.bf16 %v233, %v233
        %v266 = vpack.c.bf16 %v234, %v234
        %v267 = vpack.c.bf16 %v235, %v235
        %v268 = vpack.c.bf16 %v236, %v236
        %v269 = vpack.c.bf16 %v237, %v237
        %v270 = vpack.c.bf16 %v238, %v238
        %v271 = vpack.c.bf16 %v239, %v239
        %v272 = vpack.c.bf16 %v240, %v240
        %v273 = vpack.c.bf16 %v241, %v241
        %v274 = vpack.c.bf16 %v242, %v242
        %v275 = vpack.c.bf16 %v243, %v243
        %v276 = vpack.c.bf16 %v244, %v244
        %v277 = vpack.c.bf16 %v245, %v245
        %v278 = vpack.c.bf16 %v246, %v246
        %v279 = vpack.c.bf16 %v247, %v247
        %v280 = vpack.c.bf16 %v248, %v248
        %v281 = vpack.c.bf16 %v249, %v249
        %v282 = vpack.c.bf16 %v250, %v250
        %v283 = vpack.c.bf16 %v251, %v251
        %v284 = vpack.c.bf16 %v252, %v252
        %v285 = vpack.c.bf16 %v253, %v253
        %v286 = vpack.c.bf16 %v254, %v254
        %v287 = vpack.c.bf16 %v255, %v255
        %v288 = vpack.c.bf16 %v256, %v256
        %v289 = vpack.c.bf16 %v257, %v257
        %v290 = vpack.c.bf16 %v258, %v258
        %v291 = vpack.c.bf16 %v259, %v259
        %v292 = vpack.c.bf16 %v260, %v260
        %v293 = vpack.c.bf16 %v261, %v261
        %v295 = vshrl.u32 0, 16
        %v297 = vrot.slane %v295, 7
        %v298 = vshll.u32 0, 16
        %v300 = vor.u32 %v297, %v298
        %v302 = vshrl.u32 %v262, 16
        %v304 = vrot.slane %v302, 7
        %v305 = vshll.u32 %v262, 16
        %v307 = vor.u32 %v304, %v305
        %v309 = vshrl.u32 %v263, 16
        %v311 = vrot.slane %v309, 7
        %v312 = vshll.u32 %v263, 16
        %v314 = vor.u32 %v311, %v312
        %v316 = vshrl.u32 %v264, 16
        %v318 = vrot.slane %v316, 7
        %v319 = vshll.u32 %v264, 16
        %v321 = vor.u32 %v318, %v319
        %v323 = vshrl.u32 %v265, 16
        %v325 = vrot.slane %v323, 7
        %v326 = vshll.u32 %v265, 16
        %v328 = vor.u32 %v325, %v326
        %v330 = vshrl.u32 %v266, 16
        %v332 = vrot.slane %v330, 7
        %v333 = vshll.u32 %v266, 16
        %v335 = vor.u32 %v332, %v333
        %v337 = vshrl.u32 %v267, 16
        %v339 = vrot.slane %v337, 7
        %v340 = vshll.u32 %v267, 16
        %v342 = vor.u32 %v339, %v340
        %v344 = vshrl.u32 %v268, 16
        %v346 = vrot.slane %v344, 7
        %v347 = vshll.u32 %v268, 16
        %v349 = vor.u32 %v346, %v347
        %v351 = vshrl.u32 %v269, 16
        %v353 = vrot.slane %v351, 7
        %v354 = vshll.u32 %v269, 16
        %v356 = vor.u32 %v353, %v354
        %v358 = vshrl.u32 %v270, 16
        %v360 = vrot.slane %v358, 7
        %v361 = vshll.u32 %v270, 16
        %v363 = vor.u32 %v360, %v361
        %v365 = vshrl.u32 %v271, 16
        %v367 = vrot.slane %v365, 7
        %v368 = vshll.u32 %v271, 16
        %v370 = vor.u32 %v367, %v368
        %v372 = vshrl.u32 %v272, 16
        %v374 = vrot.slane %v372, 7
        %v375 = vshll.u32 %v272, 16
        %v377 = vor.u32 %v374, %v375
        %v379 = vshrl.u32 %v273, 16
        %v381 = vrot.slane %v379, 7
        %v382 = vshll.u32 %v273, 16
        %v384 = vor.u32 %v381, %v382
        %v386 = vshrl.u32 %v274, 16
        %v388 = vrot.slane %v386, 7
        %v389 = vshll.u32 %v274, 16
        %v391 = vor.u32 %v388, %v389
        %v393 = vshrl.u32 %v275, 16
        %v395 = vrot.slane %v393, 7
        %v396 = vshll.u32 %v275, 16
        %v398 = vor.u32 %v395, %v396
        %v400 = vshrl.u32 %v276, 16
        %v402 = vrot.slane %v400, 7
        %v403 = vshll.u32 %v276, 16
        %v405 = vor.u32 %v402, %v403
        %v407 = vshrl.u32 %v277, 16
        %v409 = vrot.slane %v407, 7
        %v410 = vshll.u32 %v277, 16
        %v412 = vor.u32 %v409, %v410
        %v414 = vshrl.u32 %v278, 16
        %v416 = vrot.slane %v414, 7
        %v417 = vshll.u32 %v278, 16
        %v419 = vor.u32 %v416, %v417
        %v421 = vshrl.u32 %v279, 16
        %v423 = vrot.slane %v421, 7
        %v424 = vshll.u32 %v279, 16
        %v426 = vor.u32 %v423, %v424
        %v428 = vshrl.u32 %v280, 16
        %v430 = vrot.slane %v428, 7
        %v431 = vshll.u32 %v280, 16
        %v433 = vor.u32 %v430, %v431
        %v435 = vshrl.u32 %v281, 16
        %v437 = vrot.slane %v435, 7
        %v438 = vshll.u32 %v281, 16
        %v440 = vor.u32 %v437, %v438
        %v442 = vshrl.u32 %v282, 16
        %v444 = vrot.slane %v442, 7
        %v445 = vshll.u32 %v282, 16
        %v447 = vor.u32 %v444, %v445
        %v449 = vshrl.u32 %v283, 16
        %v451 = vrot.slane %v449, 7
        %v452 = vshll.u32 %v283, 16
        %v454 = vor.u32 %v451, %v452
        %v456 = vshrl.u32 %v284, 16
        %v458 = vrot.slane %v456, 7
        %v459 = vshll.u32 %v284, 16
        %v461 = vor.u32 %v458, %v459
        %v463 = vshrl.u32 %v285, 16
        %v465 = vrot.slane %v463, 7
        %v466 = vshll.u32 %v285, 16
        %v468 = vor.u32 %v465, %v466
        %v470 = vshrl.u32 %v286, 16
        %v472 = vrot.slane %v470, 7
        %v473 = vshll.u32 %v286, 16
        %v475 = vor.u32 %v472, %v473
        %v477 = vshrl.u32 %v287, 16
        %v479 = vrot.slane %v477, 7
        %v480 = vshll.u32 %v287, 16
        %v482 = vor.u32 %v479, %v480
        %v484 = vshrl.u32 %v288, 16
        %v486 = vrot.slane %v484, 7
        %v487 = vshll.u32 %v288, 16
        %v489 = vor.u32 %v486, %v487
        %v491 = vshrl.u32 %v289, 16
        %v493 = vrot.slane %v491, 7
        %v494 = vshll.u32 %v289, 16
        %v496 = vor.u32 %v493, %v494
        %v498 = vshrl.u32 %v290, 16
        %v500 = vrot.slane %v498, 7
        %v501 = vshll.u32 %v290, 16
        %v503 = vor.u32 %v500, %v501
        %v505 = vshrl.u32 %v291, 16
        %v507 = vrot.slane %v505, 7
        %v508 = vshll.u32 %v291, 16
        %v510 = vor.u32 %v507, %v508
        %v512 = vshrl.u32 %v292, 16
        %v514 = vrot.slane %v512, 7
        %v515 = vshll.u32 %v292, 16
        %v517 = vor.u32 %v514, %v515
        %v519 = vshrl.u32 %v293, 16
        %v521 = vrot.slane %v519, 7
        %v522 = vshll.u32 %v293, 16
        %v524 = vor.u32 %v521, %v522
        %vm558 = vcmask 1040384
        %vm559 = vsmask.f32 256
        %vm560 = vmand %vm558, %vm559
        %v561 = vsel %vm560, 0, %v300
        %v562 = vsel %vm560, 0, %v307
        %v563 = vsel %vm560, 0, %v314
        %v564 = vsel %vm560, 0, %v321
        %v565 = vsel %vm560, 0, %v328
        %v566 = vsel %vm560, 0, %v335
        %v567 = vsel %vm560, 0, %v342
        %v568 = vsel %vm560, 0, %v349
        %v569 = vsel %vm560, 0, %v356
        %v570 = vsel %vm560, 0, %v363
        %v571 = vsel %vm560, 0, %v370
        %v572 = vsel %vm560, 0, %v377
        %v573 = vsel %vm560, 0, %v384
        %v574 = vsel %vm560, 0, %v391
        %v575 = vsel %vm560, 0, %v398
        %v576 = vsel %vm560, 0, %v405
        %v577 = vsel %vm560, 0, %v412
        %v578 = vsel %vm560, 0, %v419
        %v579 = vsel %vm560, 0, %v426
        %v580 = vsel %vm560, 0, %v433
        %v581 = vsel %vm560, 0, %v440
        %v582 = vsel %vm560, 0, %v447
        %v583 = vsel %vm560, 0, %v454
        %v584 = vsel %vm560, 0, %v461
        %v585 = vsel %vm560, 0, %v468
        %v586 = vsel %vm560, 0, %v475
        %v587 = vsel %vm560, 0, %v482
        %v588 = vsel %vm560, 0, %v489
        %v589 = vsel %vm560, 0, %v496
        %v590 = vsel %vm560, 0, %v503
        %v591 = vsel %vm560, 0, %v510
        %v592 = vsel %vm560, 0, %v517
        %v593 = vsel %vm560, 0, %v524
        %vm594 = vcmask 1044480
        %vm595 = vsmask.f32 4352
        %vm596 = vmand %vm594, %vm595
        %v597 = vsel %vm596, %v561, 0
        %v598 = vsel %vm596, %v562, 0
        %v599 = vsel %vm596, %v563, 0
        %v600 = vsel %vm596, %v564, 0
        %v601 = vsel %vm596, %v565, 0
        %v602 = vsel %vm596, %v566, 0
        %v603 = vsel %vm596, %v567, 0
        %v604 = vsel %vm596, %v568, 0
        %v605 = vsel %vm596, %v569, 0
        %v606 = vsel %vm596, %v570, 0
        %v607 = vsel %vm596, %v571, 0
        %v608 = vsel %vm596, %v572, 0
        %v609 = vsel %vm596, %v573, 0
        %v610 = vsel %vm596, %v574, 0
        %v611 = vsel %vm596, %v575, 0
        %v612 = vsel %vm596, %v576, 0
        %v613 = vsel %vm596, %v577, 0
        %v614 = vsel %vm596, %v578, 0
        %v615 = vsel %vm596, %v579, 0
        %v616 = vsel %vm596, %v580, 0
        %v617 = vsel %vm596, %v581, 0
        %v618 = vsel %vm596, %v582, 0
        %v619 = vsel %vm596, %v583, 0
        %v620 = vsel %vm596, %v584, 0
        %v621 = vsel %vm596, %v585, 0
        %v622 = vsel %vm596, %v586, 0
        %v623 = vsel %vm596, %v587, 0
        %v624 = vsel %vm596, %v588, 0
        %v625 = vsel %vm596, %v589, 0
        %v626 = vsel %vm596, %v590, 0
        %v627 = vsel %vm596, %v591, 0
        %v628 = vsel %vm596, %v592, 0
        %v629 = vsel %vm596, %v593, 0
        %v631 = vshrl.u32 %v597, 16
        %v633 = vshll.u32 %v597, 16
        %v635 = vrot.slane %v633, 1
        %v636 = vor.u32 %v631, %v635
        %v638 = vshrl.u32 %v598, 16
        %v640 = vshll.u32 %v598, 16
        %v642 = vrot.slane %v640, 1
        %v643 = vor.u32 %v638, %v642
        %v645 = vshrl.u32 %v599, 16
        %v647 = vshll.u32 %v599, 16
        %v649 = vrot.slane %v647, 1
        %v650 = vor.u32 %v645, %v649
        %v652 = vshrl.u32 %v600, 16
        %v654 = vshll.u32 %v600, 16
        %v656 = vrot.slane %v654, 1
        %v657 = vor.u32 %v652, %v656
        %v659 = vshrl.u32 %v601, 16
        %v661 = vshll.u32 %v601, 16
        %v663 = vrot.slane %v661, 1
        %v664 = vor.u32 %v659, %v663
        %v666 = vshrl.u32 %v602, 16
        %v668 = vshll.u32 %v602, 16
        %v670 = vrot.slane %v668, 1
        %v671 = vor.u32 %v666, %v670
        %v673 = vshrl.u32 %v603, 16
        %v675 = vshll.u32 %v603, 16
        %v677 = vrot.slane %v675, 1
        %v678 = vor.u32 %v673, %v677
        %v680 = vshrl.u32 %v604, 16
        %v682 = vshll.u32 %v604, 16
        %v684 = vrot.slane %v682, 1
        %v685 = vor.u32 %v680, %v684
        %v687 = vshrl.u32 %v605, 16
        %v689 = vshll.u32 %v605, 16
        %v691 = vrot.slane %v689, 1
        %v692 = vor.u32 %v687, %v691
        %v694 = vshrl.u32 %v606, 16
        %v696 = vshll.u32 %v606, 16
        %v698 = vrot.slane %v696, 1
        %v699 = vor.u32 %v694, %v698
        %v701 = vshrl.u32 %v607, 16
        %v703 = vshll.u32 %v607, 16
        %v705 = vrot.slane %v703, 1
        %v706 = vor.u32 %v701, %v705
        %v708 = vshrl.u32 %v608, 16
        %v710 = vshll.u32 %v608, 16
        %v712 = vrot.slane %v710, 1
        %v713 = vor.u32 %v708, %v712
        %v715 = vshrl.u32 %v609, 16
        %v717 = vshll.u32 %v609, 16
        %v719 = vrot.slane %v717, 1
        %v720 = vor.u32 %v715, %v719
        %v722 = vshrl.u32 %v610, 16
        %v724 = vshll.u32 %v610, 16
        %v726 = vrot.slane %v724, 1
        %v727 = vor.u32 %v722, %v726
        %v729 = vshrl.u32 %v611, 16
        %v731 = vshll.u32 %v611, 16
        %v733 = vrot.slane %v731, 1
        %v734 = vor.u32 %v729, %v733
        %v736 = vshrl.u32 %v612, 16
        %v738 = vshll.u32 %v612, 16
        %v740 = vrot.slane %v738, 1
        %v741 = vor.u32 %v736, %v740
        %v743 = vshrl.u32 %v613, 16
        %v745 = vshll.u32 %v613, 16
        %v747 = vrot.slane %v745, 1
        %v748 = vor.u32 %v743, %v747
        %v750 = vshrl.u32 %v614, 16
        %v752 = vshll.u32 %v614, 16
        %v754 = vrot.slane %v752, 1
        %v755 = vor.u32 %v750, %v754
        %v757 = vshrl.u32 %v615, 16
        %v759 = vshll.u32 %v615, 16
        %v761 = vrot.slane %v759, 1
        %v762 = vor.u32 %v757, %v761
        %v764 = vshrl.u32 %v616, 16
        %v766 = vshll.u32 %v616, 16
        %v768 = vrot.slane %v766, 1
        %v769 = vor.u32 %v764, %v768
        %v771 = vshrl.u32 %v617, 16
        %v773 = vshll.u32 %v617, 16
        %v775 = vrot.slane %v773, 1
        %v776 = vor.u32 %v771, %v775
        %v778 = vshrl.u32 %v618, 16
        %v780 = vshll.u32 %v618, 16
        %v782 = vrot.slane %v780, 1
        %v783 = vor.u32 %v778, %v782
        %v785 = vshrl.u32 %v619, 16
        %v787 = vshll.u32 %v619, 16
        %v789 = vrot.slane %v787, 1
        %v790 = vor.u32 %v785, %v789
        %v792 = vshrl.u32 %v620, 16
        %v794 = vshll.u32 %v620, 16
        %v796 = vrot.slane %v794, 1
        %v797 = vor.u32 %v792, %v796
        %v799 = vshrl.u32 %v621, 16
        %v801 = vshll.u32 %v621, 16
        %v803 = vrot.slane %v801, 1
        %v804 = vor.u32 %v799, %v803
        %v806 = vshrl.u32 %v622, 16
        %v808 = vshll.u32 %v622, 16
        %v810 = vrot.slane %v808, 1
        %v811 = vor.u32 %v806, %v810
        %v813 = vshrl.u32 %v623, 16
        %v815 = vshll.u32 %v623, 16
        %v817 = vrot.slane %v815, 1
        %v818 = vor.u32 %v813, %v817
        %v820 = vshrl.u32 %v624, 16
        %v822 = vshll.u32 %v624, 16
        %v824 = vrot.slane %v822, 1
        %v825 = vor.u32 %v820, %v824
        %v827 = vshrl.u32 %v625, 16
        %v829 = vshll.u32 %v625, 16
        %v831 = vrot.slane %v829, 1
        %v832 = vor.u32 %v827, %v831
        %v834 = vshrl.u32 %v626, 16
        %v836 = vshll.u32 %v626, 16
        %v838 = vrot.slane %v836, 1
        %v839 = vor.u32 %v834, %v838
        %v841 = vshrl.u32 %v627, 16
        %v843 = vshll.u32 %v627, 16
        %v845 = vrot.slane %v843, 1
        %v846 = vor.u32 %v841, %v845
        %v848 = vshrl.u32 %v628, 16
        %v850 = vshll.u32 %v628, 16
        %v852 = vrot.slane %v850, 1
        %v853 = vor.u32 %v848, %v852
        %v855 = vshrl.u32 %v629, 16
        %v857 = vshll.u32 %v629, 16
        %v859 = vrot.slane %v857, 1
        %v860 = vor.u32 %v855, %v859
        %v894 = vrot.slane %v597, 1
        %v895 = vrot.slane %v598, 1
        %v896 = vrot.slane %v599, 1
        %v897 = vrot.slane %v600, 1
        %v898 = vrot.slane %v601, 1
        %v899 = vrot.slane %v602, 1
        %v900 = vrot.slane %v603, 1
        %v901 = vrot.slane %v604, 1
        %v902 = vrot.slane %v605, 1
        %v903 = vrot.slane %v606, 1
        %v904 = vrot.slane %v607, 1
        %v905 = vrot.slane %v608, 1
        %v906 = vrot.slane %v609, 1
        %v907 = vrot.slane %v610, 1
        %v908 = vrot.slane %v611, 1
        %v909 = vrot.slane %v612, 1
        %v910 = vrot.slane %v613, 1
        %v911 = vrot.slane %v614, 1
        %v912 = vrot.slane %v615, 1
        %v913 = vrot.slane %v616, 1
        %v914 = vrot.slane %v617, 1
        %v915 = vrot.slane %v618, 1
        %v916 = vrot.slane %v619, 1
        %v917 = vrot.slane %v620, 1
        %v918 = vrot.slane %v621, 1
        %v919 = vrot.slane %v622, 1
        %v920 = vrot.slane %v623, 1
        %v921 = vrot.slane %v624, 1
        %v922 = vrot.slane %v625, 1
        %v923 = vrot.slane %v626, 1
        %v924 = vrot.slane %v627, 1
        %v925 = vrot.slane %v628, 1
        %v926 = vrot.slane %v629, 1
        %v927 = vunpack.c.l.b16 %v597
        %v928 = vunpack.c.l.b16 %v636
        %v929 = vunpack.c.l.b16 %v894
        %v930 = vunpack.c.l.b16 %v598
        %v931 = vunpack.c.l.b16 %v643
        %v932 = vunpack.c.l.b16 %v895
        %v933 = vunpack.c.l.b16 %v599
        %v934 = vunpack.c.l.b16 %v650
        %v935 = vunpack.c.l.b16 %v896
        %v936 = vunpack.c.l.b16 %v600
        %v937 = vunpack.c.l.b16 %v657
        %v938 = vunpack.c.l.b16 %v897
        %v939 = vunpack.c.l.b16 %v601
        %v940 = vunpack.c.l.b16 %v664
        %v941 = vunpack.c.l.b16 %v898
        %v942 = vunpack.c.l.b16 %v602
        %v943 = vunpack.c.l.b16 %v671
        %v944 = vunpack.c.l.b16 %v899
        %v945 = vunpack.c.l.b16 %v603
        %v946 = vunpack.c.l.b16 %v678
        %v947 = vunpack.c.l.b16 %v900
        %v948 = vunpack.c.l.b16 %v604
        %v949 = vunpack.c.l.b16 %v685
        %v950 = vunpack.c.l.b16 %v901
        %v951 = vunpack.c.l.b16 %v606
        %v952 = vunpack.c.l.b16 %v699
        %v953 = vunpack.c.l.b16 %v903
        %v954 = vunpack.c.l.b16 %v607
        %v955 = vunpack.c.l.b16 %v706
        %v956 = vunpack.c.l.b16 %v904
        %v957 = vunpack.c.l.b16 %v608
        %v958 = vunpack.c.l.b16 %v713
        %v959 = vunpack.c.l.b16 %v905
        %v960 = vunpack.c.l.b16 %v609
        %v961 = vunpack.c.l.b16 %v720
        %v962 = vunpack.c.l.b16 %v906
        %v963 = vunpack.c.l.b16 %v610
        %v964 = vunpack.c.l.b16 %v727
        %v965 = vunpack.c.l.b16 %v907
        %v966 = vunpack.c.l.b16 %v611
        %v967 = vunpack.c.l.b16 %v734
        %v968 = vunpack.c.l.b16 %v908
        %v969 = vunpack.c.l.b16 %v612
        %v970 = vunpack.c.l.b16 %v741
        %v971 = vunpack.c.l.b16 %v909
        %v972 = vunpack.c.l.b16 %v614
        %v973 = vunpack.c.l.b16 %v755
        %v974 = vunpack.c.l.b16 %v911
        %v975 = vunpack.c.l.b16 %v615
        %v976 = vunpack.c.l.b16 %v762
        %v977 = vunpack.c.l.b16 %v912
        %v978 = vunpack.c.l.b16 %v616
        %v979 = vunpack.c.l.b16 %v769
        %v980 = vunpack.c.l.b16 %v913
        %v981 = vunpack.c.l.b16 %v617
        %v982 = vunpack.c.l.b16 %v776
        %v983 = vunpack.c.l.b16 %v914
        %v984 = vunpack.c.l.b16 %v618
        %v985 = vunpack.c.l.b16 %v783
        %v986 = vunpack.c.l.b16 %v915
        %v987 = vunpack.c.l.b16 %v619
        %v988 = vunpack.c.l.b16 %v790
        %v989 = vunpack.c.l.b16 %v916
        %v990 = vunpack.c.l.b16 %v620
        %v991 = vunpack.c.l.b16 %v797
        %v992 = vunpack.c.l.b16 %v917
        %v993 = vunpack.c.l.b16 %v622
        %v994 = vunpack.c.l.b16 %v811
        %v995 = vunpack.c.l.b16 %v919
        %v996 = vunpack.c.l.b16 %v623
        %v997 = vunpack.c.l.b16 %v818
        %v998 = vunpack.c.l.b16 %v920
        %v999 = vunpack.c.l.b16 %v624
        %v1000 = vunpack.c.l.b16 %v825
        %v1001 = vunpack.c.l.b16 %v921
        %v1002 = vunpack.c.l.b16 %v625
        %v1003 = vunpack.c.l.b16 %v832
        %v1004 = vunpack.c.l.b16 %v922
        %v1005 = vunpack.c.l.b16 %v626
        %v1006 = vunpack.c.l.b16 %v839
        %v1007 = vunpack.c.l.b16 %v923
        %v1008 = vunpack.c.l.b16 %v627
        %v1009 = vunpack.c.l.b16 %v846
        %v1010 = vunpack.c.l.b16 %v924
        %v1011 = vunpack.c.l.b16 %v628
        %v1012 = vunpack.c.l.b16 %v853
        %v1013 = vunpack.c.l.b16 %v925
        %v1014 = vld [vmem:[%s1] sm:$0xf]
        %v1015 = vld [vmem:[%s1 + $0x4] sm:$0xf]
        %v1016 = vld [vmem:[%s1 + $0x8] sm:$0xf]
        %v1017 = vld [vmem:[%s1 + $0xc] sm:$0xf]
        %v1018 = vld [vmem:[%s1 + $0x10] sm:$0xf]
        %v1019 = vld [vmem:[%s1 + $0x14] sm:$0xf]
        %v1020 = vld [vmem:[%s1 + $0x18] sm:$0xf]
        %v1021 = vld [vmem:[%s1 + $0x1c] sm:$0xf]
        %v1022 = vld [vmem:[%s1 + $0x20] sm:$0xf]
        %v1023 = vld [vmem:[%s1 + $0x24] sm:$0xf]
        %v1024 = vld [vmem:[%s1 + $0x28] sm:$0xf]
        %v1025 = vld [vmem:[%s1 + $0x2c] sm:$0xf]
        %v1026 = vld [vmem:[%s1 + $0x30] sm:$0xf]
        %v1027 = vld [vmem:[%s1 + $0x34] sm:$0xf]
        %v1028 = vld [vmem:[%s1 + $0x38] sm:$0xf]
        %v1029 = vld [vmem:[%s1 + $0x3c] sm:$0xf]
        %v1030 = vld [vmem:[%s1 + $0x40] sm:$0xf]
        %v1031 = vld [vmem:[%s1 + $0x44] sm:$0xf]
        %v1032 = vld [vmem:[%s1 + $0x48] sm:$0xf]
        %v1033 = vld [vmem:[%s1 + $0x4c] sm:$0xf]
        %v1034 = vld [vmem:[%s1 + $0x50] sm:$0xf]
        %v1035 = vld [vmem:[%s1 + $0x54] sm:$0xf]
        %v1036 = vld [vmem:[%s1 + $0x58] sm:$0xf]
        %v1037 = vld [vmem:[%s1 + $0x5c] sm:$0xf]
        %v1038 = vld [vmem:[%s1 + $0x60] sm:$0xf]
        %v1039 = vld [vmem:[%s1 + $0x64] sm:$0xf]
        %v1040 = vld [vmem:[%s1 + $0x68] sm:$0xf]
        %v1041 = vld [vmem:[%s1 + $0x6c] sm:$0xf]
        %v1042 = vld [vmem:[%s1 + $0x70] sm:$0xf]
        %v1043 = vld [vmem:[%s1 + $0x74] sm:$0xf]
        %v1044 = vld [vmem:[%s1 + $0x78] sm:$0xf]
        %v1045 = vld [vmem:[%s1 + $0x7c] sm:$0xf]
        %v1046 = vld [vmem:[%s1 + $0x80] sm:$0xf]
        %v1047 = vld [vmem:[%s1 + $0x84] sm:$0xf]
        %v1048 = vld [vmem:[%s1 + $0x88] sm:$0xf]
        %v1049 = vld [vmem:[%s1 + $0x8c] sm:$0xf]
        %v1050 = vld [vmem:[%s1 + $0x90] sm:$0xf]
        %v1051 = vld [vmem:[%s1 + $0x94] sm:$0xf]
        %v1052 = vld [vmem:[%s1 + $0x98] sm:$0xf]
        %v1053 = vld [vmem:[%s1 + $0x9c] sm:$0xf]
        %v1054 = vld [vmem:[%s1 + $0xa0] sm:$0xf]
        %v1055 = vld [vmem:[%s1 + $0xa4] sm:$0xf]
        %v1056 = vld [vmem:[%s1 + $0xa8] sm:$0xf]
        %v1057 = vld [vmem:[%s1 + $0xac] sm:$0xf]
        %v1058 = vld [vmem:[%s1 + $0xb0] sm:$0xf]
        %v1059 = vld [vmem:[%s1 + $0xb4] sm:$0xf]
        %v1060 = vld [vmem:[%s1 + $0xb8] sm:$0xf]
        %v1061 = vld [vmem:[%s1 + $0xbc] sm:$0xf]
        %v1062 = vunpack.c.l.b16 %v605
        %v1063 = vunpack.c.l.b16 %v692
        %v1064 = vunpack.c.l.b16 %v902
        %v1065 = vunpack.c.l.b16 %v613
        %v1066 = vunpack.c.l.b16 %v748
        %v1067 = vunpack.c.l.b16 %v910
        %v1068 = vunpack.c.l.b16 %v621
        %v1069 = vunpack.c.l.b16 %v804
        %v1070 = vunpack.c.l.b16 %v918
        %v1071 = vunpack.c.l.b16 %v629
        %v1072 = vunpack.c.l.b16 %v860
        %v1073 = vunpack.c.l.b16 %v926
        %s1074 = scalar_lea.vmem %s1, 192
        %v1075 = vld [vmem:[%s1074] sm:$0xf]
        %v1076 = vld [vmem:[%s1074 + $0x4] sm:$0xf]
        %v1077 = vld [vmem:[%s1074 + $0x8] sm:$0xf]
        %v1078 = vld [vmem:[%s1074 + $0xc] sm:$0xf]
        %v1079 = vld [vmem:[%s1074 + $0x10] sm:$0xf]
        %v1080 = vld [vmem:[%s1074 + $0x14] sm:$0xf]
        %v1081 = vld [vmem:[%s1074 + $0x18] sm:$0xf]
        %v1082 = vld [vmem:[%s1074 + $0x1c] sm:$0xf]
        %v1083 = vld [vmem:[%s1074 + $0x20] sm:$0xf]
        %v1084 = vld [vmem:[%s1074 + $0x24] sm:$0xf]
        %v1085 = vld [vmem:[%s1074 + $0x28] sm:$0xf]
        %v1086 = vld [vmem:[%s1074 + $0x2c] sm:$0xf]
        %v1087 = vld [vmem:[%s1074 + $0x30] sm:$0xf]
        %v1088 = vld [vmem:[%s1074 + $0x34] sm:$0xf]
        %v1089 = vld [vmem:[%s1074 + $0x38] sm:$0xf]
        %v1090 = vld [vmem:[%s1074 + $0x3c] sm:$0xf]
        %v1091 = vld [vmem:[%s1074 + $0x40] sm:$0xf]
        %v1092 = vld [vmem:[%s1074 + $0x44] sm:$0xf]
        %v1093 = vld [vmem:[%s1074 + $0x48] sm:$0xf]
        %v1094 = vld [vmem:[%s1074 + $0x4c] sm:$0xf]
        %v1095 = vld [vmem:[%s1074 + $0x50] sm:$0xf]
        %v1096 = vld [vmem:[%s1074 + $0x54] sm:$0xf]
        %v1097 = vld [vmem:[%s1074 + $0x58] sm:$0xf]
        %v1098 = vld [vmem:[%s1074 + $0x5c] sm:$0xf]
        %v1099 = vld [vmem:[%s1074 + $0x60] sm:$0xf]
        %v1100 = vld [vmem:[%s1074 + $0x64] sm:$0xf]
        %v1101 = vld [vmem:[%s1074 + $0x68] sm:$0xf]
        %v1102 = vld [vmem:[%s1074 + $0x6c] sm:$0xf]
        %v1103 = vld [vmem:[%s1074 + $0x70] sm:$0xf]
        %v1104 = vld [vmem:[%s1074 + $0x74] sm:$0xf]
        %v1105 = vld [vmem:[%s1074 + $0x78] sm:$0xf]
        %v1106 = vld [vmem:[%s1074 + $0x7c] sm:$0xf]
        %v1107 = vld [vmem:[%s1074 + $0x80] sm:$0xf]
        %v1108 = vld [vmem:[%s1074 + $0x84] sm:$0xf]
        %v1109 = vld [vmem:[%s1074 + $0x88] sm:$0xf]
        %v1110 = vld [vmem:[%s1074 + $0x8c] sm:$0xf]
        %v1111 = vld [vmem:[%s1074 + $0x90] sm:$0xf]
        %v1112 = vld [vmem:[%s1074 + $0x94] sm:$0xf]
        %v1113 = vld [vmem:[%s1074 + $0x98] sm:$0xf]
        %v1114 = vld [vmem:[%s1074 + $0x9c] sm:$0xf]
        %v1115 = vld [vmem:[%s1074 + $0xa0] sm:$0xf]
        %v1116 = vld [vmem:[%s1074 + $0xa4] sm:$0xf]
        %v1117 = vld [vmem:[%s1074 + $0xa8] sm:$0xf]
        %v1118 = vld [vmem:[%s1074 + $0xac] sm:$0xf]
        %v1119 = vld [vmem:[%s1074 + $0xb0] sm:$0xf]
        %v1120 = vld [vmem:[%s1074 + $0xb4] sm:$0xf]
        %v1121 = vld [vmem:[%s1074 + $0xb8] sm:$0xf]
        %v1122 = vld [vmem:[%s1074 + $0xbc] sm:$0xf]
        %v1123 = vpack.c.b16 %v933, %v930
        %v1124 = vpack.c.b16 %v934, %v931
        %v1125 = vpack.c.b16 %v935, %v932
        %v1126 = vpack.c.b16 %v939, %v936
        %v1127 = vpack.c.b16 %v940, %v937
        %v1128 = vpack.c.b16 %v941, %v938
        %v1129 = vpack.c.b16 %v945, %v942
        %v1130 = vpack.c.b16 %v946, %v943
        %v1131 = vpack.c.b16 %v947, %v944
        %v1132 = vpack.c.b16 %v1062, %v948
        %v1133 = vpack.c.b16 %v1063, %v949
        %v1134 = vpack.c.b16 %v1064, %v950
        %v1135 = vpack.c.b16 %v954, %v951
        %v1136 = vpack.c.b16 %v955, %v952
        %v1137 = vpack.c.b16 %v956, %v953
        %v1138 = vpack.c.b16 %v960, %v957
        %v1139 = vpack.c.b16 %v961, %v958
        %v1140 = vpack.c.b16 %v962, %v959
        %v1141 = vpack.c.b16 %v966, %v963
        %v1142 = vpack.c.b16 %v967, %v964
        %v1143 = vpack.c.b16 %v968, %v965
        %v1144 = vpack.c.b16 %v1065, %v969
        %v1145 = vpack.c.b16 %v1066, %v970
        %v1146 = vpack.c.b16 %v1067, %v971
        %v1147 = vpack.c.b16 %v975, %v972
        %v1148 = vpack.c.b16 %v976, %v973
        %v1149 = vpack.c.b16 %v977, %v974
        %v1150 = vpack.c.b16 %v981, %v978
        %v1151 = vpack.c.b16 %v982, %v979
        %v1152 = vpack.c.b16 %v983, %v980
        %v1153 = vpack.c.b16 %v987, %v984
        %v1154 = vpack.c.b16 %v988, %v985
        %v1155 = vpack.c.b16 %v989, %v986
        %v1156 = vpack.c.b16 %v1068, %v990
        %v1157 = vpack.c.b16 %v1069, %v991
        %v1158 = vpack.c.b16 %v1070, %v992
        %v1159 = vpack.c.b16 %v996, %v993
        %v1160 = vpack.c.b16 %v997, %v994
        %v1161 = vpack.c.b16 %v998, %v995
        %v1162 = vpack.c.b16 %v1002, %v999
        %v1163 = vpack.c.b16 %v1003, %v1000
        %v1164 = vpack.c.b16 %v1004, %v1001
        %v1165 = vpack.c.b16 %v1008, %v1005
        %v1166 = vpack.c.b16 %v1009, %v1006
        %v1167 = vpack.c.b16 %v1010, %v1007
        %v1168 = vpack.c.b16 %v1071, %v1011
        %v1169 = vpack.c.b16 %v1072, %v1012
        %v1170 = vpack.c.b16 %v1073, %v1013
        %v1267 = vunpack.c.l.b16 %v1075
        %v1268 = vunpack.c.l.b16 %v1076
        %v1269 = vunpack.c.l.b16 %v1077
        %v1270 = vunpack.c.l.b16 %v1078
        %v1271 = vunpack.c.l.b16 %v1079
        %v1272 = vunpack.c.l.b16 %v1080
        %v1273 = vunpack.c.l.b16 %v1081
        %v1274 = vunpack.c.l.b16 %v1082
        %v1275 = vunpack.c.l.b16 %v1083
        %v1276 = vunpack.c.l.b16 %v1084
        %v1277 = vunpack.c.l.b16 %v1085
        %v1278 = vunpack.c.l.b16 %v1086
        %v1279 = vunpack.c.l.b16 %v1087
        %v1280 = vunpack.c.l.b16 %v1088
        %v1281 = vunpack.c.l.b16 %v1089
        %v1282 = vunpack.c.l.b16 %v1090
        %v1283 = vunpack.c.l.b16 %v1091
        %v1284 = vunpack.c.l.b16 %v1092
        %v1285 = vunpack.c.l.b16 %v1093
        %v1286 = vunpack.c.l.b16 %v1094
        %v1287 = vunpack.c.l.b16 %v1095
        %v1288 = vunpack.c.l.b16 %v1096
        %v1289 = vunpack.c.l.b16 %v1097
        %v1290 = vunpack.c.l.b16 %v1098
        %v1291 = vunpack.c.l.b16 %v1099
        %v1292 = vunpack.c.l.b16 %v1100
        %v1293 = vunpack.c.l.b16 %v1101
        %v1294 = vunpack.c.l.b16 %v1102
        %v1295 = vunpack.c.l.b16 %v1103
        %v1296 = vunpack.c.l.b16 %v1104
        %v1297 = vunpack.c.l.b16 %v1105
        %v1298 = vunpack.c.l.b16 %v1106
        %v1299 = vunpack.c.l.b16 %v1107
        %v1300 = vunpack.c.l.b16 %v1108
        %v1301 = vunpack.c.l.b16 %v1109
        %v1302 = vunpack.c.l.b16 %v1110
        %v1303 = vunpack.c.l.b16 %v1111
        %v1304 = vunpack.c.l.b16 %v1112
        %v1305 = vunpack.c.l.b16 %v1113
        %v1306 = vunpack.c.l.b16 %v1114
        %v1307 = vunpack.c.l.b16 %v1115
        %v1308 = vunpack.c.l.b16 %v1116
        %v1309 = vunpack.c.l.b16 %v1117
        %v1310 = vunpack.c.l.b16 %v1118
        %v1311 = vunpack.c.l.b16 %v1119
        %v1312 = vunpack.c.l.b16 %v1120
        %v1313 = vunpack.c.l.b16 %v1121
        %v1314 = vunpack.c.l.b16 %v1122
        %v1315 = vpack.c.b16 %v1268, %v1267
        %v1316 = vpack.c.b16 %v1270, %v1269
        %v1317 = vpack.c.b16 %v1272, %v1271
        %v1318 = vpack.c.b16 %v1274, %v1273
        %v1319 = vpack.c.b16 %v1276, %v1275
        %v1320 = vpack.c.b16 %v1278, %v1277
        %v1321 = vpack.c.b16 %v1280, %v1279
        %v1322 = vpack.c.b16 %v1282, %v1281
        %v1323 = vpack.c.b16 %v1284, %v1283
        %v1324 = vpack.c.b16 %v1286, %v1285
        %v1325 = vpack.c.b16 %v1288, %v1287
        %v1326 = vpack.c.b16 %v1290, %v1289
        %v1327 = vpack.c.b16 %v1292, %v1291
        %v1328 = vpack.c.b16 %v1294, %v1293
        %v1329 = vpack.c.b16 %v1296, %v1295
        %v1330 = vpack.c.b16 %v1298, %v1297
        %v1331 = vpack.c.b16 %v1300, %v1299
        %v1332 = vpack.c.b16 %v1302, %v1301
        %v1333 = vpack.c.b16 %v1304, %v1303
        %v1334 = vpack.c.b16 %v1306, %v1305
        %v1335 = vpack.c.b16 %v1308, %v1307
        %v1336 = vpack.c.b16 %v1310, %v1309
        %v1337 = vpack.c.b16 %v1312, %v1311
        %v1338 = vpack.c.b16 %v1314, %v1313
        %1363 = vmatprep.subr.bf16.mxu0 0
        %1364 = vmatpush1.bf16.msra.mxu0 %v1322
        %1365 = vmatprep.subr.bf16.mxu0 0
        %1366 = vmatpush1.bf16.msra.mxu0 %v1321
        %1367 = vmatprep.subr.bf16.mxu0 0
        %1368 = vmatpush1.bf16.msra.mxu0 %v1320
        %1369 = vmatprep.subr.bf16.mxu0 0
        %1370 = vmatpush1.bf16.msra.mxu0 %v1319
        %1371 = vmatprep.subr.bf16.mxu0 0
        %1372 = vmatpush1.bf16.msra.mxu0 %v1318
        %1373 = vmatprep.subr.bf16.mxu0 0
        %1374 = vmatpush1.bf16.msra.mxu0 %v1317
        %1375 = vmatprep.subr.bf16.mxu0 0
        %1376 = vmatpush1.bf16.msra.mxu0 %v1316
        %1377 = vmatprep.subr.bf16.mxu0 0
        %1378 = vmatpush1.bf16.msra.mxu0 %v1315
        %1379 = vmatprep.subr.bf16.mxu0 0
        %1380 = vmatpush2.bf16.msra.mxu0 %v1330
        %1381 = vmatprep.subr.bf16.mxu0 0
        %1382 = vmatpush2.bf16.msra.mxu0 %v1329
        %1383 = vmatprep.subr.bf16.mxu0 0
        %1384 = vmatpush2.bf16.msra.mxu0 %v1328
        %1385 = vmatprep.subr.bf16.mxu0 0
        %1386 = vmatpush2.bf16.msra.mxu0 %v1327
        %1387 = vmatprep.subr.bf16.mxu0 0
        %1388 = vmatpush2.bf16.msra.mxu0 %v1326
        %1389 = vmatprep.subr.bf16.mxu0 0
        %1390 = vmatpush2.bf16.msra.mxu0 %v1325
        %1391 = vmatprep.subr.bf16.mxu0 0
        %1392 = vmatpush2.bf16.msra.mxu0 %v1324
        %1393 = vmatprep.subr.bf16.mxu0 0
        %1394 = vmatpush2.bf16.msra.mxu0 %v1323
        %1395 = vmatprep.mubr.bf16.mxu0 %v1124
        %1396 = vmatmul.mubr.bf16.gmra.mxu0 %v1123
        %v1397 = vpop.f32.mrf.mxu0
        %v1398 = vadd.f32 0.0, %v1397
        %v1399 = vpop.f32.mrf.mxu0
        %v1400 = vpop.f32.mrf.mxu0
        %v1401 = vadd.f32 0.0, %v1400
        %v1402 = vpop.f32.mrf.mxu0
        %1403 = vmatprep.mubr.bf16.mxu0 %v1127
        %1404 = vmatmul.mubr.bf16.gmra.mxu0 %v1126
        %v1405 = vpop.f32.mrf.mxu0
        %v1406 = vadd.f32 0.0, %v1405
        %v1407 = vpop.f32.mrf.mxu0
        %v1408 = vpop.f32.mrf.mxu0
        %v1409 = vadd.f32 0.0, %v1408
        %v1410 = vpop.f32.mrf.mxu0
        %1411 = vmatprep.mubr.bf16.mxu0 %v1130
        %1412 = vmatmul.mubr.bf16.gmra.mxu0 %v1129
        %v1413 = vpop.f32.mrf.mxu0
        %v1414 = vadd.f32 0.0, %v1413
        %v1415 = vpop.f32.mrf.mxu0
        %v1416 = vpop.f32.mrf.mxu0
        %v1417 = vadd.f32 0.0, %v1416
        %v1418 = vpop.f32.mrf.mxu0
        %1419 = vmatprep.mubr.bf16.mxu0 %v1133
        %1420 = vmatmul.mubr.bf16.gmra.mxu0 %v1132
        %v1421 = vpop.f32.mrf.mxu0
        %v1422 = vadd.f32 0.0, %v1421
        %v1423 = vpop.f32.mrf.mxu0
        %v1424 = vpop.f32.mrf.mxu0
        %v1425 = vadd.f32 0.0, %v1424
        %v1426 = vpop.f32.mrf.mxu0
        %1427 = vmatprep.mubr.bf16.mxu0 %v1136
        %1428 = vmatmul.mubr.bf16.gmra.mxu0 %v1135
        %v1429 = vpop.f32.mrf.mxu0
        %v1430 = vadd.f32 0.0, %v1429
        %v1431 = vpop.f32.mrf.mxu0
        %v1432 = vpop.f32.mrf.mxu0
        %v1433 = vadd.f32 0.0, %v1432
        %v1434 = vpop.f32.mrf.mxu0
        %1435 = vmatprep.mubr.bf16.mxu0 %v1139
        %1436 = vmatmul.mubr.bf16.gmra.mxu0 %v1138
        %v1437 = vpop.f32.mrf.mxu0
        %v1438 = vadd.f32 0.0, %v1437
        %v1439 = vpop.f32.mrf.mxu0
        %v1440 = vpop.f32.mrf.mxu0
        %v1441 = vadd.f32 0.0, %v1440
        %v1442 = vpop.f32.mrf.mxu0
        %1443 = vmatprep.mubr.bf16.mxu0 %v1142
        %1444 = vmatmul.mubr.bf16.gmra.mxu0 %v1141
        %v1445 = vpop.f32.mrf.mxu0
        %v1446 = vadd.f32 0.0, %v1445
        %v1447 = vpop.f32.mrf.mxu0
        %v1448 = vpop.f32.mrf.mxu0
        %v1449 = vadd.f32 0.0, %v1448
        %v1450 = vpop.f32.mrf.mxu0
        %1451 = vmatprep.mubr.bf16.mxu0 %v1145
        %1452 = vmatmul.mubr.bf16.gmra.mxu0 %v1144
        %v1453 = vpop.f32.mrf.mxu0
        %v1454 = vadd.f32 0.0, %v1453
        %v1455 = vpop.f32.mrf.mxu0
        %v1456 = vpop.f32.mrf.mxu0
        %v1457 = vadd.f32 0.0, %v1456
        %v1458 = vpop.f32.mrf.mxu0
        %1459 = vmatprep.mubr.bf16.mxu0 %v1148
        %1460 = vmatmul.mubr.bf16.gmra.mxu0 %v1147
        %v1461 = vpop.f32.mrf.mxu0
        %v1462 = vadd.f32 0.0, %v1461
        %v1463 = vpop.f32.mrf.mxu0
        %v1464 = vpop.f32.mrf.mxu0
        %v1465 = vadd.f32 0.0, %v1464
        %v1466 = vpop.f32.mrf.mxu0
        %1467 = vmatprep.mubr.bf16.mxu0 %v1151
        %1468 = vmatmul.mubr.bf16.gmra.mxu0 %v1150
        %v1469 = vpop.f32.mrf.mxu0
        %v1470 = vadd.f32 0.0, %v1469
        %v1471 = vpop.f32.mrf.mxu0
        %v1472 = vpop.f32.mrf.mxu0
        %v1473 = vadd.f32 0.0, %v1472
        %v1474 = vpop.f32.mrf.mxu0
        %1475 = vmatprep.mubr.bf16.mxu0 %v1154
        %1476 = vmatmul.mubr.bf16.gmra.mxu0 %v1153
        %v1477 = vpop.f32.mrf.mxu0
        %v1478 = vadd.f32 0.0, %v1477
        %v1479 = vpop.f32.mrf.mxu0
        %v1480 = vpop.f32.mrf.mxu0
        %v1481 = vadd.f32 0.0, %v1480
        %v1482 = vpop.f32.mrf.mxu0
        %1483 = vmatprep.mubr.bf16.mxu0 %v1157
        %1484 = vmatmul.mubr.bf16.gmra.mxu0 %v1156
        %v1485 = vpop.f32.mrf.mxu0
        %v1486 = vadd.f32 0.0, %v1485
        %v1487 = vpop.f32.mrf.mxu0
        %v1488 = vpop.f32.mrf.mxu0
        %v1489 = vadd.f32 0.0, %v1488
        %v1490 = vpop.f32.mrf.mxu0
        %1491 = vmatprep.mubr.bf16.mxu0 %v1160
        %1492 = vmatmul.mubr.bf16.gmra.mxu0 %v1159
        %v1493 = vpop.f32.mrf.mxu0
        %v1494 = vadd.f32 0.0, %v1493
        %v1495 = vpop.f32.mrf.mxu0
        %v1496 = vpop.f32.mrf.mxu0
        %v1497 = vadd.f32 0.0, %v1496
        %v1498 = vpop.f32.mrf.mxu0
        %1499 = vmatprep.mubr.bf16.mxu0 %v1163
        %1500 = vmatmul.mubr.bf16.gmra.mxu0 %v1162
        %v1501 = vpop.f32.mrf.mxu0
        %v1502 = vadd.f32 0.0, %v1501
        %v1503 = vpop.f32.mrf.mxu0
        %v1504 = vpop.f32.mrf.mxu0
        %v1505 = vadd.f32 0.0, %v1504
        %v1506 = vpop.f32.mrf.mxu0
        %1507 = vmatprep.mubr.bf16.mxu0 %v1166
        %1508 = vmatmul.mubr.bf16.gmra.mxu0 %v1165
        %v1509 = vpop.f32.mrf.mxu0
        %v1510 = vadd.f32 0.0, %v1509
        %v1511 = vpop.f32.mrf.mxu0
        %v1512 = vpop.f32.mrf.mxu0
        %v1513 = vadd.f32 0.0, %v1512
        %v1514 = vpop.f32.mrf.mxu0
        %1515 = vmatprep.mubr.bf16.mxu0 %v1169
        %1516 = vmatmul.mubr.bf16.gmra.mxu0 %v1168
        %v1517 = vpop.f32.mrf.mxu0
        %v1518 = vadd.f32 0.0, %v1517
        %v1519 = vpop.f32.mrf.mxu0
        %v1520 = vpop.f32.mrf.mxu0
        %v1521 = vadd.f32 0.0, %v1520
        %v1522 = vpop.f32.mrf.mxu0
        %1523 = vdwg.mxu0
        %1524 = vmatprep.subr.bf16.mxu0 0
        %1525 = vmatpush1.bf16.msra.mxu0 %v1338
        %1526 = vmatprep.subr.bf16.mxu0 0
        %1527 = vmatpush1.bf16.msra.mxu0 %v1337
        %1528 = vmatprep.subr.bf16.mxu0 0
        %1529 = vmatpush1.bf16.msra.mxu0 %v1336
        %1530 = vmatprep.subr.bf16.mxu0 0
        %1531 = vmatpush1.bf16.msra.mxu0 %v1335
        %1532 = vmatprep.subr.bf16.mxu0 0
        %1533 = vmatpush1.bf16.msra.mxu0 %v1334
        %1534 = vmatprep.subr.bf16.mxu0 0
        %1535 = vmatpush1.bf16.msra.mxu0 %v1333
        %1536 = vmatprep.subr.bf16.mxu0 0
        %1537 = vmatpush1.bf16.msra.mxu0 %v1332
        %1538 = vmatprep.subr.bf16.mxu0 0
        %1539 = vmatpush1.bf16.msra.mxu0 %v1331
        %1540 = vmatprep.subr.bf16.mxu0 0
        %1541 = vmatpush2.bf16.msra.mxu0 0
        %1542 = vmatprep.subr.bf16.mxu0 0
        %1543 = vmatpush2.bf16.msra.mxu0 0
        %1544 = vmatprep.subr.bf16.mxu0 0
        %1545 = vmatpush2.bf16.msra.mxu0 0
        %1546 = vmatprep.subr.bf16.mxu0 0
        %1547 = vmatpush2.bf16.msra.mxu0 0
        %1548 = vmatprep.subr.bf16.mxu0 0
        %1549 = vmatpush2.bf16.msra.mxu0 0
        %1550 = vmatprep.subr.bf16.mxu0 0
        %1551 = vmatpush2.bf16.msra.mxu0 0
        %1552 = vmatprep.subr.bf16.mxu0 0
        %1553 = vmatpush2.bf16.msra.mxu0 0
        %1554 = vmatprep.subr.bf16.mxu0 0
        %1555 = vmatpush2.bf16.msra.mxu0 0
        %1556 = vmatprep.mubr.bf16.mxu0 0
        %1557 = vmatmul.mubr.bf16.gmra.mxu0 %v1125
        %v1558 = vpop.f32.mrf.mxu0
        %v1559 = vadd.f32 %v1398, %v1558
        %v1560 = vpop.f32.mrf.mxu0
        %v1561 = vpop.f32.mrf.mxu0
        %v1562 = vadd.f32 %v1401, %v1561
        %v1563 = vpop.f32.mrf.mxu0
        %1564 = vmatprep.mubr.bf16.mxu0 0
        %1565 = vmatmul.mubr.bf16.gmra.mxu0 %v1128
        %v1566 = vpop.f32.mrf.mxu0
        %v1567 = vadd.f32 %v1406, %v1566
        %v1568 = vpop.f32.mrf.mxu0
        %v1569 = vpop.f32.mrf.mxu0
        %v1570 = vadd.f32 %v1409, %v1569
        %v1571 = vpop.f32.mrf.mxu0
        %1572 = vmatprep.mubr.bf16.mxu0 0
        %1573 = vmatmul.mubr.bf16.gmra.mxu0 %v1131
        %v1574 = vpop.f32.mrf.mxu0
        %v1575 = vadd.f32 %v1414, %v1574
        %v1576 = vpop.f32.mrf.mxu0
        %v1577 = vpop.f32.mrf.mxu0
        %v1578 = vadd.f32 %v1417, %v1577
        %v1579 = vpop.f32.mrf.mxu0
        %1580 = vmatprep.mubr.bf16.mxu0 0
        %1581 = vmatmul.mubr.bf16.gmra.mxu0 %v1134
        %v1582 = vpop.f32.mrf.mxu0
        %v1583 = vadd.f32 %v1422, %v1582
        %v1584 = vpop.f32.mrf.mxu0
        %v1585 = vpop.f32.mrf.mxu0
        %v1586 = vadd.f32 %v1425, %v1585
        %v1587 = vpop.f32.mrf.mxu0
        %1588 = vmatprep.mubr.bf16.mxu0 0
        %1589 = vmatmul.mubr.bf16.gmra.mxu0 %v1137
        %v1590 = vpop.f32.mrf.mxu0
        %v1591 = vadd.f32 %v1430, %v1590
        %v1592 = vpop.f32.mrf.mxu0
        %v1593 = vpop.f32.mrf.mxu0
        %v1594 = vadd.f32 %v1433, %v1593
        %v1595 = vpop.f32.mrf.mxu0
        %1596 = vmatprep.mubr.bf16.mxu0 0
        %1597 = vmatmul.mubr.bf16.gmra.mxu0 %v1140
        %v1598 = vpop.f32.mrf.mxu0
        %v1599 = vadd.f32 %v1438, %v1598
        %v1600 = vpop.f32.mrf.mxu0
        %v1601 = vpop.f32.mrf.mxu0
        %v1602 = vadd.f32 %v1441, %v1601
        %v1603 = vpop.f32.mrf.mxu0
        %1604 = vmatprep.mubr.bf16.mxu0 0
        %1605 = vmatmul.mubr.bf16.gmra.mxu0 %v1143
        %v1606 = vpop.f32.mrf.mxu0
        %v1607 = vadd.f32 %v1446, %v1606
        %v1608 = vpop.f32.mrf.mxu0
        %v1609 = vpop.f32.mrf.mxu0
        %v1610 = vadd.f32 %v1449, %v1609
        %v1611 = vpop.f32.mrf.mxu0
        %1612 = vmatprep.mubr.bf16.mxu0 0
        %1613 = vmatmul.mubr.bf16.gmra.mxu0 %v1146
        %v1614 = vpop.f32.mrf.mxu0
        %v1615 = vadd.f32 %v1454, %v1614
        %v1616 = vpop.f32.mrf.mxu0
        %v1617 = vpop.f32.mrf.mxu0
        %v1618 = vadd.f32 %v1457, %v1617
        %v1619 = vpop.f32.mrf.mxu0
        %1620 = vmatprep.mubr.bf16.mxu0 0
        %1621 = vmatmul.mubr.bf16.gmra.mxu0 %v1149
        %v1622 = vpop.f32.mrf.mxu0
        %v1623 = vadd.f32 %v1462, %v1622
        %v1624 = vpop.f32.mrf.mxu0
        %v1625 = vpop.f32.mrf.mxu0
        %v1626 = vadd.f32 %v1465, %v1625
        %v1627 = vpop.f32.mrf.mxu0
        %1628 = vmatprep.mubr.bf16.mxu0 0
        %1629 = vmatmul.mubr.bf16.gmra.mxu0 %v1152
        %v1630 = vpop.f32.mrf.mxu0
        %v1631 = vadd.f32 %v1470, %v1630
        %v1632 = vpop.f32.mrf.mxu0
        %v1633 = vpop.f32.mrf.mxu0
        %v1634 = vadd.f32 %v1473, %v1633
        %v1635 = vpop.f32.mrf.mxu0
        %1636 = vmatprep.mubr.bf16.mxu0 0
        %1637 = vmatmul.mubr.bf16.gmra.mxu0 %v1155
        %v1638 = vpop.f32.mrf.mxu0
        %v1639 = vadd.f32 %v1478, %v1638
        %v1640 = vpop.f32.mrf.mxu0
        %v1641 = vpop.f32.mrf.mxu0
        %v1642 = vadd.f32 %v1481, %v1641
        %v1643 = vpop.f32.mrf.mxu0
        %1644 = vmatprep.mubr.bf16.mxu0 0
        %1645 = vmatmul.mubr.bf16.gmra.mxu0 %v1158
        %v1646 = vpop.f32.mrf.mxu0
        %v1647 = vadd.f32 %v1486, %v1646
        %v1648 = vpop.f32.mrf.mxu0
        %v1649 = vpop.f32.mrf.mxu0
        %v1650 = vadd.f32 %v1489, %v1649
        %v1651 = vpop.f32.mrf.mxu0
        %1652 = vmatprep.mubr.bf16.mxu0 0
        %1653 = vmatmul.mubr.bf16.gmra.mxu0 %v1161
        %v1654 = vpop.f32.mrf.mxu0
        %v1655 = vadd.f32 %v1494, %v1654
        %v1656 = vpop.f32.mrf.mxu0
        %v1657 = vpop.f32.mrf.mxu0
        %v1658 = vadd.f32 %v1497, %v1657
        %v1659 = vpop.f32.mrf.mxu0
        %1660 = vmatprep.mubr.bf16.mxu0 0
        %1661 = vmatmul.mubr.bf16.gmra.mxu0 %v1164
        %v1662 = vpop.f32.mrf.mxu0
        %v1663 = vadd.f32 %v1502, %v1662
        %v1664 = vpop.f32.mrf.mxu0
        %v1665 = vpop.f32.mrf.mxu0
        %v1666 = vadd.f32 %v1505, %v1665
        %v1667 = vpop.f32.mrf.mxu0
        %1668 = vmatprep.mubr.bf16.mxu0 0
        %1669 = vmatmul.mubr.bf16.gmra.mxu0 %v1167
        %v1670 = vpop.f32.mrf.mxu0
        %v1671 = vadd.f32 %v1510, %v1670
        %v1672 = vpop.f32.mrf.mxu0
        %v1673 = vpop.f32.mrf.mxu0
        %v1674 = vadd.f32 %v1513, %v1673
        %v1675 = vpop.f32.mrf.mxu0
        %1676 = vmatprep.mubr.bf16.mxu0 0
        %1677 = vmatmul.mubr.bf16.gmra.mxu0 %v1170
        %v1678 = vpop.f32.mrf.mxu0
        %v1679 = vadd.f32 %v1518, %v1678
        %v1680 = vpop.f32.mrf.mxu0
        %v1681 = vpop.f32.mrf.mxu0
        %v1682 = vadd.f32 %v1521, %v1681
        %v1683 = vpop.f32.mrf.mxu0
        %1684 = vdwg.mxu0
        %v1685 = vpack.c.b16 %v930, %v927
        %v1686 = vpack.c.b16 %v931, %v928
        %v1687 = vpack.c.b16 %v932, %v929
        %v1688 = vpack.c.b16 %v936, %v933
        %v1689 = vpack.c.b16 %v937, %v934
        %v1690 = vpack.c.b16 %v938, %v935
        %v1691 = vpack.c.b16 %v942, %v939
        %v1692 = vpack.c.b16 %v943, %v940
        %v1693 = vpack.c.b16 %v944, %v941
        %v1694 = vpack.c.b16 %v948, %v945
        %v1695 = vpack.c.b16 %v949, %v946
        %v1696 = vpack.c.b16 %v950, %v947
        %v1697 = vpack.c.b16 %v951, %v927
        %v1698 = vpack.c.b16 %v952, %v928
        %v1699 = vpack.c.b16 %v953, %v929
        %v1700 = vpack.c.b16 %v957, %v954
        %v1701 = vpack.c.b16 %v958, %v955
        %v1702 = vpack.c.b16 %v959, %v956
        %v1703 = vpack.c.b16 %v963, %v960
        %v1704 = vpack.c.b16 %v964, %v961
        %v1705 = vpack.c.b16 %v965, %v962
        %v1706 = vpack.c.b16 %v969, %v966
        %v1707 = vpack.c.b16 %v970, %v967
        %v1708 = vpack.c.b16 %v971, %v968
        %v1709 = vpack.c.b16 %v972, %v927
        %v1710 = vpack.c.b16 %v973, %v928
        %v1711 = vpack.c.b16 %v974, %v929
        %v1712 = vpack.c.b16 %v978, %v975
        %v1713 = vpack.c.b16 %v979, %v976
        %v1714 = vpack.c.b16 %v980, %v977
        %v1715 = vpack.c.b16 %v984, %v981
        %v1716 = vpack.c.b16 %v985, %v982
        %v1717 = vpack.c.b16 %v986, %v983
        %v1718 = vpack.c.b16 %v990, %v987
        %v1719 = vpack.c.b16 %v991, %v988
        %v1720 = vpack.c.b16 %v992, %v989
        %v1721 = vpack.c.b16 %v993, %v927
        %v1722 = vpack.c.b16 %v994, %v928
        %v1723 = vpack.c.b16 %v995, %v929
        %v1724 = vpack.c.b16 %v999, %v996
        %v1725 = vpack.c.b16 %v1000, %v997
        %v1726 = vpack.c.b16 %v1001, %v998
        %v1727 = vpack.c.b16 %v1005, %v1002
        %v1728 = vpack.c.b16 %v1006, %v1003
        %v1729 = vpack.c.b16 %v1007, %v1004
        %v1730 = vpack.c.b16 %v1011, %v1008
        %v1731 = vpack.c.b16 %v1012, %v1009
        %v1732 = vpack.c.b16 %v1013, %v1010
        %v1829 = vunpack.c.l.b16 %v1014
        %v1830 = vunpack.c.l.b16 %v1015
        %v1831 = vunpack.c.l.b16 %v1016
        %v1832 = vunpack.c.l.b16 %v1017
        %v1833 = vunpack.c.l.b16 %v1018
        %v1834 = vunpack.c.l.b16 %v1019
        %v1835 = vunpack.c.l.b16 %v1020
        %v1836 = vunpack.c.l.b16 %v1021
        %v1837 = vunpack.c.l.b16 %v1022
        %v1838 = vunpack.c.l.b16 %v1023
        %v1839 = vunpack.c.l.b16 %v1024
        %v1840 = vunpack.c.l.b16 %v1025
        %v1841 = vunpack.c.l.b16 %v1026
        %v1842 = vunpack.c.l.b16 %v1027
        %v1843 = vunpack.c.l.b16 %v1028
        %v1844 = vunpack.c.l.b16 %v1029
        %v1845 = vunpack.c.l.b16 %v1030
        %v1846 = vunpack.c.l.b16 %v1031
        %v1847 = vunpack.c.l.b16 %v1032
        %v1848 = vunpack.c.l.b16 %v1033
        %v1849 = vunpack.c.l.b16 %v1034
        %v1850 = vunpack.c.l.b16 %v1035
        %v1851 = vunpack.c.l.b16 %v1036
        %v1852 = vunpack.c.l.b16 %v1037
        %v1853 = vunpack.c.l.b16 %v1038
        %v1854 = vunpack.c.l.b16 %v1039
        %v1855 = vunpack.c.l.b16 %v1040
        %v1856 = vunpack.c.l.b16 %v1041
        %v1857 = vunpack.c.l.b16 %v1042
        %v1858 = vunpack.c.l.b16 %v1043
        %v1859 = vunpack.c.l.b16 %v1044
        %v1860 = vunpack.c.l.b16 %v1045
        %v1861 = vunpack.c.l.b16 %v1046
        %v1862 = vunpack.c.l.b16 %v1047
        %v1863 = vunpack.c.l.b16 %v1048
        %v1864 = vunpack.c.l.b16 %v1049
        %v1865 = vunpack.c.l.b16 %v1050
        %v1866 = vunpack.c.l.b16 %v1051
        %v1867 = vunpack.c.l.b16 %v1052
        %v1868 = vunpack.c.l.b16 %v1053
        %v1869 = vunpack.c.l.b16 %v1054
        %v1870 = vunpack.c.l.b16 %v1055
        %v1871 = vunpack.c.l.b16 %v1056
        %v1872 = vunpack.c.l.b16 %v1057
        %v1873 = vunpack.c.l.b16 %v1058
        %v1874 = vunpack.c.l.b16 %v1059
        %v1875 = vunpack.c.l.b16 %v1060
        %v1876 = vunpack.c.l.b16 %v1061
        %v1877 = vpack.c.b16 %v1830, %v1829
        %v1878 = vpack.c.b16 %v1832, %v1831
        %v1879 = vpack.c.b16 %v1834, %v1833
        %v1880 = vpack.c.b16 %v1836, %v1835
        %v1881 = vpack.c.b16 %v1838, %v1837
        %v1882 = vpack.c.b16 %v1840, %v1839
        %v1883 = vpack.c.b16 %v1842, %v1841
        %v1884 = vpack.c.b16 %v1844, %v1843
        %v1885 = vpack.c.b16 %v1846, %v1845
        %v1886 = vpack.c.b16 %v1848, %v1847
        %v1887 = vpack.c.b16 %v1850, %v1849
        %v1888 = vpack.c.b16 %v1852, %v1851
        %v1889 = vpack.c.b16 %v1854, %v1853
        %v1890 = vpack.c.b16 %v1856, %v1855
        %v1891 = vpack.c.b16 %v1858, %v1857
        %v1892 = vpack.c.b16 %v1860, %v1859
        %v1893 = vpack.c.b16 %v1862, %v1861
        %v1894 = vpack.c.b16 %v1864, %v1863
        %v1895 = vpack.c.b16 %v1866, %v1865
        %v1896 = vpack.c.b16 %v1868, %v1867
        %v1897 = vpack.c.b16 %v1870, %v1869
        %v1898 = vpack.c.b16 %v1872, %v1871
        %v1899 = vpack.c.b16 %v1874, %v1873
        %v1900 = vpack.c.b16 %v1876, %v1875
        %1925 = vmatprep.subr.bf16.mxu0 0
        %1926 = vmatpush1.bf16.msra.mxu0 %v1884
        %1927 = vmatprep.subr.bf16.mxu0 0
        %1928 = vmatpush1.bf16.msra.mxu0 %v1883
        %1929 = vmatprep.subr.bf16.mxu0 0
        %1930 = vmatpush1.bf16.msra.mxu0 %v1882
        %1931 = vmatprep.subr.bf16.mxu0 0
        %1932 = vmatpush1.bf16.msra.mxu0 %v1881
        %1933 = vmatprep.subr.bf16.mxu0 0
        %1934 = vmatpush1.bf16.msra.mxu0 %v1880
        %1935 = vmatprep.subr.bf16.mxu0 0
        %1936 = vmatpush1.bf16.msra.mxu0 %v1879
        %1937 = vmatprep.subr.bf16.mxu0 0
        %1938 = vmatpush1.bf16.msra.mxu0 %v1878
        %1939 = vmatprep.subr.bf16.mxu0 0
        %1940 = vmatpush1.bf16.msra.mxu0 %v1877
        %1941 = vmatprep.subr.bf16.mxu0 0
        %1942 = vmatpush2.bf16.msra.mxu0 %v1892
        %1943 = vmatprep.subr.bf16.mxu0 0
        %1944 = vmatpush2.bf16.msra.mxu0 %v1891
        %1945 = vmatprep.subr.bf16.mxu0 0
        %1946 = vmatpush2.bf16.msra.mxu0 %v1890
        %1947 = vmatprep.subr.bf16.mxu0 0
        %1948 = vmatpush2.bf16.msra.mxu0 %v1889
        %1949 = vmatprep.subr.bf16.mxu0 0
        %1950 = vmatpush2.bf16.msra.mxu0 %v1888
        %1951 = vmatprep.subr.bf16.mxu0 0
        %1952 = vmatpush2.bf16.msra.mxu0 %v1887
        %1953 = vmatprep.subr.bf16.mxu0 0
        %1954 = vmatpush2.bf16.msra.mxu0 %v1886
        %1955 = vmatprep.subr.bf16.mxu0 0
        %1956 = vmatpush2.bf16.msra.mxu0 %v1885
        %1957 = vmatprep.mubr.bf16.mxu0 %v1686
        %1958 = vmatmul.mubr.bf16.gmra.mxu0 %v1685
        %v1959 = vpop.f32.mrf.mxu0
        %v1960 = vadd.f32 %v1559, %v1959
        %v1961 = vpop.f32.mrf.mxu0
        %v1962 = vpop.f32.mrf.mxu0
        %v1963 = vadd.f32 %v1562, %v1962
        %v1964 = vpop.f32.mrf.mxu0
        %1965 = vmatprep.mubr.bf16.mxu0 %v1689
        %1966 = vmatmul.mubr.bf16.gmra.mxu0 %v1688
        %v1967 = vpop.f32.mrf.mxu0
        %v1968 = vadd.f32 %v1567, %v1967
        %v1969 = vpop.f32.mrf.mxu0
        %v1970 = vpop.f32.mrf.mxu0
        %v1971 = vadd.f32 %v1570, %v1970
        %v1972 = vpop.f32.mrf.mxu0
        %1973 = vmatprep.mubr.bf16.mxu0 %v1692
        %1974 = vmatmul.mubr.bf16.gmra.mxu0 %v1691
        %v1975 = vpop.f32.mrf.mxu0
        %v1976 = vadd.f32 %v1575, %v1975
        %v1977 = vpop.f32.mrf.mxu0
        %v1978 = vpop.f32.mrf.mxu0
        %v1979 = vadd.f32 %v1578, %v1978
        %v1980 = vpop.f32.mrf.mxu0
        %1981 = vmatprep.mubr.bf16.mxu0 %v1695
        %1982 = vmatmul.mubr.bf16.gmra.mxu0 %v1694
        %v1983 = vpop.f32.mrf.mxu0
        %v1984 = vadd.f32 %v1583, %v1983
        %v1985 = vpop.f32.mrf.mxu0
        %v1986 = vpop.f32.mrf.mxu0
        %v1987 = vadd.f32 %v1586, %v1986
        %v1988 = vpop.f32.mrf.mxu0
        %1989 = vmatprep.mubr.bf16.mxu0 %v1698
        %1990 = vmatmul.mubr.bf16.gmra.mxu0 %v1697
        %v1991 = vpop.f32.mrf.mxu0
        %v1992 = vadd.f32 %v1591, %v1991
        %v1993 = vpop.f32.mrf.mxu0
        %v1994 = vpop.f32.mrf.mxu0
        %v1995 = vadd.f32 %v1594, %v1994
        %v1996 = vpop.f32.mrf.mxu0
        %1997 = vmatprep.mubr.bf16.mxu0 %v1701
        %1998 = vmatmul.mubr.bf16.gmra.mxu0 %v1700
        %v1999 = vpop.f32.mrf.mxu0
        %v2000 = vadd.f32 %v1599, %v1999
        %v2001 = vpop.f32.mrf.mxu0
        %v2002 = vpop.f32.mrf.mxu0
        %v2003 = vadd.f32 %v1602, %v2002
        %v2004 = vpop.f32.mrf.mxu0
        %2005 = vmatprep.mubr.bf16.mxu0 %v1704
        %2006 = vmatmul.mubr.bf16.gmra.mxu0 %v1703
        %v2007 = vpop.f32.mrf.mxu0
        %v2008 = vadd.f32 %v1607, %v2007
        %v2009 = vpop.f32.mrf.mxu0
        %v2010 = vpop.f32.mrf.mxu0
        %v2011 = vadd.f32 %v1610, %v2010
        %v2012 = vpop.f32.mrf.mxu0
        %2013 = vmatprep.mubr.bf16.mxu0 %v1707
        %2014 = vmatmul.mubr.bf16.gmra.mxu0 %v1706
        %v2015 = vpop.f32.mrf.mxu0
        %v2016 = vadd.f32 %v1615, %v2015
        %v2017 = vpop.f32.mrf.mxu0
        %v2018 = vpop.f32.mrf.mxu0
        %v2019 = vadd.f32 %v1618, %v2018
        %v2020 = vpop.f32.mrf.mxu0
        %2021 = vmatprep.mubr.bf16.mxu0 %v1710
        %2022 = vmatmul.mubr.bf16.gmra.mxu0 %v1709
        %v2023 = vpop.f32.mrf.mxu0
        %v2024 = vadd.f32 %v1623, %v2023
        %v2025 = vpop.f32.mrf.mxu0
        %v2026 = vpop.f32.mrf.mxu0
        %v2027 = vadd.f32 %v1626, %v2026
        %v2028 = vpop.f32.mrf.mxu0
        %2029 = vmatprep.mubr.bf16.mxu0 %v1713
        %2030 = vmatmul.mubr.bf16.gmra.mxu0 %v1712
        %v2031 = vpop.f32.mrf.mxu0
        %v2032 = vadd.f32 %v1631, %v2031
        %v2033 = vpop.f32.mrf.mxu0
        %v2034 = vpop.f32.mrf.mxu0
        %v2035 = vadd.f32 %v1634, %v2034
        %v2036 = vpop.f32.mrf.mxu0
        %2037 = vmatprep.mubr.bf16.mxu0 %v1716
        %2038 = vmatmul.mubr.bf16.gmra.mxu0 %v1715
        %v2039 = vpop.f32.mrf.mxu0
        %v2040 = vadd.f32 %v1639, %v2039
        %v2041 = vpop.f32.mrf.mxu0
        %v2042 = vpop.f32.mrf.mxu0
        %v2043 = vadd.f32 %v1642, %v2042
        %v2044 = vpop.f32.mrf.mxu0
        %2045 = vmatprep.mubr.bf16.mxu0 %v1719
        %2046 = vmatmul.mubr.bf16.gmra.mxu0 %v1718
        %v2047 = vpop.f32.mrf.mxu0
        %v2048 = vadd.f32 %v1647, %v2047
        %v2049 = vpop.f32.mrf.mxu0
        %v2050 = vpop.f32.mrf.mxu0
        %v2051 = vadd.f32 %v1650, %v2050
        %v2052 = vpop.f32.mrf.mxu0
        %2053 = vmatprep.mubr.bf16.mxu0 %v1722
        %2054 = vmatmul.mubr.bf16.gmra.mxu0 %v1721
        %v2055 = vpop.f32.mrf.mxu0
        %v2056 = vadd.f32 %v1655, %v2055
        %v2057 = vpop.f32.mrf.mxu0
        %v2058 = vpop.f32.mrf.mxu0
        %v2059 = vadd.f32 %v1658, %v2058
        %v2060 = vpop.f32.mrf.mxu0
        %2061 = vmatprep.mubr.bf16.mxu0 %v1725
        %2062 = vmatmul.mubr.bf16.gmra.mxu0 %v1724
        %v2063 = vpop.f32.mrf.mxu0
        %v2064 = vadd.f32 %v1663, %v2063
        %v2065 = vpop.f32.mrf.mxu0
        %v2066 = vpop.f32.mrf.mxu0
        %v2067 = vadd.f32 %v1666, %v2066
        %v2068 = vpop.f32.mrf.mxu0
        %2069 = vmatprep.mubr.bf16.mxu0 %v1728
        %2070 = vmatmul.mubr.bf16.gmra.mxu0 %v1727
        %v2071 = vpop.f32.mrf.mxu0
        %v2072 = vadd.f32 %v1671, %v2071
        %v2073 = vpop.f32.mrf.mxu0
        %v2074 = vpop.f32.mrf.mxu0
        %v2075 = vadd.f32 %v1674, %v2074
        %v2076 = vpop.f32.mrf.mxu0
        %2077 = vmatprep.mubr.bf16.mxu0 %v1731
        %2078 = vmatmul.mubr.bf16.gmra.mxu0 %v1730
        %v2079 = vpop.f32.mrf.mxu0
        %v2080 = vadd.f32 %v1679, %v2079
        %v2081 = vpop.f32.mrf.mxu0
        %v2082 = vpop.f32.mrf.mxu0
        %v2083 = vadd.f32 %v1682, %v2082
        %v2084 = vpop.f32.mrf.mxu0
        %2085 = vdwg.mxu0
        %2086 = vmatprep.subr.bf16.mxu0 0
        %2087 = vmatpush1.bf16.msra.mxu0 %v1900
        %2088 = vmatprep.subr.bf16.mxu0 0
        %2089 = vmatpush1.bf16.msra.mxu0 %v1899
        %2090 = vmatprep.subr.bf16.mxu0 0
        %2091 = vmatpush1.bf16.msra.mxu0 %v1898
        %2092 = vmatprep.subr.bf16.mxu0 0
        %2093 = vmatpush1.bf16.msra.mxu0 %v1897
        %2094 = vmatprep.subr.bf16.mxu0 0
        %2095 = vmatpush1.bf16.msra.mxu0 %v1896
        %2096 = vmatprep.subr.bf16.mxu0 0
        %2097 = vmatpush1.bf16.msra.mxu0 %v1895
        %2098 = vmatprep.subr.bf16.mxu0 0
        %2099 = vmatpush1.bf16.msra.mxu0 %v1894
        %2100 = vmatprep.subr.bf16.mxu0 0
        %2101 = vmatpush1.bf16.msra.mxu0 %v1893
        %2102 = vmatprep.subr.bf16.mxu0 0
        %2103 = vmatpush2.bf16.msra.mxu0 0
        %2104 = vmatprep.subr.bf16.mxu0 0
        %2105 = vmatpush2.bf16.msra.mxu0 0
        %2106 = vmatprep.subr.bf16.mxu0 0
        %2107 = vmatpush2.bf16.msra.mxu0 0
        %2108 = vmatprep.subr.bf16.mxu0 0
        %2109 = vmatpush2.bf16.msra.mxu0 0
        %2110 = vmatprep.subr.bf16.mxu0 0
        %2111 = vmatpush2.bf16.msra.mxu0 0
        %2112 = vmatprep.subr.bf16.mxu0 0
        %2113 = vmatpush2.bf16.msra.mxu0 0
        %2114 = vmatprep.subr.bf16.mxu0 0
        %2115 = vmatpush2.bf16.msra.mxu0 0
        %2116 = vmatprep.subr.bf16.mxu0 0
        %2117 = vmatpush2.bf16.msra.mxu0 0
        %2118 = vmatprep.mubr.bf16.mxu0 0
        %2119 = vmatmul.mubr.bf16.gmra.mxu0 %v1687
        %v2120 = vpop.f32.mrf.mxu0
        %v2121 = vadd.f32 %v1960, %v2120
        %v2122 = vpop.f32.mrf.mxu0
        %v2123 = vpop.f32.mrf.mxu0
        %v2124 = vadd.f32 %v1963, %v2123
        %v2125 = vpop.f32.mrf.mxu0
        %2126 = vmatprep.mubr.bf16.mxu0 0
        %2127 = vmatmul.mubr.bf16.gmra.mxu0 %v1690
        %v2128 = vpop.f32.mrf.mxu0
        %v2129 = vadd.f32 %v1968, %v2128
        %v2130 = vpop.f32.mrf.mxu0
        %v2131 = vpop.f32.mrf.mxu0
        %v2132 = vadd.f32 %v1971, %v2131
        %v2133 = vpop.f32.mrf.mxu0
        %2134 = vmatprep.mubr.bf16.mxu0 0
        %2135 = vmatmul.mubr.bf16.gmra.mxu0 %v1693
        %v2136 = vpop.f32.mrf.mxu0
        %v2137 = vadd.f32 %v1976, %v2136
        %v2138 = vpop.f32.mrf.mxu0
        %v2139 = vpop.f32.mrf.mxu0
        %v2140 = vadd.f32 %v1979, %v2139
        %v2141 = vpop.f32.mrf.mxu0
        %2142 = vmatprep.mubr.bf16.mxu0 0
        %2143 = vmatmul.mubr.bf16.gmra.mxu0 %v1696
        %v2144 = vpop.f32.mrf.mxu0
        %v2145 = vadd.f32 %v1984, %v2144
        %v2146 = vpop.f32.mrf.mxu0
        %v2147 = vpop.f32.mrf.mxu0
        %v2148 = vadd.f32 %v1987, %v2147
        %v2149 = vpop.f32.mrf.mxu0
        %2150 = vmatprep.mubr.bf16.mxu0 0
        %2151 = vmatmul.mubr.bf16.gmra.mxu0 %v1699
        %v2152 = vpop.f32.mrf.mxu0
        %v2153 = vadd.f32 %v1992, %v2152
        %v2154 = vpop.f32.mrf.mxu0
        %v2155 = vpop.f32.mrf.mxu0
        %v2156 = vadd.f32 %v1995, %v2155
        %v2157 = vpop.f32.mrf.mxu0
        %2158 = vmatprep.mubr.bf16.mxu0 0
        %2159 = vmatmul.mubr.bf16.gmra.mxu0 %v1702
        %v2160 = vpop.f32.mrf.mxu0
        %v2161 = vadd.f32 %v2000, %v2160
        %v2162 = vpop.f32.mrf.mxu0
        %v2163 = vpop.f32.mrf.mxu0
        %v2164 = vadd.f32 %v2003, %v2163
        %v2165 = vpop.f32.mrf.mxu0
        %2166 = vmatprep.mubr.bf16.mxu0 0
        %2167 = vmatmul.mubr.bf16.gmra.mxu0 %v1705
        %v2168 = vpop.f32.mrf.mxu0
        %v2169 = vadd.f32 %v2008, %v2168
        %v2170 = vpop.f32.mrf.mxu0
        %v2171 = vpop.f32.mrf.mxu0
        %v2172 = vadd.f32 %v2011, %v2171
        %v2173 = vpop.f32.mrf.mxu0
        %2174 = vmatprep.mubr.bf16.mxu0 0
        %2175 = vmatmul.mubr.bf16.gmra.mxu0 %v1708
        %v2176 = vpop.f32.mrf.mxu0
        %v2177 = vadd.f32 %v2016, %v2176
        %v2178 = vpop.f32.mrf.mxu0
        %v2179 = vpop.f32.mrf.mxu0
        %v2180 = vadd.f32 %v2019, %v2179
        %v2181 = vpop.f32.mrf.mxu0
        %2182 = vmatprep.mubr.bf16.mxu0 0
        %2183 = vmatmul.mubr.bf16.gmra.mxu0 %v1711
        %v2184 = vpop.f32.mrf.mxu0
        %v2185 = vadd.f32 %v2024, %v2184
        %v2186 = vpop.f32.mrf.mxu0
        %v2187 = vpop.f32.mrf.mxu0
        %v2188 = vadd.f32 %v2027, %v2187
        %v2189 = vpop.f32.mrf.mxu0
        %2190 = vmatprep.mubr.bf16.mxu0 0
        %2191 = vmatmul.mubr.bf16.gmra.mxu0 %v1714
        %v2192 = vpop.f32.mrf.mxu0
        %v2193 = vadd.f32 %v2032, %v2192
        %v2194 = vpop.f32.mrf.mxu0
        %v2195 = vpop.f32.mrf.mxu0
        %v2196 = vadd.f32 %v2035, %v2195
        %v2197 = vpop.f32.mrf.mxu0
        %2198 = vmatprep.mubr.bf16.mxu0 0
        %2199 = vmatmul.mubr.bf16.gmra.mxu0 %v1717
        %v2200 = vpop.f32.mrf.mxu0
        %v2201 = vadd.f32 %v2040, %v2200
        %v2202 = vpop.f32.mrf.mxu0
        %v2203 = vpop.f32.mrf.mxu0
        %v2204 = vadd.f32 %v2043, %v2203
        %v2205 = vpop.f32.mrf.mxu0
        %2206 = vmatprep.mubr.bf16.mxu0 0
        %2207 = vmatmul.mubr.bf16.gmra.mxu0 %v1720
        %v2208 = vpop.f32.mrf.mxu0
        %v2209 = vadd.f32 %v2048, %v2208
        %v2210 = vpop.f32.mrf.mxu0
        %v2211 = vpop.f32.mrf.mxu0
        %v2212 = vadd.f32 %v2051, %v2211
        %v2213 = vpop.f32.mrf.mxu0
        %2214 = vmatprep.mubr.bf16.mxu0 0
        %2215 = vmatmul.mubr.bf16.gmra.mxu0 %v1723
        %v2216 = vpop.f32.mrf.mxu0
        %v2217 = vadd.f32 %v2056, %v2216
        %v2218 = vpop.f32.mrf.mxu0
        %v2219 = vpop.f32.mrf.mxu0
        %v2220 = vadd.f32 %v2059, %v2219
        %v2221 = vpop.f32.mrf.mxu0
        %2222 = vmatprep.mubr.bf16.mxu0 0
        %2223 = vmatmul.mubr.bf16.gmra.mxu0 %v1726
        %v2224 = vpop.f32.mrf.mxu0
        %v2225 = vadd.f32 %v2064, %v2224
        %v2226 = vpop.f32.mrf.mxu0
        %v2227 = vpop.f32.mrf.mxu0
        %v2228 = vadd.f32 %v2067, %v2227
        %v2229 = vpop.f32.mrf.mxu0
        %2230 = vmatprep.mubr.bf16.mxu0 0
        %2231 = vmatmul.mubr.bf16.gmra.mxu0 %v1729
        %v2232 = vpop.f32.mrf.mxu0
        %v2233 = vadd.f32 %v2072, %v2232
        %v2234 = vpop.f32.mrf.mxu0
        %v2235 = vpop.f32.mrf.mxu0
        %v2236 = vadd.f32 %v2075, %v2235
        %v2237 = vpop.f32.mrf.mxu0
        %2238 = vmatprep.mubr.bf16.mxu0 0
        %2239 = vmatmul.mubr.bf16.gmra.mxu0 %v1732
        %v2240 = vpop.f32.mrf.mxu0
        %v2241 = vadd.f32 %v2080, %v2240
        %v2242 = vpop.f32.mrf.mxu0
        %v2243 = vpop.f32.mrf.mxu0
        %v2244 = vadd.f32 %v2083, %v2243
        %v2245 = vpop.f32.mrf.mxu0
        %2246 = vdwg.mxu0
        %s2247 = scalar_lea.vmem %s1, 384
        %v2248 = vld [vmem:[%s2247] sm:$0xf]
        %v2249 = vld [vmem:[%s2247 + $0x4] sm:$0xf]
        %v2250 = vld [vmem:[%s2247 + $0x8] sm:$0xf]
        %v2251 = vld [vmem:[%s2247 + $0xc] sm:$0xf]
        %v2252 = vld [vmem:[%s2247 + $0x10] sm:$0xf]
        %v2253 = vld [vmem:[%s2247 + $0x14] sm:$0xf]
        %v2254 = vld [vmem:[%s2247 + $0x18] sm:$0xf]
        %v2255 = vld [vmem:[%s2247 + $0x1c] sm:$0xf]
        %v2256 = vld [vmem:[%s2247 + $0x20] sm:$0xf]
        %v2257 = vld [vmem:[%s2247 + $0x24] sm:$0xf]
        %v2258 = vld [vmem:[%s2247 + $0x28] sm:$0xf]
        %v2259 = vld [vmem:[%s2247 + $0x2c] sm:$0xf]
        %v2260 = vld [vmem:[%s2247 + $0x30] sm:$0xf]
        %v2261 = vld [vmem:[%s2247 + $0x34] sm:$0xf]
        %v2262 = vld [vmem:[%s2247 + $0x38] sm:$0xf]
        %v2263 = vld [vmem:[%s2247 + $0x3c] sm:$0xf]
        %v2264 = vld [vmem:[%s2247 + $0x40] sm:$0xf]
        %v2265 = vld [vmem:[%s2247 + $0x44] sm:$0xf]
        %v2266 = vld [vmem:[%s2247 + $0x48] sm:$0xf]
        %v2267 = vld [vmem:[%s2247 + $0x4c] sm:$0xf]
        %v2268 = vld [vmem:[%s2247 + $0x50] sm:$0xf]
        %v2269 = vld [vmem:[%s2247 + $0x54] sm:$0xf]
        %v2270 = vld [vmem:[%s2247 + $0x58] sm:$0xf]
        %v2271 = vld [vmem:[%s2247 + $0x5c] sm:$0xf]
        %v2272 = vld [vmem:[%s2247 + $0x60] sm:$0xf]
        %v2273 = vld [vmem:[%s2247 + $0x64] sm:$0xf]
        %v2274 = vld [vmem:[%s2247 + $0x68] sm:$0xf]
        %v2275 = vld [vmem:[%s2247 + $0x6c] sm:$0xf]
        %v2276 = vld [vmem:[%s2247 + $0x70] sm:$0xf]
        %v2277 = vld [vmem:[%s2247 + $0x74] sm:$0xf]
        %v2278 = vld [vmem:[%s2247 + $0x78] sm:$0xf]
        %v2279 = vld [vmem:[%s2247 + $0x7c] sm:$0xf]
        %v2280 = vld [vmem:[%s2247 + $0x80] sm:$0xf]
        %v2281 = vld [vmem:[%s2247 + $0x84] sm:$0xf]
        %v2282 = vld [vmem:[%s2247 + $0x88] sm:$0xf]
        %v2283 = vld [vmem:[%s2247 + $0x8c] sm:$0xf]
        %v2284 = vld [vmem:[%s2247 + $0x90] sm:$0xf]
        %v2285 = vld [vmem:[%s2247 + $0x94] sm:$0xf]
        %v2286 = vld [vmem:[%s2247 + $0x98] sm:$0xf]
        %v2287 = vld [vmem:[%s2247 + $0x9c] sm:$0xf]
        %v2288 = vld [vmem:[%s2247 + $0xa0] sm:$0xf]
        %v2289 = vld [vmem:[%s2247 + $0xa4] sm:$0xf]
        %v2290 = vld [vmem:[%s2247 + $0xa8] sm:$0xf]
        %v2291 = vld [vmem:[%s2247 + $0xac] sm:$0xf]
        %v2292 = vld [vmem:[%s2247 + $0xb0] sm:$0xf]
        %v2293 = vld [vmem:[%s2247 + $0xb4] sm:$0xf]
        %v2294 = vld [vmem:[%s2247 + $0xb8] sm:$0xf]
        %v2295 = vld [vmem:[%s2247 + $0xbc] sm:$0xf]
        %v2296 = vpack.c.b16 %v927, %v1062
        %v2297 = vpack.c.b16 %v928, %v1063
        %v2298 = vpack.c.b16 %v929, %v1064
        %v2299 = vpack.c.b16 %v927, %v1065
        %v2300 = vpack.c.b16 %v928, %v1066
        %v2301 = vpack.c.b16 %v929, %v1067
        %v2302 = vpack.c.b16 %v927, %v1068
        %v2303 = vpack.c.b16 %v928, %v1069
        %v2304 = vpack.c.b16 %v929, %v1070
        %v2305 = vpack.c.b16 %v927, %v1071
        %v2306 = vpack.c.b16 %v928, %v1072
        %v2307 = vpack.c.b16 %v929, %v1073
        %v2368 = vunpack.c.l.b16 %v2248
        %v2369 = vunpack.c.l.b16 %v2249
        %v2370 = vunpack.c.l.b16 %v2250
        %v2371 = vunpack.c.l.b16 %v2251
        %v2372 = vunpack.c.l.b16 %v2252
        %v2373 = vunpack.c.l.b16 %v2253
        %v2374 = vunpack.c.l.b16 %v2254
        %v2375 = vunpack.c.l.b16 %v2255
        %v2376 = vunpack.c.l.b16 %v2256
        %v2377 = vunpack.c.l.b16 %v2257
        %v2378 = vunpack.c.l.b16 %v2258
        %v2379 = vunpack.c.l.b16 %v2259
        %v2380 = vunpack.c.l.b16 %v2260
        %v2381 = vunpack.c.l.b16 %v2261
        %v2382 = vunpack.c.l.b16 %v2262
        %v2383 = vunpack.c.l.b16 %v2263
        %v2384 = vunpack.c.l.b16 %v2264
        %v2385 = vunpack.c.l.b16 %v2265
        %v2386 = vunpack.c.l.b16 %v2266
        %v2387 = vunpack.c.l.b16 %v2267
        %v2388 = vunpack.c.l.b16 %v2268
        %v2389 = vunpack.c.l.b16 %v2269
        %v2390 = vunpack.c.l.b16 %v2270
        %v2391 = vunpack.c.l.b16 %v2271
        %v2392 = vunpack.c.l.b16 %v2272
        %v2393 = vunpack.c.l.b16 %v2273
        %v2394 = vunpack.c.l.b16 %v2274
        %v2395 = vunpack.c.l.b16 %v2275
        %v2396 = vunpack.c.l.b16 %v2276
        %v2397 = vunpack.c.l.b16 %v2277
        %v2398 = vunpack.c.l.b16 %v2278
        %v2399 = vunpack.c.l.b16 %v2279
        %v2400 = vunpack.c.l.b16 %v2280
        %v2401 = vunpack.c.l.b16 %v2281
        %v2402 = vunpack.c.l.b16 %v2282
        %v2403 = vunpack.c.l.b16 %v2283
        %v2404 = vunpack.c.l.b16 %v2284
        %v2405 = vunpack.c.l.b16 %v2285
        %v2406 = vunpack.c.l.b16 %v2286
        %v2407 = vunpack.c.l.b16 %v2287
        %v2408 = vunpack.c.l.b16 %v2288
        %v2409 = vunpack.c.l.b16 %v2289
        %v2410 = vunpack.c.l.b16 %v2290
        %v2411 = vunpack.c.l.b16 %v2291
        %v2412 = vunpack.c.l.b16 %v2292
        %v2413 = vunpack.c.l.b16 %v2293
        %v2414 = vunpack.c.l.b16 %v2294
        %v2415 = vunpack.c.l.b16 %v2295
        %v2416 = vpack.c.b16 %v2369, %v2368
        %v2417 = vpack.c.b16 %v2371, %v2370
        %v2418 = vpack.c.b16 %v2373, %v2372
        %v2419 = vpack.c.b16 %v2375, %v2374
        %v2420 = vpack.c.b16 %v2377, %v2376
        %v2421 = vpack.c.b16 %v2379, %v2378
        %v2422 = vpack.c.b16 %v2381, %v2380
        %v2423 = vpack.c.b16 %v2383, %v2382
        %v2424 = vpack.c.b16 %v2385, %v2384
        %v2425 = vpack.c.b16 %v2387, %v2386
        %v2426 = vpack.c.b16 %v2389, %v2388
        %v2427 = vpack.c.b16 %v2391, %v2390
        %v2428 = vpack.c.b16 %v2393, %v2392
        %v2429 = vpack.c.b16 %v2395, %v2394
        %v2430 = vpack.c.b16 %v2397, %v2396
        %v2431 = vpack.c.b16 %v2399, %v2398
        %v2432 = vpack.c.b16 %v2401, %v2400
        %v2433 = vpack.c.b16 %v2403, %v2402
        %v2434 = vpack.c.b16 %v2405, %v2404
        %v2435 = vpack.c.b16 %v2407, %v2406
        %v2436 = vpack.c.b16 %v2409, %v2408
        %v2437 = vpack.c.b16 %v2411, %v2410
        %v2438 = vpack.c.b16 %v2413, %v2412
        %v2439 = vpack.c.b16 %v2415, %v2414
        %2464 = vmatprep.subr.bf16.mxu0 0
        %2465 = vmatpush1.bf16.msra.mxu0 %v2423
        %2466 = vmatprep.subr.bf16.mxu0 0
        %2467 = vmatpush1.bf16.msra.mxu0 %v2422
        %2468 = vmatprep.subr.bf16.mxu0 0
        %2469 = vmatpush1.bf16.msra.mxu0 %v2421
        %2470 = vmatprep.subr.bf16.mxu0 0
        %2471 = vmatpush1.bf16.msra.mxu0 %v2420
        %2472 = vmatprep.subr.bf16.mxu0 0
        %2473 = vmatpush1.bf16.msra.mxu0 %v2419
        %2474 = vmatprep.subr.bf16.mxu0 0
        %2475 = vmatpush1.bf16.msra.mxu0 %v2418
        %2476 = vmatprep.subr.bf16.mxu0 0
        %2477 = vmatpush1.bf16.msra.mxu0 %v2417
        %2478 = vmatprep.subr.bf16.mxu0 0
        %2479 = vmatpush1.bf16.msra.mxu0 %v2416
        %2480 = vmatprep.subr.bf16.mxu0 0
        %2481 = vmatpush2.bf16.msra.mxu0 %v2431
        %2482 = vmatprep.subr.bf16.mxu0 0
        %2483 = vmatpush2.bf16.msra.mxu0 %v2430
        %2484 = vmatprep.subr.bf16.mxu0 0
        %2485 = vmatpush2.bf16.msra.mxu0 %v2429
        %2486 = vmatprep.subr.bf16.mxu0 0
        %2487 = vmatpush2.bf16.msra.mxu0 %v2428
        %2488 = vmatprep.subr.bf16.mxu0 0
        %2489 = vmatpush2.bf16.msra.mxu0 %v2427
        %2490 = vmatprep.subr.bf16.mxu0 0
        %2491 = vmatpush2.bf16.msra.mxu0 %v2426
        %2492 = vmatprep.subr.bf16.mxu0 0
        %2493 = vmatpush2.bf16.msra.mxu0 %v2425
        %2494 = vmatprep.subr.bf16.mxu0 0
        %2495 = vmatpush2.bf16.msra.mxu0 %v2424
        %2496 = vmatprep.mubr.bf16.mxu0 %v1689
        %2497 = vmatmul.mubr.bf16.gmra.mxu0 %v1688
        %v2498 = vpop.f32.mrf.mxu0
        %v2499 = vadd.f32 0.0, %v2498
        %v2500 = vpop.f32.mrf.mxu0
        %v2501 = vpop.f32.mrf.mxu0
        %v2502 = vadd.f32 0.0, %v2501
        %v2503 = vpop.f32.mrf.mxu0
        %2504 = vmatprep.mubr.bf16.mxu0 %v1692
        %2505 = vmatmul.mubr.bf16.gmra.mxu0 %v1691
        %v2506 = vpop.f32.mrf.mxu0
        %v2507 = vadd.f32 0.0, %v2506
        %v2508 = vpop.f32.mrf.mxu0
        %v2509 = vpop.f32.mrf.mxu0
        %v2510 = vadd.f32 0.0, %v2509
        %v2511 = vpop.f32.mrf.mxu0
        %2512 = vmatprep.mubr.bf16.mxu0 %v1695
        %2513 = vmatmul.mubr.bf16.gmra.mxu0 %v1694
        %v2514 = vpop.f32.mrf.mxu0
        %v2515 = vadd.f32 0.0, %v2514
        %v2516 = vpop.f32.mrf.mxu0
        %v2517 = vpop.f32.mrf.mxu0
        %v2518 = vadd.f32 0.0, %v2517
        %v2519 = vpop.f32.mrf.mxu0
        %2520 = vmatprep.mubr.bf16.mxu0 %v2297
        %2521 = vmatmul.mubr.bf16.gmra.mxu0 %v2296
        %v2522 = vpop.f32.mrf.mxu0
        %v2523 = vadd.f32 0.0, %v2522
        %v2524 = vpop.f32.mrf.mxu0
        %v2525 = vpop.f32.mrf.mxu0
        %v2526 = vadd.f32 0.0, %v2525
        %v2527 = vpop.f32.mrf.mxu0
        %2528 = vmatprep.mubr.bf16.mxu0 %v1701
        %2529 = vmatmul.mubr.bf16.gmra.mxu0 %v1700
        %v2530 = vpop.f32.mrf.mxu0
        %v2531 = vadd.f32 0.0, %v2530
        %v2532 = vpop.f32.mrf.mxu0
        %v2533 = vpop.f32.mrf.mxu0
        %v2534 = vadd.f32 0.0, %v2533
        %v2535 = vpop.f32.mrf.mxu0
        %2536 = vmatprep.mubr.bf16.mxu0 %v1704
        %2537 = vmatmul.mubr.bf16.gmra.mxu0 %v1703
        %v2538 = vpop.f32.mrf.mxu0
        %v2539 = vadd.f32 0.0, %v2538
        %v2540 = vpop.f32.mrf.mxu0
        %v2541 = vpop.f32.mrf.mxu0
        %v2542 = vadd.f32 0.0, %v2541
        %v2543 = vpop.f32.mrf.mxu0
        %2544 = vmatprep.mubr.bf16.mxu0 %v1707
        %2545 = vmatmul.mubr.bf16.gmra.mxu0 %v1706
        %v2546 = vpop.f32.mrf.mxu0
        %v2547 = vadd.f32 0.0, %v2546
        %v2548 = vpop.f32.mrf.mxu0
        %v2549 = vpop.f32.mrf.mxu0
        %v2550 = vadd.f32 0.0, %v2549
        %v2551 = vpop.f32.mrf.mxu0
        %2552 = vmatprep.mubr.bf16.mxu0 %v2300
        %2553 = vmatmul.mubr.bf16.gmra.mxu0 %v2299
        %v2554 = vpop.f32.mrf.mxu0
        %v2555 = vadd.f32 0.0, %v2554
        %v2556 = vpop.f32.mrf.mxu0
        %v2557 = vpop.f32.mrf.mxu0
        %v2558 = vadd.f32 0.0, %v2557
        %v2559 = vpop.f32.mrf.mxu0
        %2560 = vmatprep.mubr.bf16.mxu0 %v1713
        %2561 = vmatmul.mubr.bf16.gmra.mxu0 %v1712
        %v2562 = vpop.f32.mrf.mxu0
        %v2563 = vadd.f32 0.0, %v2562
        %v2564 = vpop.f32.mrf.mxu0
        %v2565 = vpop.f32.mrf.mxu0
        %v2566 = vadd.f32 0.0, %v2565
        %v2567 = vpop.f32.mrf.mxu0
        %2568 = vmatprep.mubr.bf16.mxu0 %v1716
        %2569 = vmatmul.mubr.bf16.gmra.mxu0 %v1715
        %v2570 = vpop.f32.mrf.mxu0
        %v2571 = vadd.f32 0.0, %v2570
        %v2572 = vpop.f32.mrf.mxu0
        %v2573 = vpop.f32.mrf.mxu0
        %v2574 = vadd.f32 0.0, %v2573
        %v2575 = vpop.f32.mrf.mxu0
        %2576 = vmatprep.mubr.bf16.mxu0 %v1719
        %2577 = vmatmul.mubr.bf16.gmra.mxu0 %v1718
        %v2578 = vpop.f32.mrf.mxu0
        %v2579 = vadd.f32 0.0, %v2578
        %v2580 = vpop.f32.mrf.mxu0
        %v2581 = vpop.f32.mrf.mxu0
        %v2582 = vadd.f32 0.0, %v2581
        %v2583 = vpop.f32.mrf.mxu0
        %2584 = vmatprep.mubr.bf16.mxu0 %v2303
        %2585 = vmatmul.mubr.bf16.gmra.mxu0 %v2302
        %v2586 = vpop.f32.mrf.mxu0
        %v2587 = vadd.f32 0.0, %v2586
        %v2588 = vpop.f32.mrf.mxu0
        %v2589 = vpop.f32.mrf.mxu0
        %v2590 = vadd.f32 0.0, %v2589
        %v2591 = vpop.f32.mrf.mxu0
        %2592 = vmatprep.mubr.bf16.mxu0 %v1725
        %2593 = vmatmul.mubr.bf16.gmra.mxu0 %v1724
        %v2594 = vpop.f32.mrf.mxu0
        %v2595 = vadd.f32 0.0, %v2594
        %v2596 = vpop.f32.mrf.mxu0
        %v2597 = vpop.f32.mrf.mxu0
        %v2598 = vadd.f32 0.0, %v2597
        %v2599 = vpop.f32.mrf.mxu0
        %2600 = vmatprep.mubr.bf16.mxu0 %v1728
        %2601 = vmatmul.mubr.bf16.gmra.mxu0 %v1727
        %v2602 = vpop.f32.mrf.mxu0
        %v2603 = vadd.f32 0.0, %v2602
        %v2604 = vpop.f32.mrf.mxu0
        %v2605 = vpop.f32.mrf.mxu0
        %v2606 = vadd.f32 0.0, %v2605
        %v2607 = vpop.f32.mrf.mxu0
        %2608 = vmatprep.mubr.bf16.mxu0 %v1731
        %2609 = vmatmul.mubr.bf16.gmra.mxu0 %v1730
        %v2610 = vpop.f32.mrf.mxu0
        %v2611 = vadd.f32 0.0, %v2610
        %v2612 = vpop.f32.mrf.mxu0
        %v2613 = vpop.f32.mrf.mxu0
        %v2614 = vadd.f32 0.0, %v2613
        %v2615 = vpop.f32.mrf.mxu0
        %2616 = vmatprep.mubr.bf16.mxu0 %v2306
        %2617 = vmatmul.mubr.bf16.gmra.mxu0 %v2305
        %v2618 = vpop.f32.mrf.mxu0
        %v2619 = vadd.f32 0.0, %v2618
        %v2620 = vpop.f32.mrf.mxu0
        %v2621 = vpop.f32.mrf.mxu0
        %v2622 = vadd.f32 0.0, %v2621
        %v2623 = vpop.f32.mrf.mxu0
        %2624 = vdwg.mxu0
        %2625 = vmatprep.subr.bf16.mxu0 0
        %2626 = vmatpush1.bf16.msra.mxu0 %v2439
        %2627 = vmatprep.subr.bf16.mxu0 0
        %2628 = vmatpush1.bf16.msra.mxu0 %v2438
        %2629 = vmatprep.subr.bf16.mxu0 0
        %2630 = vmatpush1.bf16.msra.mxu0 %v2437
        %2631 = vmatprep.subr.bf16.mxu0 0
        %2632 = vmatpush1.bf16.msra.mxu0 %v2436
        %2633 = vmatprep.subr.bf16.mxu0 0
        %2634 = vmatpush1.bf16.msra.mxu0 %v2435
        %2635 = vmatprep.subr.bf16.mxu0 0
        %2636 = vmatpush1.bf16.msra.mxu0 %v2434
        %2637 = vmatprep.subr.bf16.mxu0 0
        %2638 = vmatpush1.bf16.msra.mxu0 %v2433
        %2639 = vmatprep.subr.bf16.mxu0 0
        %2640 = vmatpush1.bf16.msra.mxu0 %v2432
        %2641 = vmatprep.subr.bf16.mxu0 0
        %2642 = vmatpush2.bf16.msra.mxu0 0
        %2643 = vmatprep.subr.bf16.mxu0 0
        %2644 = vmatpush2.bf16.msra.mxu0 0
        %2645 = vmatprep.subr.bf16.mxu0 0
        %2646 = vmatpush2.bf16.msra.mxu0 0
        %2647 = vmatprep.subr.bf16.mxu0 0
        %2648 = vmatpush2.bf16.msra.mxu0 0
        %2649 = vmatprep.subr.bf16.mxu0 0
        %2650 = vmatpush2.bf16.msra.mxu0 0
        %2651 = vmatprep.subr.bf16.mxu0 0
        %2652 = vmatpush2.bf16.msra.mxu0 0
        %2653 = vmatprep.subr.bf16.mxu0 0
        %2654 = vmatpush2.bf16.msra.mxu0 0
        %2655 = vmatprep.subr.bf16.mxu0 0
        %2656 = vmatpush2.bf16.msra.mxu0 0
        %2657 = vmatprep.mubr.bf16.mxu0 0
        %2658 = vmatmul.mubr.bf16.gmra.mxu0 %v1690
        %v2659 = vpop.f32.mrf.mxu0
        %v2660 = vadd.f32 %v2499, %v2659
        %v2661 = vpop.f32.mrf.mxu0
        %v2662 = vpop.f32.mrf.mxu0
        %v2663 = vadd.f32 %v2502, %v2662
        %v2664 = vpop.f32.mrf.mxu0
        %2665 = vmatprep.mubr.bf16.mxu0 0
        %2666 = vmatmul.mubr.bf16.gmra.mxu0 %v1693
        %v2667 = vpop.f32.mrf.mxu0
        %v2668 = vadd.f32 %v2507, %v2667
        %v2669 = vpop.f32.mrf.mxu0
        %v2670 = vpop.f32.mrf.mxu0
        %v2671 = vadd.f32 %v2510, %v2670
        %v2672 = vpop.f32.mrf.mxu0
        %2673 = vmatprep.mubr.bf16.mxu0 0
        %2674 = vmatmul.mubr.bf16.gmra.mxu0 %v1696
        %v2675 = vpop.f32.mrf.mxu0
        %v2676 = vadd.f32 %v2515, %v2675
        %v2677 = vpop.f32.mrf.mxu0
        %v2678 = vpop.f32.mrf.mxu0
        %v2679 = vadd.f32 %v2518, %v2678
        %v2680 = vpop.f32.mrf.mxu0
        %2681 = vmatprep.mubr.bf16.mxu0 0
        %2682 = vmatmul.mubr.bf16.gmra.mxu0 %v2298
        %v2683 = vpop.f32.mrf.mxu0
        %v2684 = vadd.f32 %v2523, %v2683
        %v2685 = vpop.f32.mrf.mxu0
        %v2686 = vpop.f32.mrf.mxu0
        %v2687 = vadd.f32 %v2526, %v2686
        %v2688 = vpop.f32.mrf.mxu0
        %2689 = vmatprep.mubr.bf16.mxu0 0
        %2690 = vmatmul.mubr.bf16.gmra.mxu0 %v1702
        %v2691 = vpop.f32.mrf.mxu0
        %v2692 = vadd.f32 %v2531, %v2691
        %v2693 = vpop.f32.mrf.mxu0
        %v2694 = vpop.f32.mrf.mxu0
        %v2695 = vadd.f32 %v2534, %v2694
        %v2696 = vpop.f32.mrf.mxu0
        %2697 = vmatprep.mubr.bf16.mxu0 0
        %2698 = vmatmul.mubr.bf16.gmra.mxu0 %v1705
        %v2699 = vpop.f32.mrf.mxu0
        %v2700 = vadd.f32 %v2539, %v2699
        %v2701 = vpop.f32.mrf.mxu0
        %v2702 = vpop.f32.mrf.mxu0
        %v2703 = vadd.f32 %v2542, %v2702
        %v2704 = vpop.f32.mrf.mxu0
        %2705 = vmatprep.mubr.bf16.mxu0 0
        %2706 = vmatmul.mubr.bf16.gmra.mxu0 %v1708
        %v2707 = vpop.f32.mrf.mxu0
        %v2708 = vadd.f32 %v2547, %v2707
        %v2709 = vpop.f32.mrf.mxu0
        %v2710 = vpop.f32.mrf.mxu0
        %v2711 = vadd.f32 %v2550, %v2710
        %v2712 = vpop.f32.mrf.mxu0
        %2713 = vmatprep.mubr.bf16.mxu0 0
        %2714 = vmatmul.mubr.bf16.gmra.mxu0 %v2301
        %v2715 = vpop.f32.mrf.mxu0
        %v2716 = vadd.f32 %v2555, %v2715
        %v2717 = vpop.f32.mrf.mxu0
        %v2718 = vpop.f32.mrf.mxu0
        %v2719 = vadd.f32 %v2558, %v2718
        %v2720 = vpop.f32.mrf.mxu0
        %2721 = vmatprep.mubr.bf16.mxu0 0
        %2722 = vmatmul.mubr.bf16.gmra.mxu0 %v1714
        %v2723 = vpop.f32.mrf.mxu0
        %v2724 = vadd.f32 %v2563, %v2723
        %v2725 = vpop.f32.mrf.mxu0
        %v2726 = vpop.f32.mrf.mxu0
        %v2727 = vadd.f32 %v2566, %v2726
        %v2728 = vpop.f32.mrf.mxu0
        %2729 = vmatprep.mubr.bf16.mxu0 0
        %2730 = vmatmul.mubr.bf16.gmra.mxu0 %v1717
        %v2731 = vpop.f32.mrf.mxu0
        %v2732 = vadd.f32 %v2571, %v2731
        %v2733 = vpop.f32.mrf.mxu0
        %v2734 = vpop.f32.mrf.mxu0
        %v2735 = vadd.f32 %v2574, %v2734
        %v2736 = vpop.f32.mrf.mxu0
        %2737 = vmatprep.mubr.bf16.mxu0 0
        %2738 = vmatmul.mubr.bf16.gmra.mxu0 %v1720
        %v2739 = vpop.f32.mrf.mxu0
        %v2740 = vadd.f32 %v2579, %v2739
        %v2741 = vpop.f32.mrf.mxu0
        %v2742 = vpop.f32.mrf.mxu0
        %v2743 = vadd.f32 %v2582, %v2742
        %v2744 = vpop.f32.mrf.mxu0
        %2745 = vmatprep.mubr.bf16.mxu0 0
        %2746 = vmatmul.mubr.bf16.gmra.mxu0 %v2304
        %v2747 = vpop.f32.mrf.mxu0
        %v2748 = vadd.f32 %v2587, %v2747
        %v2749 = vpop.f32.mrf.mxu0
        %v2750 = vpop.f32.mrf.mxu0
        %v2751 = vadd.f32 %v2590, %v2750
        %v2752 = vpop.f32.mrf.mxu0
        %2753 = vmatprep.mubr.bf16.mxu0 0
        %2754 = vmatmul.mubr.bf16.gmra.mxu0 %v1726
        %v2755 = vpop.f32.mrf.mxu0
        %v2756 = vadd.f32 %v2595, %v2755
        %v2757 = vpop.f32.mrf.mxu0
        %v2758 = vpop.f32.mrf.mxu0
        %v2759 = vadd.f32 %v2598, %v2758
        %v2760 = vpop.f32.mrf.mxu0
        %2761 = vmatprep.mubr.bf16.mxu0 0
        %2762 = vmatmul.mubr.bf16.gmra.mxu0 %v1729
        %v2763 = vpop.f32.mrf.mxu0
        %v2764 = vadd.f32 %v2603, %v2763
        %v2765 = vpop.f32.mrf.mxu0
        %v2766 = vpop.f32.mrf.mxu0
        %v2767 = vadd.f32 %v2606, %v2766
        %v2768 = vpop.f32.mrf.mxu0
        %2769 = vmatprep.mubr.bf16.mxu0 0
        %2770 = vmatmul.mubr.bf16.gmra.mxu0 %v1732
        %v2771 = vpop.f32.mrf.mxu0
        %v2772 = vadd.f32 %v2611, %v2771
        %v2773 = vpop.f32.mrf.mxu0
        %v2774 = vpop.f32.mrf.mxu0
        %v2775 = vadd.f32 %v2614, %v2774
        %v2776 = vpop.f32.mrf.mxu0
        %2777 = vmatprep.mubr.bf16.mxu0 0
        %2778 = vmatmul.mubr.bf16.gmra.mxu0 %v2307
        %v2779 = vpop.f32.mrf.mxu0
        %v2780 = vadd.f32 %v2619, %v2779
        %v2781 = vpop.f32.mrf.mxu0
        %v2782 = vpop.f32.mrf.mxu0
        %v2783 = vadd.f32 %v2622, %v2782
        %v2784 = vpop.f32.mrf.mxu0
        %2785 = vdwg.mxu0
        %v2786 = vadd.f32 %v2121, %v2660
        %v2787 = vadd.f32 %v2124, %v2663
        %v2788 = vadd.f32 %v2129, %v2668
        %v2789 = vadd.f32 %v2132, %v2671
        %v2790 = vadd.f32 %v2137, %v2676
        %v2791 = vadd.f32 %v2140, %v2679
        %v2792 = vadd.f32 %v2145, %v2684
        %v2793 = vadd.f32 %v2148, %v2687
        %v2794 = vadd.f32 %v2153, %v2692
        %v2795 = vadd.f32 %v2156, %v2695
        %v2796 = vadd.f32 %v2161, %v2700
        %v2797 = vadd.f32 %v2164, %v2703
        %v2798 = vadd.f32 %v2169, %v2708
        %v2799 = vadd.f32 %v2172, %v2711
        %v2800 = vadd.f32 %v2177, %v2716
        %v2801 = vadd.f32 %v2180, %v2719
        %v2802 = vadd.f32 %v2185, %v2724
        %v2803 = vadd.f32 %v2188, %v2727
        %v2804 = vadd.f32 %v2193, %v2732
        %v2805 = vadd.f32 %v2196, %v2735
        %v2806 = vadd.f32 %v2201, %v2740
        %v2807 = vadd.f32 %v2204, %v2743
        %v2808 = vadd.f32 %v2209, %v2748
        %v2809 = vadd.f32 %v2212, %v2751
        %v2810 = vadd.f32 %v2217, %v2756
        %v2811 = vadd.f32 %v2220, %v2759
        %v2812 = vadd.f32 %v2225, %v2764
        %v2813 = vadd.f32 %v2228, %v2767
        %v2814 = vadd.f32 %v2233, %v2772
        %v2815 = vadd.f32 %v2236, %v2775
        %v2816 = vadd.f32 %v2241, %v2780
        %v2817 = vadd.f32 %v2244, %v2783
        %v2818 = vld [vmem:[%s3] sm:$0x1]
        %v2820 = vlaneseq
        %v2821 = vshrl.u32 %v2820, 7
        %v2822 = vsub.s32 0, %v2821
        %v2823 = vrot.slane %v2818, %v2822
        %v2825 = vadd.f32 %v2786, %v2823
        %v2826 = vadd.f32 %v2787, %v2823
        %v2827 = vadd.f32 %v2788, %v2823
        %v2828 = vadd.f32 %v2789, %v2823
        %v2829 = vadd.f32 %v2790, %v2823
        %v2830 = vadd.f32 %v2791, %v2823
        %v2831 = vadd.f32 %v2792, %v2823
        %v2832 = vadd.f32 %v2793, %v2823
        %v2833 = vadd.f32 %v2794, %v2823
        %v2834 = vadd.f32 %v2795, %v2823
        %v2835 = vadd.f32 %v2796, %v2823
        %v2836 = vadd.f32 %v2797, %v2823
        %v2837 = vadd.f32 %v2798, %v2823
        %v2838 = vadd.f32 %v2799, %v2823
        %v2839 = vadd.f32 %v2800, %v2823
        %v2840 = vadd.f32 %v2801, %v2823
        %v2841 = vadd.f32 %v2802, %v2823
        %v2842 = vadd.f32 %v2803, %v2823
        %v2843 = vadd.f32 %v2804, %v2823
        %v2844 = vadd.f32 %v2805, %v2823
        %v2845 = vadd.f32 %v2806, %v2823
        %v2846 = vadd.f32 %v2807, %v2823
        %v2847 = vadd.f32 %v2808, %v2823
        %v2848 = vadd.f32 %v2809, %v2823
        %v2849 = vadd.f32 %v2810, %v2823
        %v2850 = vadd.f32 %v2811, %v2823
        %v2851 = vadd.f32 %v2812, %v2823
        %v2852 = vadd.f32 %v2813, %v2823
        %v2853 = vadd.f32 %v2814, %v2823
        %v2854 = vadd.f32 %v2815, %v2823
        %v2855 = vadd.f32 %v2816, %v2823
        %v2856 = vadd.f32 %v2817, %v2823
        %v2857 = vmax.f32 %v2825, 0.0
        %v2858 = vmax.f32 %v2826, 0.0
        %v2859 = vmax.f32 %v2827, 0.0
        %v2860 = vmax.f32 %v2828, 0.0
        %v2861 = vmax.f32 %v2829, 0.0
        %v2862 = vmax.f32 %v2830, 0.0
        %v2863 = vmax.f32 %v2831, 0.0
        %v2864 = vmax.f32 %v2832, 0.0
        %v2865 = vmax.f32 %v2833, 0.0
        %v2866 = vmax.f32 %v2834, 0.0
        %v2867 = vmax.f32 %v2835, 0.0
        %v2868 = vmax.f32 %v2836, 0.0
        %v2869 = vmax.f32 %v2837, 0.0
        %v2870 = vmax.f32 %v2838, 0.0
        %v2871 = vmax.f32 %v2839, 0.0
        %v2872 = vmax.f32 %v2840, 0.0
        %v2873 = vmax.f32 %v2841, 0.0
        %v2874 = vmax.f32 %v2842, 0.0
        %v2875 = vmax.f32 %v2843, 0.0
        %v2876 = vmax.f32 %v2844, 0.0
        %v2877 = vmax.f32 %v2845, 0.0
        %v2878 = vmax.f32 %v2846, 0.0
        %v2879 = vmax.f32 %v2847, 0.0
        %v2880 = vmax.f32 %v2848, 0.0
        %v2881 = vmax.f32 %v2849, 0.0
        %v2882 = vmax.f32 %v2850, 0.0
        %v2883 = vmax.f32 %v2851, 0.0
        %v2884 = vmax.f32 %v2852, 0.0
        %v2885 = vmax.f32 %v2853, 0.0
        %v2886 = vmax.f32 %v2854, 0.0
        %v2887 = vmax.f32 %v2855, 0.0
        %v2888 = vmax.f32 %v2856, 0.0
        %v2889 = vpack.c.bf16 %v2857, %v2857
        %v2890 = vpack.c.bf16 %v2858, %v2858
        %v2891 = vpack.c.bf16 %v2859, %v2859
        %v2892 = vpack.c.bf16 %v2860, %v2860
        %v2893 = vpack.c.bf16 %v2861, %v2861
        %v2894 = vpack.c.bf16 %v2862, %v2862
        %v2895 = vpack.c.bf16 %v2863, %v2863
        %v2896 = vpack.c.bf16 %v2864, %v2864
        %v2897 = vpack.c.bf16 %v2865, %v2865
        %v2898 = vpack.c.bf16 %v2866, %v2866
        %v2899 = vpack.c.bf16 %v2867, %v2867
        %v2900 = vpack.c.bf16 %v2868, %v2868
        %v2901 = vpack.c.bf16 %v2869, %v2869
        %v2902 = vpack.c.bf16 %v2870, %v2870
        %v2903 = vpack.c.bf16 %v2871, %v2871
        %v2904 = vpack.c.bf16 %v2872, %v2872
        %v2905 = vpack.c.bf16 %v2873, %v2873
        %v2906 = vpack.c.bf16 %v2874, %v2874
        %v2907 = vpack.c.bf16 %v2875, %v2875
        %v2908 = vpack.c.bf16 %v2876, %v2876
        %v2909 = vpack.c.bf16 %v2877, %v2877
        %v2910 = vpack.c.bf16 %v2878, %v2878
        %v2911 = vpack.c.bf16 %v2879, %v2879
        %v2912 = vpack.c.bf16 %v2880, %v2880
        %v2913 = vpack.c.bf16 %v2881, %v2881
        %v2914 = vpack.c.bf16 %v2882, %v2882
        %v2915 = vpack.c.bf16 %v2883, %v2883
        %v2916 = vpack.c.bf16 %v2884, %v2884
        %v2917 = vpack.c.bf16 %v2885, %v2885
        %v2918 = vpack.c.bf16 %v2886, %v2886
        %v2919 = vpack.c.bf16 %v2887, %v2887
        %v2920 = vpack.c.bf16 %v2888, %v2888
        %v2922 = vshrl.u32 %v2889, 16
        %v2924 = vrot.slane %v2922, 7
        %v2925 = vshll.u32 %v2889, 16
        %v2927 = vor.u32 %v2924, %v2925
        %v2929 = vshrl.u32 %v2890, 16
        %v2931 = vrot.slane %v2929, 7
        %v2932 = vshll.u32 %v2890, 16
        %v2934 = vor.u32 %v2931, %v2932
        %v2936 = vshrl.u32 %v2891, 16
        %v2938 = vrot.slane %v2936, 7
        %v2939 = vshll.u32 %v2891, 16
        %v2941 = vor.u32 %v2938, %v2939
        %v2943 = vshrl.u32 %v2892, 16
        %v2945 = vrot.slane %v2943, 7
        %v2946 = vshll.u32 %v2892, 16
        %v2948 = vor.u32 %v2945, %v2946
        %v2950 = vshrl.u32 %v2893, 16
        %v2952 = vrot.slane %v2950, 7
        %v2953 = vshll.u32 %v2893, 16
        %v2955 = vor.u32 %v2952, %v2953
        %v2957 = vshrl.u32 %v2894, 16
        %v2959 = vrot.slane %v2957, 7
        %v2960 = vshll.u32 %v2894, 16
        %v2962 = vor.u32 %v2959, %v2960
        %v2964 = vshrl.u32 %v2895, 16
        %v2966 = vrot.slane %v2964, 7
        %v2967 = vshll.u32 %v2895, 16
        %v2969 = vor.u32 %v2966, %v2967
        %v2971 = vshrl.u32 %v2896, 16
        %v2973 = vrot.slane %v2971, 7
        %v2974 = vshll.u32 %v2896, 16
        %v2976 = vor.u32 %v2973, %v2974
        %v2978 = vshrl.u32 %v2897, 16
        %v2980 = vrot.slane %v2978, 7
        %v2981 = vshll.u32 %v2897, 16
        %v2983 = vor.u32 %v2980, %v2981
        %v2985 = vshrl.u32 %v2898, 16
        %v2987 = vrot.slane %v2985, 7
        %v2988 = vshll.u32 %v2898, 16
        %v2990 = vor.u32 %v2987, %v2988
        %v2992 = vshrl.u32 %v2899, 16
        %v2994 = vrot.slane %v2992, 7
        %v2995 = vshll.u32 %v2899, 16
        %v2997 = vor.u32 %v2994, %v2995
        %v2999 = vshrl.u32 %v2900, 16
        %v3001 = vrot.slane %v2999, 7
        %v3002 = vshll.u32 %v2900, 16
        %v3004 = vor.u32 %v3001, %v3002
        %v3006 = vshrl.u32 %v2901, 16
        %v3008 = vrot.slane %v3006, 7
        %v3009 = vshll.u32 %v2901, 16
        %v3011 = vor.u32 %v3008, %v3009
        %v3013 = vshrl.u32 %v2902, 16
        %v3015 = vrot.slane %v3013, 7
        %v3016 = vshll.u32 %v2902, 16
        %v3018 = vor.u32 %v3015, %v3016
        %v3020 = vshrl.u32 %v2903, 16
        %v3022 = vrot.slane %v3020, 7
        %v3023 = vshll.u32 %v2903, 16
        %v3025 = vor.u32 %v3022, %v3023
        %v3027 = vshrl.u32 %v2904, 16
        %v3029 = vrot.slane %v3027, 7
        %v3030 = vshll.u32 %v2904, 16
        %v3032 = vor.u32 %v3029, %v3030
        %v3034 = vshrl.u32 %v2905, 16
        %v3036 = vrot.slane %v3034, 7
        %v3037 = vshll.u32 %v2905, 16
        %v3039 = vor.u32 %v3036, %v3037
        %v3041 = vshrl.u32 %v2906, 16
        %v3043 = vrot.slane %v3041, 7
        %v3044 = vshll.u32 %v2906, 16
        %v3046 = vor.u32 %v3043, %v3044
        %v3048 = vshrl.u32 %v2907, 16
        %v3050 = vrot.slane %v3048, 7
        %v3051 = vshll.u32 %v2907, 16
        %v3053 = vor.u32 %v3050, %v3051
        %v3055 = vshrl.u32 %v2908, 16
        %v3057 = vrot.slane %v3055, 7
        %v3058 = vshll.u32 %v2908, 16
        %v3060 = vor.u32 %v3057, %v3058
        %v3062 = vshrl.u32 %v2909, 16
        %v3064 = vrot.slane %v3062, 7
        %v3065 = vshll.u32 %v2909, 16
        %v3067 = vor.u32 %v3064, %v3065
        %v3069 = vshrl.u32 %v2910, 16
        %v3071 = vrot.slane %v3069, 7
        %v3072 = vshll.u32 %v2910, 16
        %v3074 = vor.u32 %v3071, %v3072
        %v3076 = vshrl.u32 %v2911, 16
        %v3078 = vrot.slane %v3076, 7
        %v3079 = vshll.u32 %v2911, 16
        %v3081 = vor.u32 %v3078, %v3079
        %v3083 = vshrl.u32 %v2912, 16
        %v3085 = vrot.slane %v3083, 7
        %v3086 = vshll.u32 %v2912, 16
        %v3088 = vor.u32 %v3085, %v3086
        %v3090 = vshrl.u32 %v2913, 16
        %v3092 = vrot.slane %v3090, 7
        %v3093 = vshll.u32 %v2913, 16
        %v3095 = vor.u32 %v3092, %v3093
        %v3097 = vshrl.u32 %v2914, 16
        %v3099 = vrot.slane %v3097, 7
        %v3100 = vshll.u32 %v2914, 16
        %v3102 = vor.u32 %v3099, %v3100
        %v3104 = vshrl.u32 %v2915, 16
        %v3106 = vrot.slane %v3104, 7
        %v3107 = vshll.u32 %v2915, 16
        %v3109 = vor.u32 %v3106, %v3107
        %v3111 = vshrl.u32 %v2916, 16
        %v3113 = vrot.slane %v3111, 7
        %v3114 = vshll.u32 %v2916, 16
        %v3116 = vor.u32 %v3113, %v3114
        %v3118 = vshrl.u32 %v2917, 16
        %v3120 = vrot.slane %v3118, 7
        %v3121 = vshll.u32 %v2917, 16
        %v3123 = vor.u32 %v3120, %v3121
        %v3125 = vshrl.u32 %v2918, 16
        %v3127 = vrot.slane %v3125, 7
        %v3128 = vshll.u32 %v2918, 16
        %v3130 = vor.u32 %v3127, %v3128
        %v3132 = vshrl.u32 %v2919, 16
        %v3134 = vrot.slane %v3132, 7
        %v3135 = vshll.u32 %v2919, 16
        %v3137 = vor.u32 %v3134, %v3135
        %v3139 = vshrl.u32 %v2920, 16
        %v3141 = vrot.slane %v3139, 7
        %v3142 = vshll.u32 %v2920, 16
        %v3144 = vor.u32 %v3141, %v3142
        %v3177 = vsel %vm560, 0, %v2927
        %v3178 = vsel %vm560, 0, %v2934
        %v3179 = vsel %vm560, 0, %v2941
        %v3180 = vsel %vm560, 0, %v2948
        %v3181 = vsel %vm560, 0, %v2955
        %v3182 = vsel %vm560, 0, %v2962
        %v3183 = vsel %vm560, 0, %v2969
        %v3184 = vsel %vm560, 0, %v2976
        %v3185 = vsel %vm560, 0, %v2983
        %v3186 = vsel %vm560, 0, %v2990
        %v3187 = vsel %vm560, 0, %v2997
        %v3188 = vsel %vm560, 0, %v3004
        %v3189 = vsel %vm560, 0, %v3011
        %v3190 = vsel %vm560, 0, %v3018
        %v3191 = vsel %vm560, 0, %v3025
        %v3192 = vsel %vm560, 0, %v3032
        %v3193 = vsel %vm560, 0, %v3039
        %v3194 = vsel %vm560, 0, %v3046
        %v3195 = vsel %vm560, 0, %v3053
        %v3196 = vsel %vm560, 0, %v3060
        %v3197 = vsel %vm560, 0, %v3067
        %v3198 = vsel %vm560, 0, %v3074
        %v3199 = vsel %vm560, 0, %v3081
        %v3200 = vsel %vm560, 0, %v3088
        %v3201 = vsel %vm560, 0, %v3095
        %v3202 = vsel %vm560, 0, %v3102
        %v3203 = vsel %vm560, 0, %v3109
        %v3204 = vsel %vm560, 0, %v3116
        %v3205 = vsel %vm560, 0, %v3123
        %v3206 = vsel %vm560, 0, %v3130
        %v3207 = vsel %vm560, 0, %v3137
        %v3208 = vsel %vm560, 0, %v3144
        %v3209 = vsel %vm596, %v3177, 0
        %v3210 = vsel %vm596, %v3178, 0
        %v3211 = vsel %vm596, %v3179, 0
        %v3212 = vsel %vm596, %v3180, 0
        %v3213 = vsel %vm596, %v3181, 0
        %v3214 = vsel %vm596, %v3182, 0
        %v3215 = vsel %vm596, %v3183, 0
        %v3216 = vsel %vm596, %v3184, 0
        %v3217 = vsel %vm596, %v3185, 0
        %v3218 = vsel %vm596, %v3186, 0
        %v3219 = vsel %vm596, %v3187, 0
        %v3220 = vsel %vm596, %v3188, 0
        %v3221 = vsel %vm596, %v3189, 0
        %v3222 = vsel %vm596, %v3190, 0
        %v3223 = vsel %vm596, %v3191, 0
        %v3224 = vsel %vm596, %v3192, 0
        %v3225 = vsel %vm596, %v3193, 0
        %v3226 = vsel %vm596, %v3194, 0
        %v3227 = vsel %vm596, %v3195, 0
        %v3228 = vsel %vm596, %v3196, 0
        %v3229 = vsel %vm596, %v3197, 0
        %v3230 = vsel %vm596, %v3198, 0
        %v3231 = vsel %vm596, %v3199, 0
        %v3232 = vsel %vm596, %v3200, 0
        %v3233 = vsel %vm596, %v3201, 0
        %v3234 = vsel %vm596, %v3202, 0
        %v3235 = vsel %vm596, %v3203, 0
        %v3236 = vsel %vm596, %v3204, 0
        %v3237 = vsel %vm596, %v3205, 0
        %v3238 = vsel %vm596, %v3206, 0
        %v3239 = vsel %vm596, %v3207, 0
        %v3240 = vsel %vm596, %v3208, 0
        %v3242 = vshrl.u32 %v3209, 16
        %v3244 = vshll.u32 %v3209, 16
        %v3246 = vrot.slane %v3244, 1
        %v3247 = vor.u32 %v3242, %v3246
        %v3249 = vshrl.u32 %v3210, 16
        %v3251 = vshll.u32 %v3210, 16
        %v3253 = vrot.slane %v3251, 1
        %v3254 = vor.u32 %v3249, %v3253
        %v3256 = vshrl.u32 %v3211, 16
        %v3258 = vshll.u32 %v3211, 16
        %v3260 = vrot.slane %v3258, 1
        %v3261 = vor.u32 %v3256, %v3260
        %v3263 = vshrl.u32 %v3212, 16
        %v3265 = vshll.u32 %v3212, 16
        %v3267 = vrot.slane %v3265, 1
        %v3268 = vor.u32 %v3263, %v3267
        %v3270 = vshrl.u32 %v3213, 16
        %v3272 = vshll.u32 %v3213, 16
        %v3274 = vrot.slane %v3272, 1
        %v3275 = vor.u32 %v3270, %v3274
        %v3277 = vshrl.u32 %v3214, 16
        %v3279 = vshll.u32 %v3214, 16
        %v3281 = vrot.slane %v3279, 1
        %v3282 = vor.u32 %v3277, %v3281
        %v3284 = vshrl.u32 %v3215, 16
        %v3286 = vshll.u32 %v3215, 16
        %v3288 = vrot.slane %v3286, 1
        %v3289 = vor.u32 %v3284, %v3288
        %v3291 = vshrl.u32 %v3216, 16
        %v3293 = vshll.u32 %v3216, 16
        %v3295 = vrot.slane %v3293, 1
        %v3296 = vor.u32 %v3291, %v3295
        %v3298 = vshrl.u32 %v3217, 16
        %v3300 = vshll.u32 %v3217, 16
        %v3302 = vrot.slane %v3300, 1
        %v3303 = vor.u32 %v3298, %v3302
        %v3305 = vshrl.u32 %v3218, 16
        %v3307 = vshll.u32 %v3218, 16
        %v3309 = vrot.slane %v3307, 1
        %v3310 = vor.u32 %v3305, %v3309
        %v3312 = vshrl.u32 %v3219, 16
        %v3314 = vshll.u32 %v3219, 16
        %v3316 = vrot.slane %v3314, 1
        %v3317 = vor.u32 %v3312, %v3316
        %v3319 = vshrl.u32 %v3220, 16
        %v3321 = vshll.u32 %v3220, 16
        %v3323 = vrot.slane %v3321, 1
        %v3324 = vor.u32 %v3319, %v3323
        %v3326 = vshrl.u32 %v3221, 16
        %v3328 = vshll.u32 %v3221, 16
        %v3330 = vrot.slane %v3328, 1
        %v3331 = vor.u32 %v3326, %v3330
        %v3333 = vshrl.u32 %v3222, 16
        %v3335 = vshll.u32 %v3222, 16
        %v3337 = vrot.slane %v3335, 1
        %v3338 = vor.u32 %v3333, %v3337
        %v3340 = vshrl.u32 %v3223, 16
        %v3342 = vshll.u32 %v3223, 16
        %v3344 = vrot.slane %v3342, 1
        %v3345 = vor.u32 %v3340, %v3344
        %v3347 = vshrl.u32 %v3224, 16
        %v3349 = vshll.u32 %v3224, 16
        %v3351 = vrot.slane %v3349, 1
        %v3352 = vor.u32 %v3347, %v3351
        %v3354 = vshrl.u32 %v3225, 16
        %v3356 = vshll.u32 %v3225, 16
        %v3358 = vrot.slane %v3356, 1
        %v3359 = vor.u32 %v3354, %v3358
        %v3361 = vshrl.u32 %v3226, 16
        %v3363 = vshll.u32 %v3226, 16
        %v3365 = vrot.slane %v3363, 1
        %v3366 = vor.u32 %v3361, %v3365
        %v3368 = vshrl.u32 %v3227, 16
        %v3370 = vshll.u32 %v3227, 16
        %v3372 = vrot.slane %v3370, 1
        %v3373 = vor.u32 %v3368, %v3372
        %v3375 = vshrl.u32 %v3228, 16
        %v3377 = vshll.u32 %v3228, 16
        %v3379 = vrot.slane %v3377, 1
        %v3380 = vor.u32 %v3375, %v3379
        %v3382 = vshrl.u32 %v3229, 16
        %v3384 = vshll.u32 %v3229, 16
        %v3386 = vrot.slane %v3384, 1
        %v3387 = vor.u32 %v3382, %v3386
        %v3389 = vshrl.u32 %v3230, 16
        %v3391 = vshll.u32 %v3230, 16
        %v3393 = vrot.slane %v3391, 1
        %v3394 = vor.u32 %v3389, %v3393
        %v3396 = vshrl.u32 %v3231, 16
        %v3398 = vshll.u32 %v3231, 16
        %v3400 = vrot.slane %v3398, 1
        %v3401 = vor.u32 %v3396, %v3400
        %v3403 = vshrl.u32 %v3232, 16
        %v3405 = vshll.u32 %v3232, 16
        %v3407 = vrot.slane %v3405, 1
        %v3408 = vor.u32 %v3403, %v3407
        %v3410 = vshrl.u32 %v3233, 16
        %v3412 = vshll.u32 %v3233, 16
        %v3414 = vrot.slane %v3412, 1
        %v3415 = vor.u32 %v3410, %v3414
        %v3417 = vshrl.u32 %v3234, 16
        %v3419 = vshll.u32 %v3234, 16
        %v3421 = vrot.slane %v3419, 1
        %v3422 = vor.u32 %v3417, %v3421
        %v3424 = vshrl.u32 %v3235, 16
        %v3426 = vshll.u32 %v3235, 16
        %v3428 = vrot.slane %v3426, 1
        %v3429 = vor.u32 %v3424, %v3428
        %v3431 = vshrl.u32 %v3236, 16
        %v3433 = vshll.u32 %v3236, 16
        %v3435 = vrot.slane %v3433, 1
        %v3436 = vor.u32 %v3431, %v3435
        %v3438 = vshrl.u32 %v3237, 16
        %v3440 = vshll.u32 %v3237, 16
        %v3442 = vrot.slane %v3440, 1
        %v3443 = vor.u32 %v3438, %v3442
        %v3445 = vshrl.u32 %v3238, 16
        %v3447 = vshll.u32 %v3238, 16
        %v3449 = vrot.slane %v3447, 1
        %v3450 = vor.u32 %v3445, %v3449
        %v3452 = vshrl.u32 %v3239, 16
        %v3454 = vshll.u32 %v3239, 16
        %v3456 = vrot.slane %v3454, 1
        %v3457 = vor.u32 %v3452, %v3456
        %v3459 = vshrl.u32 %v3240, 16
        %v3461 = vshll.u32 %v3240, 16
        %v3463 = vrot.slane %v3461, 1
        %v3464 = vor.u32 %v3459, %v3463
        %v3497 = vrot.slane %v3209, 1
        %v3498 = vrot.slane %v3210, 1
        %v3499 = vrot.slane %v3211, 1
        %v3500 = vrot.slane %v3212, 1
        %v3501 = vrot.slane %v3213, 1
        %v3502 = vrot.slane %v3214, 1
        %v3503 = vrot.slane %v3215, 1
        %v3504 = vrot.slane %v3216, 1
        %v3505 = vrot.slane %v3217, 1
        %v3506 = vrot.slane %v3218, 1
        %v3507 = vrot.slane %v3219, 1
        %v3508 = vrot.slane %v3220, 1
        %v3509 = vrot.slane %v3221, 1
        %v3510 = vrot.slane %v3222, 1
        %v3511 = vrot.slane %v3223, 1
        %v3512 = vrot.slane %v3224, 1
        %v3513 = vrot.slane %v3225, 1
        %v3514 = vrot.slane %v3226, 1
        %v3515 = vrot.slane %v3227, 1
        %v3516 = vrot.slane %v3228, 1
        %v3517 = vrot.slane %v3229, 1
        %v3518 = vrot.slane %v3230, 1
        %v3519 = vrot.slane %v3231, 1
        %v3520 = vrot.slane %v3232, 1
        %v3521 = vrot.slane %v3233, 1
        %v3522 = vrot.slane %v3234, 1
        %v3523 = vrot.slane %v3235, 1
        %v3524 = vrot.slane %v3236, 1
        %v3525 = vrot.slane %v3237, 1
        %v3526 = vrot.slane %v3238, 1
        %v3527 = vrot.slane %v3239, 1
        %v3528 = vrot.slane %v3240, 1
        %v3529 = vunpack.c.l.b16 %v3209
        %v3530 = vunpack.c.l.b16 %v3247
        %v3531 = vunpack.c.l.b16 %v3497
        %v3532 = vunpack.c.l.b16 %v3210
        %v3533 = vunpack.c.l.b16 %v3254
        %v3534 = vunpack.c.l.b16 %v3498
        %v3535 = vunpack.c.l.b16 %v3211
        %v3536 = vunpack.c.l.b16 %v3261
        %v3537 = vunpack.c.l.b16 %v3499
        %v3538 = vunpack.c.l.b16 %v3212
        %v3539 = vunpack.c.l.b16 %v3268
        %v3540 = vunpack.c.l.b16 %v3500
        %v3541 = vunpack.c.l.b16 %v3213
        %v3542 = vunpack.c.l.b16 %v3275
        %v3543 = vunpack.c.l.b16 %v3501
        %v3544 = vunpack.c.l.b16 %v3214
        %v3545 = vunpack.c.l.b16 %v3282
        %v3546 = vunpack.c.l.b16 %v3502
        %v3547 = vunpack.c.l.b16 %v3215
        %v3548 = vunpack.c.l.b16 %v3289
        %v3549 = vunpack.c.l.b16 %v3503
        %v3550 = vunpack.c.l.b16 %v3217
        %v3551 = vunpack.c.l.b16 %v3303
        %v3552 = vunpack.c.l.b16 %v3505
        %v3553 = vunpack.c.l.b16 %v3218
        %v3554 = vunpack.c.l.b16 %v3310
        %v3555 = vunpack.c.l.b16 %v3506
        %v3556 = vunpack.c.l.b16 %v3219
        %v3557 = vunpack.c.l.b16 %v3317
        %v3558 = vunpack.c.l.b16 %v3507
        %v3559 = vunpack.c.l.b16 %v3220
        %v3560 = vunpack.c.l.b16 %v3324
        %v3561 = vunpack.c.l.b16 %v3508
        %v3562 = vunpack.c.l.b16 %v3221
        %v3563 = vunpack.c.l.b16 %v3331
        %v3564 = vunpack.c.l.b16 %v3509
        %v3565 = vunpack.c.l.b16 %v3222
        %v3566 = vunpack.c.l.b16 %v3338
        %v3567 = vunpack.c.l.b16 %v3510
        %v3568 = vunpack.c.l.b16 %v3223
        %v3569 = vunpack.c.l.b16 %v3345
        %v3570 = vunpack.c.l.b16 %v3511
        %v3571 = vunpack.c.l.b16 %v3225
        %v3572 = vunpack.c.l.b16 %v3359
        %v3573 = vunpack.c.l.b16 %v3513
        %v3574 = vunpack.c.l.b16 %v3226
        %v3575 = vunpack.c.l.b16 %v3366
        %v3576 = vunpack.c.l.b16 %v3514
        %v3577 = vunpack.c.l.b16 %v3227
        %v3578 = vunpack.c.l.b16 %v3373
        %v3579 = vunpack.c.l.b16 %v3515
        %v3580 = vunpack.c.l.b16 %v3228
        %v3581 = vunpack.c.l.b16 %v3380
        %v3582 = vunpack.c.l.b16 %v3516
        %v3583 = vunpack.c.l.b16 %v3229
        %v3584 = vunpack.c.l.b16 %v3387
        %v3585 = vunpack.c.l.b16 %v3517
        %v3586 = vunpack.c.l.b16 %v3230
        %v3587 = vunpack.c.l.b16 %v3394
        %v3588 = vunpack.c.l.b16 %v3518
        %v3589 = vunpack.c.l.b16 %v3231
        %v3590 = vunpack.c.l.b16 %v3401
        %v3591 = vunpack.c.l.b16 %v3519
        %v3592 = vunpack.c.l.b16 %v3233
        %v3593 = vunpack.c.l.b16 %v3415
        %v3594 = vunpack.c.l.b16 %v3521
        %v3595 = vunpack.c.l.b16 %v3234
        %v3596 = vunpack.c.l.b16 %v3422
        %v3597 = vunpack.c.l.b16 %v3522
        %v3598 = vunpack.c.l.b16 %v3235
        %v3599 = vunpack.c.l.b16 %v3429
        %v3600 = vunpack.c.l.b16 %v3523
        %v3601 = vunpack.c.l.b16 %v3236
        %v3602 = vunpack.c.l.b16 %v3436
        %v3603 = vunpack.c.l.b16 %v3524
        %v3604 = vunpack.c.l.b16 %v3237
        %v3605 = vunpack.c.l.b16 %v3443
        %v3606 = vunpack.c.l.b16 %v3525
        %v3607 = vunpack.c.l.b16 %v3238
        %v3608 = vunpack.c.l.b16 %v3450
        %v3609 = vunpack.c.l.b16 %v3526
        %v3610 = vunpack.c.l.b16 %v3239
        %v3611 = vunpack.c.l.b16 %v3457
        %v3612 = vunpack.c.l.b16 %v3527
        %v3613 = vld [vmem:[%s2] sm:$0xf]
        %v3614 = vld [vmem:[%s2 + $0x4] sm:$0xf]
        %v3615 = vld [vmem:[%s2 + $0x8] sm:$0xf]
        %v3616 = vld [vmem:[%s2 + $0xc] sm:$0xf]
        %v3617 = vld [vmem:[%s2 + $0x10] sm:$0xf]
        %v3618 = vld [vmem:[%s2 + $0x14] sm:$0xf]
        %v3619 = vld [vmem:[%s2 + $0x18] sm:$0xf]
        %v3620 = vld [vmem:[%s2 + $0x1c] sm:$0xf]
        %v3621 = vld [vmem:[%s2 + $0x20] sm:$0xf]
        %v3622 = vld [vmem:[%s2 + $0x24] sm:$0xf]
        %v3623 = vld [vmem:[%s2 + $0x28] sm:$0xf]
        %v3624 = vld [vmem:[%s2 + $0x2c] sm:$0xf]
        %v3625 = vld [vmem:[%s2 + $0x30] sm:$0xf]
        %v3626 = vld [vmem:[%s2 + $0x34] sm:$0xf]
        %v3627 = vld [vmem:[%s2 + $0x38] sm:$0xf]
        %v3628 = vld [vmem:[%s2 + $0x3c] sm:$0xf]
        %v3629 = vld [vmem:[%s2 + $0x40] sm:$0xf]
        %v3630 = vld [vmem:[%s2 + $0x44] sm:$0xf]
        %v3631 = vld [vmem:[%s2 + $0x48] sm:$0xf]
        %v3632 = vld [vmem:[%s2 + $0x4c] sm:$0xf]
        %v3633 = vld [vmem:[%s2 + $0x50] sm:$0xf]
        %v3634 = vld [vmem:[%s2 + $0x54] sm:$0xf]
        %v3635 = vld [vmem:[%s2 + $0x58] sm:$0xf]
        %v3636 = vld [vmem:[%s2 + $0x5c] sm:$0xf]
        %v3637 = vld [vmem:[%s2 + $0x60] sm:$0xf]
        %v3638 = vld [vmem:[%s2 + $0x64] sm:$0xf]
        %v3639 = vld [vmem:[%s2 + $0x68] sm:$0xf]
        %v3640 = vld [vmem:[%s2 + $0x6c] sm:$0xf]
        %v3641 = vld [vmem:[%s2 + $0x70] sm:$0xf]
        %v3642 = vld [vmem:[%s2 + $0x74] sm:$0xf]
        %v3643 = vld [vmem:[%s2 + $0x78] sm:$0xf]
        %v3644 = vld [vmem:[%s2 + $0x7c] sm:$0xf]
        %v3645 = vld [vmem:[%s2 + $0x80] sm:$0xf]
        %v3646 = vld [vmem:[%s2 + $0x84] sm:$0xf]
        %v3647 = vld [vmem:[%s2 + $0x88] sm:$0xf]
        %v3648 = vld [vmem:[%s2 + $0x8c] sm:$0xf]
        %v3649 = vld [vmem:[%s2 + $0x90] sm:$0xf]
        %v3650 = vld [vmem:[%s2 + $0x94] sm:$0xf]
        %v3651 = vld [vmem:[%s2 + $0x98] sm:$0xf]
        %v3652 = vld [vmem:[%s2 + $0x9c] sm:$0xf]
        %v3653 = vld [vmem:[%s2 + $0xa0] sm:$0xf]
        %v3654 = vld [vmem:[%s2 + $0xa4] sm:$0xf]
        %v3655 = vld [vmem:[%s2 + $0xa8] sm:$0xf]
        %v3656 = vld [vmem:[%s2 + $0xac] sm:$0xf]
        %v3657 = vld [vmem:[%s2 + $0xb0] sm:$0xf]
        %v3658 = vld [vmem:[%s2 + $0xb4] sm:$0xf]
        %v3659 = vld [vmem:[%s2 + $0xb8] sm:$0xf]
        %v3660 = vld [vmem:[%s2 + $0xbc] sm:$0xf]
        %v3661 = vunpack.c.l.b16 %v3216
        %v3662 = vunpack.c.l.b16 %v3296
        %v3663 = vunpack.c.l.b16 %v3504
        %v3664 = vunpack.c.l.b16 %v3224
        %v3665 = vunpack.c.l.b16 %v3352
        %v3666 = vunpack.c.l.b16 %v3512
        %v3667 = vunpack.c.l.b16 %v3232
        %v3668 = vunpack.c.l.b16 %v3408
        %v3669 = vunpack.c.l.b16 %v3520
        %v3670 = vunpack.c.l.b16 %v3240
        %v3671 = vunpack.c.l.b16 %v3464
        %v3672 = vunpack.c.l.b16 %v3528
        %s3673 = scalar_lea.vmem %s2, 192
        %v3674 = vld [vmem:[%s3673] sm:$0xf]
        %v3675 = vld [vmem:[%s3673 + $0x4] sm:$0xf]
        %v3676 = vld [vmem:[%s3673 + $0x8] sm:$0xf]
        %v3677 = vld [vmem:[%s3673 + $0xc] sm:$0xf]
        %v3678 = vld [vmem:[%s3673 + $0x10] sm:$0xf]
        %v3679 = vld [vmem:[%s3673 + $0x14] sm:$0xf]
        %v3680 = vld [vmem:[%s3673 + $0x18] sm:$0xf]
        %v3681 = vld [vmem:[%s3673 + $0x1c] sm:$0xf]
        %v3682 = vld [vmem:[%s3673 + $0x20] sm:$0xf]
        %v3683 = vld [vmem:[%s3673 + $0x24] sm:$0xf]
        %v3684 = vld [vmem:[%s3673 + $0x28] sm:$0xf]
        %v3685 = vld [vmem:[%s3673 + $0x2c] sm:$0xf]
        %v3686 = vld [vmem:[%s3673 + $0x30] sm:$0xf]
        %v3687 = vld [vmem:[%s3673 + $0x34] sm:$0xf]
        %v3688 = vld [vmem:[%s3673 + $0x38] sm:$0xf]
        %v3689 = vld [vmem:[%s3673 + $0x3c] sm:$0xf]
        %v3690 = vld [vmem:[%s3673 + $0x40] sm:$0xf]
        %v3691 = vld [vmem:[%s3673 + $0x44] sm:$0xf]
        %v3692 = vld [vmem:[%s3673 + $0x48] sm:$0xf]
        %v3693 = vld [vmem:[%s3673 + $0x4c] sm:$0xf]
        %v3694 = vld [vmem:[%s3673 + $0x50] sm:$0xf]
        %v3695 = vld [vmem:[%s3673 + $0x54] sm:$0xf]
        %v3696 = vld [vmem:[%s3673 + $0x58] sm:$0xf]
        %v3697 = vld [vmem:[%s3673 + $0x5c] sm:$0xf]
        %v3698 = vld [vmem:[%s3673 + $0x60] sm:$0xf]
        %v3699 = vld [vmem:[%s3673 + $0x64] sm:$0xf]
        %v3700 = vld [vmem:[%s3673 + $0x68] sm:$0xf]
        %v3701 = vld [vmem:[%s3673 + $0x6c] sm:$0xf]
        %v3702 = vld [vmem:[%s3673 + $0x70] sm:$0xf]
        %v3703 = vld [vmem:[%s3673 + $0x74] sm:$0xf]
        %v3704 = vld [vmem:[%s3673 + $0x78] sm:$0xf]
        %v3705 = vld [vmem:[%s3673 + $0x7c] sm:$0xf]
        %v3706 = vld [vmem:[%s3673 + $0x80] sm:$0xf]
        %v3707 = vld [vmem:[%s3673 + $0x84] sm:$0xf]
        %v3708 = vld [vmem:[%s3673 + $0x88] sm:$0xf]
        %v3709 = vld [vmem:[%s3673 + $0x8c] sm:$0xf]
        %v3710 = vld [vmem:[%s3673 + $0x90] sm:$0xf]
        %v3711 = vld [vmem:[%s3673 + $0x94] sm:$0xf]
        %v3712 = vld [vmem:[%s3673 + $0x98] sm:$0xf]
        %v3713 = vld [vmem:[%s3673 + $0x9c] sm:$0xf]
        %v3714 = vld [vmem:[%s3673 + $0xa0] sm:$0xf]
        %v3715 = vld [vmem:[%s3673 + $0xa4] sm:$0xf]
        %v3716 = vld [vmem:[%s3673 + $0xa8] sm:$0xf]
        %v3717 = vld [vmem:[%s3673 + $0xac] sm:$0xf]
        %v3718 = vld [vmem:[%s3673 + $0xb0] sm:$0xf]
        %v3719 = vld [vmem:[%s3673 + $0xb4] sm:$0xf]
        %v3720 = vld [vmem:[%s3673 + $0xb8] sm:$0xf]
        %v3721 = vld [vmem:[%s3673 + $0xbc] sm:$0xf]
        %v3722 = vpack.c.b16 %v3532, %v3529
        %v3723 = vpack.c.b16 %v3533, %v3530
        %v3724 = vpack.c.b16 %v3534, %v3531
        %v3725 = vpack.c.b16 %v3538, %v3535
        %v3726 = vpack.c.b16 %v3539, %v3536
        %v3727 = vpack.c.b16 %v3540, %v3537
        %v3728 = vpack.c.b16 %v3544, %v3541
        %v3729 = vpack.c.b16 %v3545, %v3542
        %v3730 = vpack.c.b16 %v3546, %v3543
        %v3731 = vpack.c.b16 %v3661, %v3547
        %v3732 = vpack.c.b16 %v3662, %v3548
        %v3733 = vpack.c.b16 %v3663, %v3549
        %v3734 = vpack.c.b16 %v3553, %v3550
        %v3735 = vpack.c.b16 %v3554, %v3551
        %v3736 = vpack.c.b16 %v3555, %v3552
        %v3737 = vpack.c.b16 %v3559, %v3556
        %v3738 = vpack.c.b16 %v3560, %v3557
        %v3739 = vpack.c.b16 %v3561, %v3558
        %v3740 = vpack.c.b16 %v3565, %v3562
        %v3741 = vpack.c.b16 %v3566, %v3563
        %v3742 = vpack.c.b16 %v3567, %v3564
        %v3743 = vpack.c.b16 %v3664, %v3568
        %v3744 = vpack.c.b16 %v3665, %v3569
        %v3745 = vpack.c.b16 %v3666, %v3570
        %v3746 = vpack.c.b16 %v3574, %v3571
        %v3747 = vpack.c.b16 %v3575, %v3572
        %v3748 = vpack.c.b16 %v3576, %v3573
        %v3749 = vpack.c.b16 %v3580, %v3577
        %v3750 = vpack.c.b16 %v3581, %v3578
        %v3751 = vpack.c.b16 %v3582, %v3579
        %v3752 = vpack.c.b16 %v3586, %v3583
        %v3753 = vpack.c.b16 %v3587, %v3584
        %v3754 = vpack.c.b16 %v3588, %v3585
        %v3755 = vpack.c.b16 %v3667, %v3589
        %v3756 = vpack.c.b16 %v3668, %v3590
        %v3757 = vpack.c.b16 %v3669, %v3591
        %v3758 = vpack.c.b16 %v3595, %v3592
        %v3759 = vpack.c.b16 %v3596, %v3593
        %v3760 = vpack.c.b16 %v3597, %v3594
        %v3761 = vpack.c.b16 %v3601, %v3598
        %v3762 = vpack.c.b16 %v3602, %v3599
        %v3763 = vpack.c.b16 %v3603, %v3600
        %v3764 = vpack.c.b16 %v3607, %v3604
        %v3765 = vpack.c.b16 %v3608, %v3605
        %v3766 = vpack.c.b16 %v3609, %v3606
        %v3767 = vpack.c.b16 %v3670, %v3610
        %v3768 = vpack.c.b16 %v3671, %v3611
        %v3769 = vpack.c.b16 %v3672, %v3612
        %v3866 = vunpack.c.l.b16 %v3674
        %v3867 = vunpack.c.l.b16 %v3675
        %v3868 = vunpack.c.l.b16 %v3676
        %v3869 = vunpack.c.l.b16 %v3677
        %v3870 = vunpack.c.l.b16 %v3678
        %v3871 = vunpack.c.l.b16 %v3679
        %v3872 = vunpack.c.l.b16 %v3680
        %v3873 = vunpack.c.l.b16 %v3681
        %v3874 = vunpack.c.l.b16 %v3682
        %v3875 = vunpack.c.l.b16 %v3683
        %v3876 = vunpack.c.l.b16 %v3684
        %v3877 = vunpack.c.l.b16 %v3685
        %v3878 = vunpack.c.l.b16 %v3686
        %v3879 = vunpack.c.l.b16 %v3687
        %v3880 = vunpack.c.l.b16 %v3688
        %v3881 = vunpack.c.l.b16 %v3689
        %v3882 = vunpack.c.l.b16 %v3690
        %v3883 = vunpack.c.l.b16 %v3691
        %v3884 = vunpack.c.l.b16 %v3692
        %v3885 = vunpack.c.l.b16 %v3693
        %v3886 = vunpack.c.l.b16 %v3694
        %v3887 = vunpack.c.l.b16 %v3695
        %v3888 = vunpack.c.l.b16 %v3696
        %v3889 = vunpack.c.l.b16 %v3697
        %v3890 = vunpack.c.l.b16 %v3698
        %v3891 = vunpack.c.l.b16 %v3699
        %v3892 = vunpack.c.l.b16 %v3700
        %v3893 = vunpack.c.l.b16 %v3701
        %v3894 = vunpack.c.l.b16 %v3702
        %v3895 = vunpack.c.l.b16 %v3703
        %v3896 = vunpack.c.l.b16 %v3704
        %v3897 = vunpack.c.l.b16 %v3705
        %v3898 = vunpack.c.l.b16 %v3706
        %v3899 = vunpack.c.l.b16 %v3707
        %v3900 = vunpack.c.l.b16 %v3708
        %v3901 = vunpack.c.l.b16 %v3709
        %v3902 = vunpack.c.l.b16 %v3710
        %v3903 = vunpack.c.l.b16 %v3711
        %v3904 = vunpack.c.l.b16 %v3712
        %v3905 = vunpack.c.l.b16 %v3713
        %v3906 = vunpack.c.l.b16 %v3714
        %v3907 = vunpack.c.l.b16 %v3715
        %v3908 = vunpack.c.l.b16 %v3716
        %v3909 = vunpack.c.l.b16 %v3717
        %v3910 = vunpack.c.l.b16 %v3718
        %v3911 = vunpack.c.l.b16 %v3719
        %v3912 = vunpack.c.l.b16 %v3720
        %v3913 = vunpack.c.l.b16 %v3721
        %v3914 = vpack.c.b16 %v3867, %v3866
        %v3915 = vpack.c.b16 %v3869, %v3868
        %v3916 = vpack.c.b16 %v3871, %v3870
        %v3917 = vpack.c.b16 %v3873, %v3872
        %v3918 = vpack.c.b16 %v3875, %v3874
        %v3919 = vpack.c.b16 %v3877, %v3876
        %v3920 = vpack.c.b16 %v3879, %v3878
        %v3921 = vpack.c.b16 %v3881, %v3880
        %v3922 = vpack.c.b16 %v3883, %v3882
        %v3923 = vpack.c.b16 %v3885, %v3884
        %v3924 = vpack.c.b16 %v3887, %v3886
        %v3925 = vpack.c.b16 %v3889, %v3888
        %v3926 = vpack.c.b16 %v3891, %v3890
        %v3927 = vpack.c.b16 %v3893, %v3892
        %v3928 = vpack.c.b16 %v3895, %v3894
        %v3929 = vpack.c.b16 %v3897, %v3896
        %v3930 = vpack.c.b16 %v3899, %v3898
        %v3931 = vpack.c.b16 %v3901, %v3900
        %v3932 = vpack.c.b16 %v3903, %v3902
        %v3933 = vpack.c.b16 %v3905, %v3904
        %v3934 = vpack.c.b16 %v3907, %v3906
        %v3935 = vpack.c.b16 %v3909, %v3908
        %v3936 = vpack.c.b16 %v3911, %v3910
        %v3937 = vpack.c.b16 %v3913, %v3912
        %3962 = vmatprep.subr.bf16.mxu0 0
        %3963 = vmatpush1.bf16.msra.mxu0 %v3921
        %3964 = vmatprep.subr.bf16.mxu0 0
        %3965 = vmatpush1.bf16.msra.mxu0 %v3920
        %3966 = vmatprep.subr.bf16.mxu0 0
        %3967 = vmatpush1.bf16.msra.mxu0 %v3919
        %3968 = vmatprep.subr.bf16.mxu0 0
        %3969 = vmatpush1.bf16.msra.mxu0 %v3918
        %3970 = vmatprep.subr.bf16.mxu0 0
        %3971 = vmatpush1.bf16.msra.mxu0 %v3917
        %3972 = vmatprep.subr.bf16.mxu0 0
        %3973 = vmatpush1.bf16.msra.mxu0 %v3916
        %3974 = vmatprep.subr.bf16.mxu0 0
        %3975 = vmatpush1.bf16.msra.mxu0 %v3915
        %3976 = vmatprep.subr.bf16.mxu0 0
        %3977 = vmatpush1.bf16.msra.mxu0 %v3914
        %3978 = vmatprep.subr.bf16.mxu0 0
        %3979 = vmatpush2.bf16.msra.mxu0 %v3929
        %3980 = vmatprep.subr.bf16.mxu0 0
        %3981 = vmatpush2.bf16.msra.mxu0 %v3928
        %3982 = vmatprep.subr.bf16.mxu0 0
        %3983 = vmatpush2.bf16.msra.mxu0 %v3927
        %3984 = vmatprep.subr.bf16.mxu0 0
        %3985 = vmatpush2.bf16.msra.mxu0 %v3926
        %3986 = vmatprep.subr.bf16.mxu0 0
        %3987 = vmatpush2.bf16.msra.mxu0 %v3925
        %3988 = vmatprep.subr.bf16.mxu0 0
        %3989 = vmatpush2.bf16.msra.mxu0 %v3924
        %3990 = vmatprep.subr.bf16.mxu0 0
        %3991 = vmatpush2.bf16.msra.mxu0 %v3923
        %3992 = vmatprep.subr.bf16.mxu0 0
        %3993 = vmatpush2.bf16.msra.mxu0 %v3922
        %3994 = vmatprep.mubr.bf16.mxu0 %v3723
        %3995 = vmatmul.mubr.bf16.gmra.mxu0 %v3722
        %v3996 = vpop.f32.mrf.mxu0
        %v3997 = vadd.f32 0.0, %v3996
        %v3998 = vpop.f32.mrf.mxu0
        %v3999 = vpop.f32.mrf.mxu0
        %v4000 = vadd.f32 0.0, %v3999
        %v4001 = vpop.f32.mrf.mxu0
        %4002 = vmatprep.mubr.bf16.mxu0 %v3726
        %4003 = vmatmul.mubr.bf16.gmra.mxu0 %v3725
        %v4004 = vpop.f32.mrf.mxu0
        %v4005 = vadd.f32 0.0, %v4004
        %v4006 = vpop.f32.mrf.mxu0
        %v4007 = vpop.f32.mrf.mxu0
        %v4008 = vadd.f32 0.0, %v4007
        %v4009 = vpop.f32.mrf.mxu0
        %4010 = vmatprep.mubr.bf16.mxu0 %v3729
        %4011 = vmatmul.mubr.bf16.gmra.mxu0 %v3728
        %v4012 = vpop.f32.mrf.mxu0
        %v4013 = vadd.f32 0.0, %v4012
        %v4014 = vpop.f32.mrf.mxu0
        %v4015 = vpop.f32.mrf.mxu0
        %v4016 = vadd.f32 0.0, %v4015
        %v4017 = vpop.f32.mrf.mxu0
        %4018 = vmatprep.mubr.bf16.mxu0 %v3732
        %4019 = vmatmul.mubr.bf16.gmra.mxu0 %v3731
        %v4020 = vpop.f32.mrf.mxu0
        %v4021 = vadd.f32 0.0, %v4020
        %v4022 = vpop.f32.mrf.mxu0
        %v4023 = vpop.f32.mrf.mxu0
        %v4024 = vadd.f32 0.0, %v4023
        %v4025 = vpop.f32.mrf.mxu0
        %4026 = vmatprep.mubr.bf16.mxu0 %v3735
        %4027 = vmatmul.mubr.bf16.gmra.mxu0 %v3734
        %v4028 = vpop.f32.mrf.mxu0
        %v4029 = vadd.f32 0.0, %v4028
        %v4030 = vpop.f32.mrf.mxu0
        %v4031 = vpop.f32.mrf.mxu0
        %v4032 = vadd.f32 0.0, %v4031
        %v4033 = vpop.f32.mrf.mxu0
        %4034 = vmatprep.mubr.bf16.mxu0 %v3738
        %4035 = vmatmul.mubr.bf16.gmra.mxu0 %v3737
        %v4036 = vpop.f32.mrf.mxu0
        %v4037 = vadd.f32 0.0, %v4036
        %v4038 = vpop.f32.mrf.mxu0
        %v4039 = vpop.f32.mrf.mxu0
        %v4040 = vadd.f32 0.0, %v4039
        %v4041 = vpop.f32.mrf.mxu0
        %4042 = vmatprep.mubr.bf16.mxu0 %v3741
        %4043 = vmatmul.mubr.bf16.gmra.mxu0 %v3740
        %v4044 = vpop.f32.mrf.mxu0
        %v4045 = vadd.f32 0.0, %v4044
        %v4046 = vpop.f32.mrf.mxu0
        %v4047 = vpop.f32.mrf.mxu0
        %v4048 = vadd.f32 0.0, %v4047
        %v4049 = vpop.f32.mrf.mxu0
        %4050 = vmatprep.mubr.bf16.mxu0 %v3744
        %4051 = vmatmul.mubr.bf16.gmra.mxu0 %v3743
        %v4052 = vpop.f32.mrf.mxu0
        %v4053 = vadd.f32 0.0, %v4052
        %v4054 = vpop.f32.mrf.mxu0
        %v4055 = vpop.f32.mrf.mxu0
        %v4056 = vadd.f32 0.0, %v4055
        %v4057 = vpop.f32.mrf.mxu0
        %4058 = vmatprep.mubr.bf16.mxu0 %v3747
        %4059 = vmatmul.mubr.bf16.gmra.mxu0 %v3746
        %v4060 = vpop.f32.mrf.mxu0
        %v4061 = vadd.f32 0.0, %v4060
        %v4062 = vpop.f32.mrf.mxu0
        %v4063 = vpop.f32.mrf.mxu0
        %v4064 = vadd.f32 0.0, %v4063
        %v4065 = vpop.f32.mrf.mxu0
        %4066 = vmatprep.mubr.bf16.mxu0 %v3750
        %4067 = vmatmul.mubr.bf16.gmra.mxu0 %v3749
        %v4068 = vpop.f32.mrf.mxu0
        %v4069 = vadd.f32 0.0, %v4068
        %v4070 = vpop.f32.mrf.mxu0
        %v4071 = vpop.f32.mrf.mxu0
        %v4072 = vadd.f32 0.0, %v4071
        %v4073 = vpop.f32.mrf.mxu0
        %4074 = vmatprep.mubr.bf16.mxu0 %v3753
        %4075 = vmatmul.mubr.bf16.gmra.mxu0 %v3752
        %v4076 = vpop.f32.mrf.mxu0
        %v4077 = vadd.f32 0.0, %v4076
        %v4078 = vpop.f32.mrf.mxu0
        %v4079 = vpop.f32.mrf.mxu0
        %v4080 = vadd.f32 0.0, %v4079
        %v4081 = vpop.f32.mrf.mxu0
        %4082 = vmatprep.mubr.bf16.mxu0 %v3756
        %4083 = vmatmul.mubr.bf16.gmra.mxu0 %v3755
        %v4084 = vpop.f32.mrf.mxu0
        %v4085 = vadd.f32 0.0, %v4084
        %v4086 = vpop.f32.mrf.mxu0
        %v4087 = vpop.f32.mrf.mxu0
        %v4088 = vadd.f32 0.0, %v4087
        %v4089 = vpop.f32.mrf.mxu0
        %4090 = vmatprep.mubr.bf16.mxu0 %v3759
        %4091 = vmatmul.mubr.bf16.gmra.mxu0 %v3758
        %v4092 = vpop.f32.mrf.mxu0
        %v4093 = vadd.f32 0.0, %v4092
        %v4094 = vpop.f32.mrf.mxu0
        %v4095 = vpop.f32.mrf.mxu0
        %v4096 = vadd.f32 0.0, %v4095
        %v4097 = vpop.f32.mrf.mxu0
        %4098 = vmatprep.mubr.bf16.mxu0 %v3762
        %4099 = vmatmul.mubr.bf16.gmra.mxu0 %v3761
        %v4100 = vpop.f32.mrf.mxu0
        %v4101 = vadd.f32 0.0, %v4100
        %v4102 = vpop.f32.mrf.mxu0
        %v4103 = vpop.f32.mrf.mxu0
        %v4104 = vadd.f32 0.0, %v4103
        %v4105 = vpop.f32.mrf.mxu0
        %4106 = vmatprep.mubr.bf16.mxu0 %v3765
        %4107 = vmatmul.mubr.bf16.gmra.mxu0 %v3764
        %v4108 = vpop.f32.mrf.mxu0
        %v4109 = vadd.f32 0.0, %v4108
        %v4110 = vpop.f32.mrf.mxu0
        %v4111 = vpop.f32.mrf.mxu0
        %v4112 = vadd.f32 0.0, %v4111
        %v4113 = vpop.f32.mrf.mxu0
        %4114 = vmatprep.mubr.bf16.mxu0 %v3768
        %4115 = vmatmul.mubr.bf16.gmra.mxu0 %v3767
        %v4116 = vpop.f32.mrf.mxu0
        %v4117 = vadd.f32 0.0, %v4116
        %v4118 = vpop.f32.mrf.mxu0
        %v4119 = vpop.f32.mrf.mxu0
        %v4120 = vadd.f32 0.0, %v4119
        %v4121 = vpop.f32.mrf.mxu0
        %4122 = vdwg.mxu0
        %4123 = vmatprep.subr.bf16.mxu0 0
        %4124 = vmatpush1.bf16.msra.mxu0 %v3937
        %4125 = vmatprep.subr.bf16.mxu0 0
        %4126 = vmatpush1.bf16.msra.mxu0 %v3936
        %4127 = vmatprep.subr.bf16.mxu0 0
        %4128 = vmatpush1.bf16.msra.mxu0 %v3935
        %4129 = vmatprep.subr.bf16.mxu0 0
        %4130 = vmatpush1.bf16.msra.mxu0 %v3934
        %4131 = vmatprep.subr.bf16.mxu0 0
        %4132 = vmatpush1.bf16.msra.mxu0 %v3933
        %4133 = vmatprep.subr.bf16.mxu0 0
        %4134 = vmatpush1.bf16.msra.mxu0 %v3932
        %4135 = vmatprep.subr.bf16.mxu0 0
        %4136 = vmatpush1.bf16.msra.mxu0 %v3931
        %4137 = vmatprep.subr.bf16.mxu0 0
        %4138 = vmatpush1.bf16.msra.mxu0 %v3930
        %4139 = vmatprep.subr.bf16.mxu0 0
        %4140 = vmatpush2.bf16.msra.mxu0 0
        %4141 = vmatprep.subr.bf16.mxu0 0
        %4142 = vmatpush2.bf16.msra.mxu0 0
        %4143 = vmatprep.subr.bf16.mxu0 0
        %4144 = vmatpush2.bf16.msra.mxu0 0
        %4145 = vmatprep.subr.bf16.mxu0 0
        %4146 = vmatpush2.bf16.msra.mxu0 0
        %4147 = vmatprep.subr.bf16.mxu0 0
        %4148 = vmatpush2.bf16.msra.mxu0 0
        %4149 = vmatprep.subr.bf16.mxu0 0
        %4150 = vmatpush2.bf16.msra.mxu0 0
        %4151 = vmatprep.subr.bf16.mxu0 0
        %4152 = vmatpush2.bf16.msra.mxu0 0
        %4153 = vmatprep.subr.bf16.mxu0 0
        %4154 = vmatpush2.bf16.msra.mxu0 0
        %4155 = vmatprep.mubr.bf16.mxu0 0
        %4156 = vmatmul.mubr.bf16.gmra.mxu0 %v3724
        %v4157 = vpop.f32.mrf.mxu0
        %v4158 = vadd.f32 %v3997, %v4157
        %v4159 = vpop.f32.mrf.mxu0
        %v4160 = vpop.f32.mrf.mxu0
        %v4161 = vadd.f32 %v4000, %v4160
        %v4162 = vpop.f32.mrf.mxu0
        %4163 = vmatprep.mubr.bf16.mxu0 0
        %4164 = vmatmul.mubr.bf16.gmra.mxu0 %v3727
        %v4165 = vpop.f32.mrf.mxu0
        %v4166 = vadd.f32 %v4005, %v4165
        %v4167 = vpop.f32.mrf.mxu0
        %v4168 = vpop.f32.mrf.mxu0
        %v4169 = vadd.f32 %v4008, %v4168
        %v4170 = vpop.f32.mrf.mxu0
        %4171 = vmatprep.mubr.bf16.mxu0 0
        %4172 = vmatmul.mubr.bf16.gmra.mxu0 %v3730
        %v4173 = vpop.f32.mrf.mxu0
        %v4174 = vadd.f32 %v4013, %v4173
        %v4175 = vpop.f32.mrf.mxu0
        %v4176 = vpop.f32.mrf.mxu0
        %v4177 = vadd.f32 %v4016, %v4176
        %v4178 = vpop.f32.mrf.mxu0
        %4179 = vmatprep.mubr.bf16.mxu0 0
        %4180 = vmatmul.mubr.bf16.gmra.mxu0 %v3733
        %v4181 = vpop.f32.mrf.mxu0
        %v4182 = vadd.f32 %v4021, %v4181
        %v4183 = vpop.f32.mrf.mxu0
        %v4184 = vpop.f32.mrf.mxu0
        %v4185 = vadd.f32 %v4024, %v4184
        %v4186 = vpop.f32.mrf.mxu0
        %4187 = vmatprep.mubr.bf16.mxu0 0
        %4188 = vmatmul.mubr.bf16.gmra.mxu0 %v3736
        %v4189 = vpop.f32.mrf.mxu0
        %v4190 = vadd.f32 %v4029, %v4189
        %v4191 = vpop.f32.mrf.mxu0
        %v4192 = vpop.f32.mrf.mxu0
        %v4193 = vadd.f32 %v4032, %v4192
        %v4194 = vpop.f32.mrf.mxu0
        %4195 = vmatprep.mubr.bf16.mxu0 0
        %4196 = vmatmul.mubr.bf16.gmra.mxu0 %v3739
        %v4197 = vpop.f32.mrf.mxu0
        %v4198 = vadd.f32 %v4037, %v4197
        %v4199 = vpop.f32.mrf.mxu0
        %v4200 = vpop.f32.mrf.mxu0
        %v4201 = vadd.f32 %v4040, %v4200
        %v4202 = vpop.f32.mrf.mxu0
        %4203 = vmatprep.mubr.bf16.mxu0 0
        %4204 = vmatmul.mubr.bf16.gmra.mxu0 %v3742
        %v4205 = vpop.f32.mrf.mxu0
        %v4206 = vadd.f32 %v4045, %v4205
        %v4207 = vpop.f32.mrf.mxu0
        %v4208 = vpop.f32.mrf.mxu0
        %v4209 = vadd.f32 %v4048, %v4208
        %v4210 = vpop.f32.mrf.mxu0
        %4211 = vmatprep.mubr.bf16.mxu0 0
        %4212 = vmatmul.mubr.bf16.gmra.mxu0 %v3745
        %v4213 = vpop.f32.mrf.mxu0
        %v4214 = vadd.f32 %v4053, %v4213
        %v4215 = vpop.f32.mrf.mxu0
        %v4216 = vpop.f32.mrf.mxu0
        %v4217 = vadd.f32 %v4056, %v4216
        %v4218 = vpop.f32.mrf.mxu0
        %4219 = vmatprep.mubr.bf16.mxu0 0
        %4220 = vmatmul.mubr.bf16.gmra.mxu0 %v3748
        %v4221 = vpop.f32.mrf.mxu0
        %v4222 = vadd.f32 %v4061, %v4221
        %v4223 = vpop.f32.mrf.mxu0
        %v4224 = vpop.f32.mrf.mxu0
        %v4225 = vadd.f32 %v4064, %v4224
        %v4226 = vpop.f32.mrf.mxu0
        %4227 = vmatprep.mubr.bf16.mxu0 0
        %4228 = vmatmul.mubr.bf16.gmra.mxu0 %v3751
        %v4229 = vpop.f32.mrf.mxu0
        %v4230 = vadd.f32 %v4069, %v4229
        %v4231 = vpop.f32.mrf.mxu0
        %v4232 = vpop.f32.mrf.mxu0
        %v4233 = vadd.f32 %v4072, %v4232
        %v4234 = vpop.f32.mrf.mxu0
        %4235 = vmatprep.mubr.bf16.mxu0 0
        %4236 = vmatmul.mubr.bf16.gmra.mxu0 %v3754
        %v4237 = vpop.f32.mrf.mxu0
        %v4238 = vadd.f32 %v4077, %v4237
        %v4239 = vpop.f32.mrf.mxu0
        %v4240 = vpop.f32.mrf.mxu0
        %v4241 = vadd.f32 %v4080, %v4240
        %v4242 = vpop.f32.mrf.mxu0
        %4243 = vmatprep.mubr.bf16.mxu0 0
        %4244 = vmatmul.mubr.bf16.gmra.mxu0 %v3757
        %v4245 = vpop.f32.mrf.mxu0
        %v4246 = vadd.f32 %v4085, %v4245
        %v4247 = vpop.f32.mrf.mxu0
        %v4248 = vpop.f32.mrf.mxu0
        %v4249 = vadd.f32 %v4088, %v4248
        %v4250 = vpop.f32.mrf.mxu0
        %4251 = vmatprep.mubr.bf16.mxu0 0
        %4252 = vmatmul.mubr.bf16.gmra.mxu0 %v3760
        %v4253 = vpop.f32.mrf.mxu0
        %v4254 = vadd.f32 %v4093, %v4253
        %v4255 = vpop.f32.mrf.mxu0
        %v4256 = vpop.f32.mrf.mxu0
        %v4257 = vadd.f32 %v4096, %v4256
        %v4258 = vpop.f32.mrf.mxu0
        %4259 = vmatprep.mubr.bf16.mxu0 0
        %4260 = vmatmul.mubr.bf16.gmra.mxu0 %v3763
        %v4261 = vpop.f32.mrf.mxu0
        %v4262 = vadd.f32 %v4101, %v4261
        %v4263 = vpop.f32.mrf.mxu0
        %v4264 = vpop.f32.mrf.mxu0
        %v4265 = vadd.f32 %v4104, %v4264
        %v4266 = vpop.f32.mrf.mxu0
        %4267 = vmatprep.mubr.bf16.mxu0 0
        %4268 = vmatmul.mubr.bf16.gmra.mxu0 %v3766
        %v4269 = vpop.f32.mrf.mxu0
        %v4270 = vadd.f32 %v4109, %v4269
        %v4271 = vpop.f32.mrf.mxu0
        %v4272 = vpop.f32.mrf.mxu0
        %v4273 = vadd.f32 %v4112, %v4272
        %v4274 = vpop.f32.mrf.mxu0
        %4275 = vmatprep.mubr.bf16.mxu0 0
        %4276 = vmatmul.mubr.bf16.gmra.mxu0 %v3769
        %v4277 = vpop.f32.mrf.mxu0
        %v4278 = vadd.f32 %v4117, %v4277
        %v4279 = vpop.f32.mrf.mxu0
        %v4280 = vpop.f32.mrf.mxu0
        %v4281 = vadd.f32 %v4120, %v4280
        %v4282 = vpop.f32.mrf.mxu0
        %4283 = vdwg.mxu0
        %v4284 = vpack.c.b16 %v3529, %v927
        %v4285 = vpack.c.b16 %v3530, %v928
        %v4286 = vpack.c.b16 %v3531, %v929
        %v4287 = vpack.c.b16 %v3535, %v3532
        %v4288 = vpack.c.b16 %v3536, %v3533
        %v4289 = vpack.c.b16 %v3537, %v3534
        %v4290 = vpack.c.b16 %v3541, %v3538
        %v4291 = vpack.c.b16 %v3542, %v3539
        %v4292 = vpack.c.b16 %v3543, %v3540
        %v4293 = vpack.c.b16 %v3547, %v3544
        %v4294 = vpack.c.b16 %v3548, %v3545
        %v4295 = vpack.c.b16 %v3549, %v3546
        %v4296 = vpack.c.b16 %v3550, %v927
        %v4297 = vpack.c.b16 %v3551, %v928
        %v4298 = vpack.c.b16 %v3552, %v929
        %v4299 = vpack.c.b16 %v3556, %v3553
        %v4300 = vpack.c.b16 %v3557, %v3554
        %v4301 = vpack.c.b16 %v3558, %v3555
        %v4302 = vpack.c.b16 %v3562, %v3559
        %v4303 = vpack.c.b16 %v3563, %v3560
        %v4304 = vpack.c.b16 %v3564, %v3561
        %v4305 = vpack.c.b16 %v3568, %v3565
        %v4306 = vpack.c.b16 %v3569, %v3566
        %v4307 = vpack.c.b16 %v3570, %v3567
        %v4308 = vpack.c.b16 %v3571, %v927
        %v4309 = vpack.c.b16 %v3572, %v928
        %v4310 = vpack.c.b16 %v3573, %v929
        %v4311 = vpack.c.b16 %v3577, %v3574
        %v4312 = vpack.c.b16 %v3578, %v3575
        %v4313 = vpack.c.b16 %v3579, %v3576
        %v4314 = vpack.c.b16 %v3583, %v3580
        %v4315 = vpack.c.b16 %v3584, %v3581
        %v4316 = vpack.c.b16 %v3585, %v3582
        %v4317 = vpack.c.b16 %v3589, %v3586
        %v4318 = vpack.c.b16 %v3590, %v3587
        %v4319 = vpack.c.b16 %v3591, %v3588
        %v4320 = vpack.c.b16 %v3592, %v927
        %v4321 = vpack.c.b16 %v3593, %v928
        %v4322 = vpack.c.b16 %v3594, %v929
        %v4323 = vpack.c.b16 %v3598, %v3595
        %v4324 = vpack.c.b16 %v3599, %v3596
        %v4325 = vpack.c.b16 %v3600, %v3597
        %v4326 = vpack.c.b16 %v3604, %v3601
        %v4327 = vpack.c.b16 %v3605, %v3602
        %v4328 = vpack.c.b16 %v3606, %v3603
        %v4329 = vpack.c.b16 %v3610, %v3607
        %v4330 = vpack.c.b16 %v3611, %v3608
        %v4331 = vpack.c.b16 %v3612, %v3609
        %v4428 = vunpack.c.l.b16 %v3613
        %v4429 = vunpack.c.l.b16 %v3614
        %v4430 = vunpack.c.l.b16 %v3615
        %v4431 = vunpack.c.l.b16 %v3616
        %v4432 = vunpack.c.l.b16 %v3617
        %v4433 = vunpack.c.l.b16 %v3618
        %v4434 = vunpack.c.l.b16 %v3619
        %v4435 = vunpack.c.l.b16 %v3620
        %v4436 = vunpack.c.l.b16 %v3621
        %v4437 = vunpack.c.l.b16 %v3622
        %v4438 = vunpack.c.l.b16 %v3623
        %v4439 = vunpack.c.l.b16 %v3624
        %v4440 = vunpack.c.l.b16 %v3625
        %v4441 = vunpack.c.l.b16 %v3626
        %v4442 = vunpack.c.l.b16 %v3627
        %v4443 = vunpack.c.l.b16 %v3628
        %v4444 = vunpack.c.l.b16 %v3629
        %v4445 = vunpack.c.l.b16 %v3630
        %v4446 = vunpack.c.l.b16 %v3631
        %v4447 = vunpack.c.l.b16 %v3632
        %v4448 = vunpack.c.l.b16 %v3633
        %v4449 = vunpack.c.l.b16 %v3634
        %v4450 = vunpack.c.l.b16 %v3635
        %v4451 = vunpack.c.l.b16 %v3636
        %v4452 = vunpack.c.l.b16 %v3637
        %v4453 = vunpack.c.l.b16 %v3638
        %v4454 = vunpack.c.l.b16 %v3639
        %v4455 = vunpack.c.l.b16 %v3640
        %v4456 = vunpack.c.l.b16 %v3641
        %v4457 = vunpack.c.l.b16 %v3642
        %v4458 = vunpack.c.l.b16 %v3643
        %v4459 = vunpack.c.l.b16 %v3644
        %v4460 = vunpack.c.l.b16 %v3645
        %v4461 = vunpack.c.l.b16 %v3646
        %v4462 = vunpack.c.l.b16 %v3647
        %v4463 = vunpack.c.l.b16 %v3648
        %v4464 = vunpack.c.l.b16 %v3649
        %v4465 = vunpack.c.l.b16 %v3650
        %v4466 = vunpack.c.l.b16 %v3651
        %v4467 = vunpack.c.l.b16 %v3652
        %v4468 = vunpack.c.l.b16 %v3653
        %v4469 = vunpack.c.l.b16 %v3654
        %v4470 = vunpack.c.l.b16 %v3655
        %v4471 = vunpack.c.l.b16 %v3656
        %v4472 = vunpack.c.l.b16 %v3657
        %v4473 = vunpack.c.l.b16 %v3658
        %v4474 = vunpack.c.l.b16 %v3659
        %v4475 = vunpack.c.l.b16 %v3660
        %v4476 = vpack.c.b16 %v4429, %v4428
        %v4477 = vpack.c.b16 %v4431, %v4430
        %v4478 = vpack.c.b16 %v4433, %v4432
        %v4479 = vpack.c.b16 %v4435, %v4434
        %v4480 = vpack.c.b16 %v4437, %v4436
        %v4481 = vpack.c.b16 %v4439, %v4438
        %v4482 = vpack.c.b16 %v4441, %v4440
        %v4483 = vpack.c.b16 %v4443, %v4442
        %v4484 = vpack.c.b16 %v4445, %v4444
        %v4485 = vpack.c.b16 %v4447, %v4446
        %v4486 = vpack.c.b16 %v4449, %v4448
        %v4487 = vpack.c.b16 %v4451, %v4450
        %v4488 = vpack.c.b16 %v4453, %v4452
        %v4489 = vpack.c.b16 %v4455, %v4454
        %v4490 = vpack.c.b16 %v4457, %v4456
        %v4491 = vpack.c.b16 %v4459, %v4458
        %v4492 = vpack.c.b16 %v4461, %v4460
        %v4493 = vpack.c.b16 %v4463, %v4462
        %v4494 = vpack.c.b16 %v4465, %v4464
        %v4495 = vpack.c.b16 %v4467, %v4466
        %v4496 = vpack.c.b16 %v4469, %v4468
        %v4497 = vpack.c.b16 %v4471, %v4470
        %v4498 = vpack.c.b16 %v4473, %v4472
        %v4499 = vpack.c.b16 %v4475, %v4474
        %4524 = vmatprep.subr.bf16.mxu0 0
        %4525 = vmatpush1.bf16.msra.mxu0 %v4483
        %4526 = vmatprep.subr.bf16.mxu0 0
        %4527 = vmatpush1.bf16.msra.mxu0 %v4482
        %4528 = vmatprep.subr.bf16.mxu0 0
        %4529 = vmatpush1.bf16.msra.mxu0 %v4481
        %4530 = vmatprep.subr.bf16.mxu0 0
        %4531 = vmatpush1.bf16.msra.mxu0 %v4480
        %4532 = vmatprep.subr.bf16.mxu0 0
        %4533 = vmatpush1.bf16.msra.mxu0 %v4479
        %4534 = vmatprep.subr.bf16.mxu0 0
        %4535 = vmatpush1.bf16.msra.mxu0 %v4478
        %4536 = vmatprep.subr.bf16.mxu0 0
        %4537 = vmatpush1.bf16.msra.mxu0 %v4477
        %4538 = vmatprep.subr.bf16.mxu0 0
        %4539 = vmatpush1.bf16.msra.mxu0 %v4476
        %4540 = vmatprep.subr.bf16.mxu0 0
        %4541 = vmatpush2.bf16.msra.mxu0 %v4491
        %4542 = vmatprep.subr.bf16.mxu0 0
        %4543 = vmatpush2.bf16.msra.mxu0 %v4490
        %4544 = vmatprep.subr.bf16.mxu0 0
        %4545 = vmatpush2.bf16.msra.mxu0 %v4489
        %4546 = vmatprep.subr.bf16.mxu0 0
        %4547 = vmatpush2.bf16.msra.mxu0 %v4488
        %4548 = vmatprep.subr.bf16.mxu0 0
        %4549 = vmatpush2.bf16.msra.mxu0 %v4487
        %4550 = vmatprep.subr.bf16.mxu0 0
        %4551 = vmatpush2.bf16.msra.mxu0 %v4486
        %4552 = vmatprep.subr.bf16.mxu0 0
        %4553 = vmatpush2.bf16.msra.mxu0 %v4485
        %4554 = vmatprep.subr.bf16.mxu0 0
        %4555 = vmatpush2.bf16.msra.mxu0 %v4484
        %4556 = vmatprep.mubr.bf16.mxu0 %v4285
        %4557 = vmatmul.mubr.bf16.gmra.mxu0 %v4284
        %v4558 = vpop.f32.mrf.mxu0
        %v4559 = vadd.f32 %v4158, %v4558
        %v4560 = vpop.f32.mrf.mxu0
        %v4561 = vpop.f32.mrf.mxu0
        %v4562 = vadd.f32 %v4161, %v4561
        %v4563 = vpop.f32.mrf.mxu0
        %4564 = vmatprep.mubr.bf16.mxu0 %v4288
        %4565 = vmatmul.mubr.bf16.gmra.mxu0 %v4287
        %v4566 = vpop.f32.mrf.mxu0
        %v4567 = vadd.f32 %v4166, %v4566
        %v4568 = vpop.f32.mrf.mxu0
        %v4569 = vpop.f32.mrf.mxu0
        %v4570 = vadd.f32 %v4169, %v4569
        %v4571 = vpop.f32.mrf.mxu0
        %4572 = vmatprep.mubr.bf16.mxu0 %v4291
        %4573 = vmatmul.mubr.bf16.gmra.mxu0 %v4290
        %v4574 = vpop.f32.mrf.mxu0
        %v4575 = vadd.f32 %v4174, %v4574
        %v4576 = vpop.f32.mrf.mxu0
        %v4577 = vpop.f32.mrf.mxu0
        %v4578 = vadd.f32 %v4177, %v4577
        %v4579 = vpop.f32.mrf.mxu0
        %4580 = vmatprep.mubr.bf16.mxu0 %v4294
        %4581 = vmatmul.mubr.bf16.gmra.mxu0 %v4293
        %v4582 = vpop.f32.mrf.mxu0
        %v4583 = vadd.f32 %v4182, %v4582
        %v4584 = vpop.f32.mrf.mxu0
        %v4585 = vpop.f32.mrf.mxu0
        %v4586 = vadd.f32 %v4185, %v4585
        %v4587 = vpop.f32.mrf.mxu0
        %4588 = vmatprep.mubr.bf16.mxu0 %v4297
        %4589 = vmatmul.mubr.bf16.gmra.mxu0 %v4296
        %v4590 = vpop.f32.mrf.mxu0
        %v4591 = vadd.f32 %v4190, %v4590
        %v4592 = vpop.f32.mrf.mxu0
        %v4593 = vpop.f32.mrf.mxu0
        %v4594 = vadd.f32 %v4193, %v4593
        %v4595 = vpop.f32.mrf.mxu0
        %4596 = vmatprep.mubr.bf16.mxu0 %v4300
        %4597 = vmatmul.mubr.bf16.gmra.mxu0 %v4299
        %v4598 = vpop.f32.mrf.mxu0
        %v4599 = vadd.f32 %v4198, %v4598
        %v4600 = vpop.f32.mrf.mxu0
        %v4601 = vpop.f32.mrf.mxu0
        %v4602 = vadd.f32 %v4201, %v4601
        %v4603 = vpop.f32.mrf.mxu0
        %4604 = vmatprep.mubr.bf16.mxu0 %v4303
        %4605 = vmatmul.mubr.bf16.gmra.mxu0 %v4302
        %v4606 = vpop.f32.mrf.mxu0
        %v4607 = vadd.f32 %v4206, %v4606
        %v4608 = vpop.f32.mrf.mxu0
        %v4609 = vpop.f32.mrf.mxu0
        %v4610 = vadd.f32 %v4209, %v4609
        %v4611 = vpop.f32.mrf.mxu0
        %4612 = vmatprep.mubr.bf16.mxu0 %v4306
        %4613 = vmatmul.mubr.bf16.gmra.mxu0 %v4305
        %v4614 = vpop.f32.mrf.mxu0
        %v4615 = vadd.f32 %v4214, %v4614
        %v4616 = vpop.f32.mrf.mxu0
        %v4617 = vpop.f32.mrf.mxu0
        %v4618 = vadd.f32 %v4217, %v4617
        %v4619 = vpop.f32.mrf.mxu0
        %4620 = vmatprep.mubr.bf16.mxu0 %v4309
        %4621 = vmatmul.mubr.bf16.gmra.mxu0 %v4308
        %v4622 = vpop.f32.mrf.mxu0
        %v4623 = vadd.f32 %v4222, %v4622
        %v4624 = vpop.f32.mrf.mxu0
        %v4625 = vpop.f32.mrf.mxu0
        %v4626 = vadd.f32 %v4225, %v4625
        %v4627 = vpop.f32.mrf.mxu0
        %4628 = vmatprep.mubr.bf16.mxu0 %v4312
        %4629 = vmatmul.mubr.bf16.gmra.mxu0 %v4311
        %v4630 = vpop.f32.mrf.mxu0
        %v4631 = vadd.f32 %v4230, %v4630
        %v4632 = vpop.f32.mrf.mxu0
        %v4633 = vpop.f32.mrf.mxu0
        %v4634 = vadd.f32 %v4233, %v4633
        %v4635 = vpop.f32.mrf.mxu0
        %4636 = vmatprep.mubr.bf16.mxu0 %v4315
        %4637 = vmatmul.mubr.bf16.gmra.mxu0 %v4314
        %v4638 = vpop.f32.mrf.mxu0
        %v4639 = vadd.f32 %v4238, %v4638
        %v4640 = vpop.f32.mrf.mxu0
        %v4641 = vpop.f32.mrf.mxu0
        %v4642 = vadd.f32 %v4241, %v4641
        %v4643 = vpop.f32.mrf.mxu0
        %4644 = vmatprep.mubr.bf16.mxu0 %v4318
        %4645 = vmatmul.mubr.bf16.gmra.mxu0 %v4317
        %v4646 = vpop.f32.mrf.mxu0
        %v4647 = vadd.f32 %v4246, %v4646
        %v4648 = vpop.f32.mrf.mxu0
        %v4649 = vpop.f32.mrf.mxu0
        %v4650 = vadd.f32 %v4249, %v4649
        %v4651 = vpop.f32.mrf.mxu0
        %4652 = vmatprep.mubr.bf16.mxu0 %v4321
        %4653 = vmatmul.mubr.bf16.gmra.mxu0 %v4320
        %v4654 = vpop.f32.mrf.mxu0
        %v4655 = vadd.f32 %v4254, %v4654
        %v4656 = vpop.f32.mrf.mxu0
        %v4657 = vpop.f32.mrf.mxu0
        %v4658 = vadd.f32 %v4257, %v4657
        %v4659 = vpop.f32.mrf.mxu0
        %4660 = vmatprep.mubr.bf16.mxu0 %v4324
        %4661 = vmatmul.mubr.bf16.gmra.mxu0 %v4323
        %v4662 = vpop.f32.mrf.mxu0
        %v4663 = vadd.f32 %v4262, %v4662
        %v4664 = vpop.f32.mrf.mxu0
        %v4665 = vpop.f32.mrf.mxu0
        %v4666 = vadd.f32 %v4265, %v4665
        %v4667 = vpop.f32.mrf.mxu0
        %4668 = vmatprep.mubr.bf16.mxu0 %v4327
        %4669 = vmatmul.mubr.bf16.gmra.mxu0 %v4326
        %v4670 = vpop.f32.mrf.mxu0
        %v4671 = vadd.f32 %v4270, %v4670
        %v4672 = vpop.f32.mrf.mxu0
        %v4673 = vpop.f32.mrf.mxu0
        %v4674 = vadd.f32 %v4273, %v4673
        %v4675 = vpop.f32.mrf.mxu0
        %4676 = vmatprep.mubr.bf16.mxu0 %v4330
        %4677 = vmatmul.mubr.bf16.gmra.mxu0 %v4329
        %v4678 = vpop.f32.mrf.mxu0
        %v4679 = vadd.f32 %v4278, %v4678
        %v4680 = vpop.f32.mrf.mxu0
        %v4681 = vpop.f32.mrf.mxu0
        %v4682 = vadd.f32 %v4281, %v4681
        %v4683 = vpop.f32.mrf.mxu0
        %4684 = vdwg.mxu0
        %4685 = vmatprep.subr.bf16.mxu0 0
        %4686 = vmatpush1.bf16.msra.mxu0 %v4499
        %4687 = vmatprep.subr.bf16.mxu0 0
        %4688 = vmatpush1.bf16.msra.mxu0 %v4498
        %4689 = vmatprep.subr.bf16.mxu0 0
        %4690 = vmatpush1.bf16.msra.mxu0 %v4497
        %4691 = vmatprep.subr.bf16.mxu0 0
        %4692 = vmatpush1.bf16.msra.mxu0 %v4496
        %4693 = vmatprep.subr.bf16.mxu0 0
        %4694 = vmatpush1.bf16.msra.mxu0 %v4495
        %4695 = vmatprep.subr.bf16.mxu0 0
        %4696 = vmatpush1.bf16.msra.mxu0 %v4494
        %4697 = vmatprep.subr.bf16.mxu0 0
        %4698 = vmatpush1.bf16.msra.mxu0 %v4493
        %4699 = vmatprep.subr.bf16.mxu0 0
        %4700 = vmatpush1.bf16.msra.mxu0 %v4492
        %4701 = vmatprep.subr.bf16.mxu0 0
        %4702 = vmatpush2.bf16.msra.mxu0 0
        %4703 = vmatprep.subr.bf16.mxu0 0
        %4704 = vmatpush2.bf16.msra.mxu0 0
        %4705 = vmatprep.subr.bf16.mxu0 0
        %4706 = vmatpush2.bf16.msra.mxu0 0
        %4707 = vmatprep.subr.bf16.mxu0 0
        %4708 = vmatpush2.bf16.msra.mxu0 0
        %4709 = vmatprep.subr.bf16.mxu0 0
        %4710 = vmatpush2.bf16.msra.mxu0 0
        %4711 = vmatprep.subr.bf16.mxu0 0
        %4712 = vmatpush2.bf16.msra.mxu0 0
        %4713 = vmatprep.subr.bf16.mxu0 0
        %4714 = vmatpush2.bf16.msra.mxu0 0
        %4715 = vmatprep.subr.bf16.mxu0 0
        %4716 = vmatpush2.bf16.msra.mxu0 0
        %4717 = vmatprep.mubr.bf16.mxu0 0
        %4718 = vmatmul.mubr.bf16.gmra.mxu0 %v4286
        %v4719 = vpop.f32.mrf.mxu0
        %v4720 = vadd.f32 %v4559, %v4719
        %v4721 = vpop.f32.mrf.mxu0
        %v4722 = vpop.f32.mrf.mxu0
        %v4723 = vadd.f32 %v4562, %v4722
        %v4724 = vpop.f32.mrf.mxu0
        %4725 = vmatprep.mubr.bf16.mxu0 0
        %4726 = vmatmul.mubr.bf16.gmra.mxu0 %v4289
        %v4727 = vpop.f32.mrf.mxu0
        %v4728 = vadd.f32 %v4567, %v4727
        %v4729 = vpop.f32.mrf.mxu0
        %v4730 = vpop.f32.mrf.mxu0
        %v4731 = vadd.f32 %v4570, %v4730
        %v4732 = vpop.f32.mrf.mxu0
        %4733 = vmatprep.mubr.bf16.mxu0 0
        %4734 = vmatmul.mubr.bf16.gmra.mxu0 %v4292
        %v4735 = vpop.f32.mrf.mxu0
        %v4736 = vadd.f32 %v4575, %v4735
        %v4737 = vpop.f32.mrf.mxu0
        %v4738 = vpop.f32.mrf.mxu0
        %v4739 = vadd.f32 %v4578, %v4738
        %v4740 = vpop.f32.mrf.mxu0
        %4741 = vmatprep.mubr.bf16.mxu0 0
        %4742 = vmatmul.mubr.bf16.gmra.mxu0 %v4295
        %v4743 = vpop.f32.mrf.mxu0
        %v4744 = vadd.f32 %v4583, %v4743
        %v4745 = vpop.f32.mrf.mxu0
        %v4746 = vpop.f32.mrf.mxu0
        %v4747 = vadd.f32 %v4586, %v4746
        %v4748 = vpop.f32.mrf.mxu0
        %4749 = vmatprep.mubr.bf16.mxu0 0
        %4750 = vmatmul.mubr.bf16.gmra.mxu0 %v4298
        %v4751 = vpop.f32.mrf.mxu0
        %v4752 = vadd.f32 %v4591, %v4751
        %v4753 = vpop.f32.mrf.mxu0
        %v4754 = vpop.f32.mrf.mxu0
        %v4755 = vadd.f32 %v4594, %v4754
        %v4756 = vpop.f32.mrf.mxu0
        %4757 = vmatprep.mubr.bf16.mxu0 0
        %4758 = vmatmul.mubr.bf16.gmra.mxu0 %v4301
        %v4759 = vpop.f32.mrf.mxu0
        %v4760 = vadd.f32 %v4599, %v4759
        %v4761 = vpop.f32.mrf.mxu0
        %v4762 = vpop.f32.mrf.mxu0
        %v4763 = vadd.f32 %v4602, %v4762
        %v4764 = vpop.f32.mrf.mxu0
        %4765 = vmatprep.mubr.bf16.mxu0 0
        %4766 = vmatmul.mubr.bf16.gmra.mxu0 %v4304
        %v4767 = vpop.f32.mrf.mxu0
        %v4768 = vadd.f32 %v4607, %v4767
        %v4769 = vpop.f32.mrf.mxu0
        %v4770 = vpop.f32.mrf.mxu0
        %v4771 = vadd.f32 %v4610, %v4770
        %v4772 = vpop.f32.mrf.mxu0
        %4773 = vmatprep.mubr.bf16.mxu0 0
        %4774 = vmatmul.mubr.bf16.gmra.mxu0 %v4307
        %v4775 = vpop.f32.mrf.mxu0
        %v4776 = vadd.f32 %v4615, %v4775
        %v4777 = vpop.f32.mrf.mxu0
        %v4778 = vpop.f32.mrf.mxu0
        %v4779 = vadd.f32 %v4618, %v4778
        %v4780 = vpop.f32.mrf.mxu0
        %4781 = vmatprep.mubr.bf16.mxu0 0
        %4782 = vmatmul.mubr.bf16.gmra.mxu0 %v4310
        %v4783 = vpop.f32.mrf.mxu0
        %v4784 = vadd.f32 %v4623, %v4783
        %v4785 = vpop.f32.mrf.mxu0
        %v4786 = vpop.f32.mrf.mxu0
        %v4787 = vadd.f32 %v4626, %v4786
        %v4788 = vpop.f32.mrf.mxu0
        %4789 = vmatprep.mubr.bf16.mxu0 0
        %4790 = vmatmul.mubr.bf16.gmra.mxu0 %v4313
        %v4791 = vpop.f32.mrf.mxu0
        %v4792 = vadd.f32 %v4631, %v4791
        %v4793 = vpop.f32.mrf.mxu0
        %v4794 = vpop.f32.mrf.mxu0
        %v4795 = vadd.f32 %v4634, %v4794
        %v4796 = vpop.f32.mrf.mxu0
        %4797 = vmatprep.mubr.bf16.mxu0 0
        %4798 = vmatmul.mubr.bf16.gmra.mxu0 %v4316
        %v4799 = vpop.f32.mrf.mxu0
        %v4800 = vadd.f32 %v4639, %v4799
        %v4801 = vpop.f32.mrf.mxu0
        %v4802 = vpop.f32.mrf.mxu0
        %v4803 = vadd.f32 %v4642, %v4802
        %v4804 = vpop.f32.mrf.mxu0
        %4805 = vmatprep.mubr.bf16.mxu0 0
        %4806 = vmatmul.mubr.bf16.gmra.mxu0 %v4319
        %v4807 = vpop.f32.mrf.mxu0
        %v4808 = vadd.f32 %v4647, %v4807
        %v4809 = vpop.f32.mrf.mxu0
        %v4810 = vpop.f32.mrf.mxu0
        %v4811 = vadd.f32 %v4650, %v4810
        %v4812 = vpop.f32.mrf.mxu0
        %4813 = vmatprep.mubr.bf16.mxu0 0
        %4814 = vmatmul.mubr.bf16.gmra.mxu0 %v4322
        %v4815 = vpop.f32.mrf.mxu0
        %v4816 = vadd.f32 %v4655, %v4815
        %v4817 = vpop.f32.mrf.mxu0
        %v4818 = vpop.f32.mrf.mxu0
        %v4819 = vadd.f32 %v4658, %v4818
        %v4820 = vpop.f32.mrf.mxu0
        %4821 = vmatprep.mubr.bf16.mxu0 0
        %4822 = vmatmul.mubr.bf16.gmra.mxu0 %v4325
        %v4823 = vpop.f32.mrf.mxu0
        %v4824 = vadd.f32 %v4663, %v4823
        %v4825 = vpop.f32.mrf.mxu0
        %v4826 = vpop.f32.mrf.mxu0
        %v4827 = vadd.f32 %v4666, %v4826
        %v4828 = vpop.f32.mrf.mxu0
        %4829 = vmatprep.mubr.bf16.mxu0 0
        %4830 = vmatmul.mubr.bf16.gmra.mxu0 %v4328
        %v4831 = vpop.f32.mrf.mxu0
        %v4832 = vadd.f32 %v4671, %v4831
        %v4833 = vpop.f32.mrf.mxu0
        %v4834 = vpop.f32.mrf.mxu0
        %v4835 = vadd.f32 %v4674, %v4834
        %v4836 = vpop.f32.mrf.mxu0
        %4837 = vmatprep.mubr.bf16.mxu0 0
        %4838 = vmatmul.mubr.bf16.gmra.mxu0 %v4331
        %v4839 = vpop.f32.mrf.mxu0
        %v4840 = vadd.f32 %v4679, %v4839
        %v4841 = vpop.f32.mrf.mxu0
        %v4842 = vpop.f32.mrf.mxu0
        %v4843 = vadd.f32 %v4682, %v4842
        %v4844 = vpop.f32.mrf.mxu0
        %4845 = vdwg.mxu0
        %s4846 = scalar_lea.vmem %s2, 384
        %v4847 = vld [vmem:[%s4846] sm:$0xf]
        %v4848 = vld [vmem:[%s4846 + $0x4] sm:$0xf]
        %v4849 = vld [vmem:[%s4846 + $0x8] sm:$0xf]
        %v4850 = vld [vmem:[%s4846 + $0xc] sm:$0xf]
        %v4851 = vld [vmem:[%s4846 + $0x10] sm:$0xf]
        %v4852 = vld [vmem:[%s4846 + $0x14] sm:$0xf]
        %v4853 = vld [vmem:[%s4846 + $0x18] sm:$0xf]
        %v4854 = vld [vmem:[%s4846 + $0x1c] sm:$0xf]
        %v4855 = vld [vmem:[%s4846 + $0x20] sm:$0xf]
        %v4856 = vld [vmem:[%s4846 + $0x24] sm:$0xf]
        %v4857 = vld [vmem:[%s4846 + $0x28] sm:$0xf]
        %v4858 = vld [vmem:[%s4846 + $0x2c] sm:$0xf]
        %v4859 = vld [vmem:[%s4846 + $0x30] sm:$0xf]
        %v4860 = vld [vmem:[%s4846 + $0x34] sm:$0xf]
        %v4861 = vld [vmem:[%s4846 + $0x38] sm:$0xf]
        %v4862 = vld [vmem:[%s4846 + $0x3c] sm:$0xf]
        %v4863 = vld [vmem:[%s4846 + $0x40] sm:$0xf]
        %v4864 = vld [vmem:[%s4846 + $0x44] sm:$0xf]
        %v4865 = vld [vmem:[%s4846 + $0x48] sm:$0xf]
        %v4866 = vld [vmem:[%s4846 + $0x4c] sm:$0xf]
        %v4867 = vld [vmem:[%s4846 + $0x50] sm:$0xf]
        %v4868 = vld [vmem:[%s4846 + $0x54] sm:$0xf]
        %v4869 = vld [vmem:[%s4846 + $0x58] sm:$0xf]
        %v4870 = vld [vmem:[%s4846 + $0x5c] sm:$0xf]
        %v4871 = vld [vmem:[%s4846 + $0x60] sm:$0xf]
        %v4872 = vld [vmem:[%s4846 + $0x64] sm:$0xf]
        %v4873 = vld [vmem:[%s4846 + $0x68] sm:$0xf]
        %v4874 = vld [vmem:[%s4846 + $0x6c] sm:$0xf]
        %v4875 = vld [vmem:[%s4846 + $0x70] sm:$0xf]
        %v4876 = vld [vmem:[%s4846 + $0x74] sm:$0xf]
        %v4877 = vld [vmem:[%s4846 + $0x78] sm:$0xf]
        %v4878 = vld [vmem:[%s4846 + $0x7c] sm:$0xf]
        %v4879 = vld [vmem:[%s4846 + $0x80] sm:$0xf]
        %v4880 = vld [vmem:[%s4846 + $0x84] sm:$0xf]
        %v4881 = vld [vmem:[%s4846 + $0x88] sm:$0xf]
        %v4882 = vld [vmem:[%s4846 + $0x8c] sm:$0xf]
        %v4883 = vld [vmem:[%s4846 + $0x90] sm:$0xf]
        %v4884 = vld [vmem:[%s4846 + $0x94] sm:$0xf]
        %v4885 = vld [vmem:[%s4846 + $0x98] sm:$0xf]
        %v4886 = vld [vmem:[%s4846 + $0x9c] sm:$0xf]
        %v4887 = vld [vmem:[%s4846 + $0xa0] sm:$0xf]
        %v4888 = vld [vmem:[%s4846 + $0xa4] sm:$0xf]
        %v4889 = vld [vmem:[%s4846 + $0xa8] sm:$0xf]
        %v4890 = vld [vmem:[%s4846 + $0xac] sm:$0xf]
        %v4891 = vld [vmem:[%s4846 + $0xb0] sm:$0xf]
        %v4892 = vld [vmem:[%s4846 + $0xb4] sm:$0xf]
        %v4893 = vld [vmem:[%s4846 + $0xb8] sm:$0xf]
        %v4894 = vld [vmem:[%s4846 + $0xbc] sm:$0xf]
        %v4895 = vpack.c.b16 %v927, %v3661
        %v4896 = vpack.c.b16 %v928, %v3662
        %v4897 = vpack.c.b16 %v929, %v3663
        %v4898 = vpack.c.b16 %v927, %v3664
        %v4899 = vpack.c.b16 %v928, %v3665
        %v4900 = vpack.c.b16 %v929, %v3666
        %v4901 = vpack.c.b16 %v927, %v3667
        %v4902 = vpack.c.b16 %v928, %v3668
        %v4903 = vpack.c.b16 %v929, %v3669
        %v4904 = vpack.c.b16 %v927, %v3670
        %v4905 = vpack.c.b16 %v928, %v3671
        %v4906 = vpack.c.b16 %v929, %v3672
        %v4967 = vunpack.c.l.b16 %v4847
        %v4968 = vunpack.c.l.b16 %v4848
        %v4969 = vunpack.c.l.b16 %v4849
        %v4970 = vunpack.c.l.b16 %v4850
        %v4971 = vunpack.c.l.b16 %v4851
        %v4972 = vunpack.c.l.b16 %v4852
        %v4973 = vunpack.c.l.b16 %v4853
        %v4974 = vunpack.c.l.b16 %v4854
        %v4975 = vunpack.c.l.b16 %v4855
        %v4976 = vunpack.c.l.b16 %v4856
        %v4977 = vunpack.c.l.b16 %v4857
        %v4978 = vunpack.c.l.b16 %v4858
        %v4979 = vunpack.c.l.b16 %v4859
        %v4980 = vunpack.c.l.b16 %v4860
        %v4981 = vunpack.c.l.b16 %v4861
        %v4982 = vunpack.c.l.b16 %v4862
        %v4983 = vunpack.c.l.b16 %v4863
        %v4984 = vunpack.c.l.b16 %v4864
        %v4985 = vunpack.c.l.b16 %v4865
        %v4986 = vunpack.c.l.b16 %v4866
        %v4987 = vunpack.c.l.b16 %v4867
        %v4988 = vunpack.c.l.b16 %v4868
        %v4989 = vunpack.c.l.b16 %v4869
        %v4990 = vunpack.c.l.b16 %v4870
        %v4991 = vunpack.c.l.b16 %v4871
        %v4992 = vunpack.c.l.b16 %v4872
        %v4993 = vunpack.c.l.b16 %v4873
        %v4994 = vunpack.c.l.b16 %v4874
        %v4995 = vunpack.c.l.b16 %v4875
        %v4996 = vunpack.c.l.b16 %v4876
        %v4997 = vunpack.c.l.b16 %v4877
        %v4998 = vunpack.c.l.b16 %v4878
        %v4999 = vunpack.c.l.b16 %v4879
        %v5000 = vunpack.c.l.b16 %v4880
        %v5001 = vunpack.c.l.b16 %v4881
        %v5002 = vunpack.c.l.b16 %v4882
        %v5003 = vunpack.c.l.b16 %v4883
        %v5004 = vunpack.c.l.b16 %v4884
        %v5005 = vunpack.c.l.b16 %v4885
        %v5006 = vunpack.c.l.b16 %v4886
        %v5007 = vunpack.c.l.b16 %v4887
        %v5008 = vunpack.c.l.b16 %v4888
        %v5009 = vunpack.c.l.b16 %v4889
        %v5010 = vunpack.c.l.b16 %v4890
        %v5011 = vunpack.c.l.b16 %v4891
        %v5012 = vunpack.c.l.b16 %v4892
        %v5013 = vunpack.c.l.b16 %v4893
        %v5014 = vunpack.c.l.b16 %v4894
        %v5015 = vpack.c.b16 %v4968, %v4967
        %v5016 = vpack.c.b16 %v4970, %v4969
        %v5017 = vpack.c.b16 %v4972, %v4971
        %v5018 = vpack.c.b16 %v4974, %v4973
        %v5019 = vpack.c.b16 %v4976, %v4975
        %v5020 = vpack.c.b16 %v4978, %v4977
        %v5021 = vpack.c.b16 %v4980, %v4979
        %v5022 = vpack.c.b16 %v4982, %v4981
        %v5023 = vpack.c.b16 %v4984, %v4983
        %v5024 = vpack.c.b16 %v4986, %v4985
        %v5025 = vpack.c.b16 %v4988, %v4987
        %v5026 = vpack.c.b16 %v4990, %v4989
        %v5027 = vpack.c.b16 %v4992, %v4991
        %v5028 = vpack.c.b16 %v4994, %v4993
        %v5029 = vpack.c.b16 %v4996, %v4995
        %v5030 = vpack.c.b16 %v4998, %v4997
        %v5031 = vpack.c.b16 %v5000, %v4999
        %v5032 = vpack.c.b16 %v5002, %v5001
        %v5033 = vpack.c.b16 %v5004, %v5003
        %v5034 = vpack.c.b16 %v5006, %v5005
        %v5035 = vpack.c.b16 %v5008, %v5007
        %v5036 = vpack.c.b16 %v5010, %v5009
        %v5037 = vpack.c.b16 %v5012, %v5011
        %v5038 = vpack.c.b16 %v5014, %v5013
        %5063 = vmatprep.subr.bf16.mxu0 0
        %5064 = vmatpush1.bf16.msra.mxu0 %v5022
        %5065 = vmatprep.subr.bf16.mxu0 0
        %5066 = vmatpush1.bf16.msra.mxu0 %v5021
        %5067 = vmatprep.subr.bf16.mxu0 0
        %5068 = vmatpush1.bf16.msra.mxu0 %v5020
        %5069 = vmatprep.subr.bf16.mxu0 0
        %5070 = vmatpush1.bf16.msra.mxu0 %v5019
        %5071 = vmatprep.subr.bf16.mxu0 0
        %5072 = vmatpush1.bf16.msra.mxu0 %v5018
        %5073 = vmatprep.subr.bf16.mxu0 0
        %5074 = vmatpush1.bf16.msra.mxu0 %v5017
        %5075 = vmatprep.subr.bf16.mxu0 0
        %5076 = vmatpush1.bf16.msra.mxu0 %v5016
        %5077 = vmatprep.subr.bf16.mxu0 0
        %5078 = vmatpush1.bf16.msra.mxu0 %v5015
        %5079 = vmatprep.subr.bf16.mxu0 0
        %5080 = vmatpush2.bf16.msra.mxu0 %v5030
        %5081 = vmatprep.subr.bf16.mxu0 0
        %5082 = vmatpush2.bf16.msra.mxu0 %v5029
        %5083 = vmatprep.subr.bf16.mxu0 0
        %5084 = vmatpush2.bf16.msra.mxu0 %v5028
        %5085 = vmatprep.subr.bf16.mxu0 0
        %5086 = vmatpush2.bf16.msra.mxu0 %v5027
        %5087 = vmatprep.subr.bf16.mxu0 0
        %5088 = vmatpush2.bf16.msra.mxu0 %v5026
        %5089 = vmatprep.subr.bf16.mxu0 0
        %5090 = vmatpush2.bf16.msra.mxu0 %v5025
        %5091 = vmatprep.subr.bf16.mxu0 0
        %5092 = vmatpush2.bf16.msra.mxu0 %v5024
        %5093 = vmatprep.subr.bf16.mxu0 0
        %5094 = vmatpush2.bf16.msra.mxu0 %v5023
        %5095 = vmatprep.mubr.bf16.mxu0 %v4288
        %5096 = vmatmul.mubr.bf16.gmra.mxu0 %v4287
        %v5097 = vpop.f32.mrf.mxu0
        %v5098 = vadd.f32 0.0, %v5097
        %v5099 = vpop.f32.mrf.mxu0
        %v5100 = vpop.f32.mrf.mxu0
        %v5101 = vadd.f32 0.0, %v5100
        %v5102 = vpop.f32.mrf.mxu0
        %5103 = vmatprep.mubr.bf16.mxu0 %v4291
        %5104 = vmatmul.mubr.bf16.gmra.mxu0 %v4290
        %v5105 = vpop.f32.mrf.mxu0
        %v5106 = vadd.f32 0.0, %v5105
        %v5107 = vpop.f32.mrf.mxu0
        %v5108 = vpop.f32.mrf.mxu0
        %v5109 = vadd.f32 0.0, %v5108
        %v5110 = vpop.f32.mrf.mxu0
        %5111 = vmatprep.mubr.bf16.mxu0 %v4294
        %5112 = vmatmul.mubr.bf16.gmra.mxu0 %v4293
        %v5113 = vpop.f32.mrf.mxu0
        %v5114 = vadd.f32 0.0, %v5113
        %v5115 = vpop.f32.mrf.mxu0
        %v5116 = vpop.f32.mrf.mxu0
        %v5117 = vadd.f32 0.0, %v5116
        %v5118 = vpop.f32.mrf.mxu0
        %5119 = vmatprep.mubr.bf16.mxu0 %v4896
        %5120 = vmatmul.mubr.bf16.gmra.mxu0 %v4895
        %v5121 = vpop.f32.mrf.mxu0
        %v5122 = vadd.f32 0.0, %v5121
        %v5123 = vpop.f32.mrf.mxu0
        %v5124 = vpop.f32.mrf.mxu0
        %v5125 = vadd.f32 0.0, %v5124
        %v5126 = vpop.f32.mrf.mxu0
        %5127 = vmatprep.mubr.bf16.mxu0 %v4300
        %5128 = vmatmul.mubr.bf16.gmra.mxu0 %v4299
        %v5129 = vpop.f32.mrf.mxu0
        %v5130 = vadd.f32 0.0, %v5129
        %v5131 = vpop.f32.mrf.mxu0
        %v5132 = vpop.f32.mrf.mxu0
        %v5133 = vadd.f32 0.0, %v5132
        %v5134 = vpop.f32.mrf.mxu0
        %5135 = vmatprep.mubr.bf16.mxu0 %v4303
        %5136 = vmatmul.mubr.bf16.gmra.mxu0 %v4302
        %v5137 = vpop.f32.mrf.mxu0
        %v5138 = vadd.f32 0.0, %v5137
        %v5139 = vpop.f32.mrf.mxu0
        %v5140 = vpop.f32.mrf.mxu0
        %v5141 = vadd.f32 0.0, %v5140
        %v5142 = vpop.f32.mrf.mxu0
        %5143 = vmatprep.mubr.bf16.mxu0 %v4306
        %5144 = vmatmul.mubr.bf16.gmra.mxu0 %v4305
        %v5145 = vpop.f32.mrf.mxu0
        %v5146 = vadd.f32 0.0, %v5145
        %v5147 = vpop.f32.mrf.mxu0
        %v5148 = vpop.f32.mrf.mxu0
        %v5149 = vadd.f32 0.0, %v5148
        %v5150 = vpop.f32.mrf.mxu0
        %5151 = vmatprep.mubr.bf16.mxu0 %v4899
        %5152 = vmatmul.mubr.bf16.gmra.mxu0 %v4898
        %v5153 = vpop.f32.mrf.mxu0
        %v5154 = vadd.f32 0.0, %v5153
        %v5155 = vpop.f32.mrf.mxu0
        %v5156 = vpop.f32.mrf.mxu0
        %v5157 = vadd.f32 0.0, %v5156
        %v5158 = vpop.f32.mrf.mxu0
        %5159 = vmatprep.mubr.bf16.mxu0 %v4312
        %5160 = vmatmul.mubr.bf16.gmra.mxu0 %v4311
        %v5161 = vpop.f32.mrf.mxu0
        %v5162 = vadd.f32 0.0, %v5161
        %v5163 = vpop.f32.mrf.mxu0
        %v5164 = vpop.f32.mrf.mxu0
        %v5165 = vadd.f32 0.0, %v5164
        %v5166 = vpop.f32.mrf.mxu0
        %5167 = vmatprep.mubr.bf16.mxu0 %v4315
        %5168 = vmatmul.mubr.bf16.gmra.mxu0 %v4314
        %v5169 = vpop.f32.mrf.mxu0
        %v5170 = vadd.f32 0.0, %v5169
        %v5171 = vpop.f32.mrf.mxu0
        %v5172 = vpop.f32.mrf.mxu0
        %v5173 = vadd.f32 0.0, %v5172
        %v5174 = vpop.f32.mrf.mxu0
        %5175 = vmatprep.mubr.bf16.mxu0 %v4318
        %5176 = vmatmul.mubr.bf16.gmra.mxu0 %v4317
        %v5177 = vpop.f32.mrf.mxu0
        %v5178 = vadd.f32 0.0, %v5177
        %v5179 = vpop.f32.mrf.mxu0
        %v5180 = vpop.f32.mrf.mxu0
        %v5181 = vadd.f32 0.0, %v5180
        %v5182 = vpop.f32.mrf.mxu0
        %5183 = vmatprep.mubr.bf16.mxu0 %v4902
        %5184 = vmatmul.mubr.bf16.gmra.mxu0 %v4901
        %v5185 = vpop.f32.mrf.mxu0
        %v5186 = vadd.f32 0.0, %v5185
        %v5187 = vpop.f32.mrf.mxu0
        %v5188 = vpop.f32.mrf.mxu0
        %v5189 = vadd.f32 0.0, %v5188
        %v5190 = vpop.f32.mrf.mxu0
        %5191 = vmatprep.mubr.bf16.mxu0 %v4324
        %5192 = vmatmul.mubr.bf16.gmra.mxu0 %v4323
        %v5193 = vpop.f32.mrf.mxu0
        %v5194 = vadd.f32 0.0, %v5193
        %v5195 = vpop.f32.mrf.mxu0
        %v5196 = vpop.f32.mrf.mxu0
        %v5197 = vadd.f32 0.0, %v5196
        %v5198 = vpop.f32.mrf.mxu0
        %5199 = vmatprep.mubr.bf16.mxu0 %v4327
        %5200 = vmatmul.mubr.bf16.gmra.mxu0 %v4326
        %v5201 = vpop.f32.mrf.mxu0
        %v5202 = vadd.f32 0.0, %v5201
        %v5203 = vpop.f32.mrf.mxu0
        %v5204 = vpop.f32.mrf.mxu0
        %v5205 = vadd.f32 0.0, %v5204
        %v5206 = vpop.f32.mrf.mxu0
        %5207 = vmatprep.mubr.bf16.mxu0 %v4330
        %5208 = vmatmul.mubr.bf16.gmra.mxu0 %v4329
        %v5209 = vpop.f32.mrf.mxu0
        %v5210 = vadd.f32 0.0, %v5209
        %v5211 = vpop.f32.mrf.mxu0
        %v5212 = vpop.f32.mrf.mxu0
        %v5213 = vadd.f32 0.0, %v5212
        %v5214 = vpop.f32.mrf.mxu0
        %5215 = vmatprep.mubr.bf16.mxu0 %v4905
        %5216 = vmatmul.mubr.bf16.gmra.mxu0 %v4904
        %v5217 = vpop.f32.mrf.mxu0
        %v5218 = vadd.f32 0.0, %v5217
        %v5219 = vpop.f32.mrf.mxu0
        %v5220 = vpop.f32.mrf.mxu0
        %v5221 = vadd.f32 0.0, %v5220
        %v5222 = vpop.f32.mrf.mxu0
        %5223 = vdwg.mxu0
        %5224 = vmatprep.subr.bf16.mxu0 0
        %5225 = vmatpush1.bf16.msra.mxu0 %v5038
        %5226 = vmatprep.subr.bf16.mxu0 0
        %5227 = vmatpush1.bf16.msra.mxu0 %v5037
        %5228 = vmatprep.subr.bf16.mxu0 0
        %5229 = vmatpush1.bf16.msra.mxu0 %v5036
        %5230 = vmatprep.subr.bf16.mxu0 0
        %5231 = vmatpush1.bf16.msra.mxu0 %v5035
        %5232 = vmatprep.subr.bf16.mxu0 0
        %5233 = vmatpush1.bf16.msra.mxu0 %v5034
        %5234 = vmatprep.subr.bf16.mxu0 0
        %5235 = vmatpush1.bf16.msra.mxu0 %v5033
        %5236 = vmatprep.subr.bf16.mxu0 0
        %5237 = vmatpush1.bf16.msra.mxu0 %v5032
        %5238 = vmatprep.subr.bf16.mxu0 0
        %5239 = vmatpush1.bf16.msra.mxu0 %v5031
        %5240 = vmatprep.subr.bf16.mxu0 0
        %5241 = vmatpush2.bf16.msra.mxu0 0
        %5242 = vmatprep.subr.bf16.mxu0 0
        %5243 = vmatpush2.bf16.msra.mxu0 0
        %5244 = vmatprep.subr.bf16.mxu0 0
        %5245 = vmatpush2.bf16.msra.mxu0 0
        %5246 = vmatprep.subr.bf16.mxu0 0
        %5247 = vmatpush2.bf16.msra.mxu0 0
        %5248 = vmatprep.subr.bf16.mxu0 0
        %5249 = vmatpush2.bf16.msra.mxu0 0
        %5250 = vmatprep.subr.bf16.mxu0 0
        %5251 = vmatpush2.bf16.msra.mxu0 0
        %5252 = vmatprep.subr.bf16.mxu0 0
        %5253 = vmatpush2.bf16.msra.mxu0 0
        %5254 = vmatprep.subr.bf16.mxu0 0
        %5255 = vmatpush2.bf16.msra.mxu0 0
        %5256 = vmatprep.mubr.bf16.mxu0 0
        %5257 = vmatmul.mubr.bf16.gmra.mxu0 %v4289
        %v5258 = vpop.f32.mrf.mxu0
        %v5259 = vadd.f32 %v5098, %v5258
        %v5260 = vpop.f32.mrf.mxu0
        %v5261 = vpop.f32.mrf.mxu0
        %v5262 = vadd.f32 %v5101, %v5261
        %v5263 = vpop.f32.mrf.mxu0
        %5264 = vmatprep.mubr.bf16.mxu0 0
        %5265 = vmatmul.mubr.bf16.gmra.mxu0 %v4292
        %v5266 = vpop.f32.mrf.mxu0
        %v5267 = vadd.f32 %v5106, %v5266
        %v5268 = vpop.f32.mrf.mxu0
        %v5269 = vpop.f32.mrf.mxu0
        %v5270 = vadd.f32 %v5109, %v5269
        %v5271 = vpop.f32.mrf.mxu0
        %5272 = vmatprep.mubr.bf16.mxu0 0
        %5273 = vmatmul.mubr.bf16.gmra.mxu0 %v4295
        %v5274 = vpop.f32.mrf.mxu0
        %v5275 = vadd.f32 %v5114, %v5274
        %v5276 = vpop.f32.mrf.mxu0
        %v5277 = vpop.f32.mrf.mxu0
        %v5278 = vadd.f32 %v5117, %v5277
        %v5279 = vpop.f32.mrf.mxu0
        %5280 = vmatprep.mubr.bf16.mxu0 0
        %5281 = vmatmul.mubr.bf16.gmra.mxu0 %v4897
        %v5282 = vpop.f32.mrf.mxu0
        %v5283 = vadd.f32 %v5122, %v5282
        %v5284 = vpop.f32.mrf.mxu0
        %v5285 = vpop.f32.mrf.mxu0
        %v5286 = vadd.f32 %v5125, %v5285
        %v5287 = vpop.f32.mrf.mxu0
        %5288 = vmatprep.mubr.bf16.mxu0 0
        %5289 = vmatmul.mubr.bf16.gmra.mxu0 %v4301
        %v5290 = vpop.f32.mrf.mxu0
        %v5291 = vadd.f32 %v5130, %v5290
        %v5292 = vpop.f32.mrf.mxu0
        %v5293 = vpop.f32.mrf.mxu0
        %v5294 = vadd.f32 %v5133, %v5293
        %v5295 = vpop.f32.mrf.mxu0
        %5296 = vmatprep.mubr.bf16.mxu0 0
        %5297 = vmatmul.mubr.bf16.gmra.mxu0 %v4304
        %v5298 = vpop.f32.mrf.mxu0
        %v5299 = vadd.f32 %v5138, %v5298
        %v5300 = vpop.f32.mrf.mxu0
        %v5301 = vpop.f32.mrf.mxu0
        %v5302 = vadd.f32 %v5141, %v5301
        %v5303 = vpop.f32.mrf.mxu0
        %5304 = vmatprep.mubr.bf16.mxu0 0
        %5305 = vmatmul.mubr.bf16.gmra.mxu0 %v4307
        %v5306 = vpop.f32.mrf.mxu0
        %v5307 = vadd.f32 %v5146, %v5306
        %v5308 = vpop.f32.mrf.mxu0
        %v5309 = vpop.f32.mrf.mxu0
        %v5310 = vadd.f32 %v5149, %v5309
        %v5311 = vpop.f32.mrf.mxu0
        %5312 = vmatprep.mubr.bf16.mxu0 0
        %5313 = vmatmul.mubr.bf16.gmra.mxu0 %v4900
        %v5314 = vpop.f32.mrf.mxu0
        %v5315 = vadd.f32 %v5154, %v5314
        %v5316 = vpop.f32.mrf.mxu0
        %v5317 = vpop.f32.mrf.mxu0
        %v5318 = vadd.f32 %v5157, %v5317
        %v5319 = vpop.f32.mrf.mxu0
        %5320 = vmatprep.mubr.bf16.mxu0 0
        %5321 = vmatmul.mubr.bf16.gmra.mxu0 %v4313
        %v5322 = vpop.f32.mrf.mxu0
        %v5323 = vadd.f32 %v5162, %v5322
        %v5324 = vpop.f32.mrf.mxu0
        %v5325 = vpop.f32.mrf.mxu0
        %v5326 = vadd.f32 %v5165, %v5325
        %v5327 = vpop.f32.mrf.mxu0
        %5328 = vmatprep.mubr.bf16.mxu0 0
        %5329 = vmatmul.mubr.bf16.gmra.mxu0 %v4316
        %v5330 = vpop.f32.mrf.mxu0
        %v5331 = vadd.f32 %v5170, %v5330
        %v5332 = vpop.f32.mrf.mxu0
        %v5333 = vpop.f32.mrf.mxu0
        %v5334 = vadd.f32 %v5173, %v5333
        %v5335 = vpop.f32.mrf.mxu0
        %5336 = vmatprep.mubr.bf16.mxu0 0
        %5337 = vmatmul.mubr.bf16.gmra.mxu0 %v4319
        %v5338 = vpop.f32.mrf.mxu0
        %v5339 = vadd.f32 %v5178, %v5338
        %v5340 = vpop.f32.mrf.mxu0
        %v5341 = vpop.f32.mrf.mxu0
        %v5342 = vadd.f32 %v5181, %v5341
        %v5343 = vpop.f32.mrf.mxu0
        %5344 = vmatprep.mubr.bf16.mxu0 0
        %5345 = vmatmul.mubr.bf16.gmra.mxu0 %v4903
        %v5346 = vpop.f32.mrf.mxu0
        %v5347 = vadd.f32 %v5186, %v5346
        %v5348 = vpop.f32.mrf.mxu0
        %v5349 = vpop.f32.mrf.mxu0
        %v5350 = vadd.f32 %v5189, %v5349
        %v5351 = vpop.f32.mrf.mxu0
        %5352 = vmatprep.mubr.bf16.mxu0 0
        %5353 = vmatmul.mubr.bf16.gmra.mxu0 %v4325
        %v5354 = vpop.f32.mrf.mxu0
        %v5355 = vadd.f32 %v5194, %v5354
        %v5356 = vpop.f32.mrf.mxu0
        %v5357 = vpop.f32.mrf.mxu0
        %v5358 = vadd.f32 %v5197, %v5357
        %v5359 = vpop.f32.mrf.mxu0
        %5360 = vmatprep.mubr.bf16.mxu0 0
        %5361 = vmatmul.mubr.bf16.gmra.mxu0 %v4328
        %v5362 = vpop.f32.mrf.mxu0
        %v5363 = vadd.f32 %v5202, %v5362
        %v5364 = vpop.f32.mrf.mxu0
        %v5365 = vpop.f32.mrf.mxu0
        %v5366 = vadd.f32 %v5205, %v5365
        %v5367 = vpop.f32.mrf.mxu0
        %5368 = vmatprep.mubr.bf16.mxu0 0
        %5369 = vmatmul.mubr.bf16.gmra.mxu0 %v4331
        %v5370 = vpop.f32.mrf.mxu0
        %v5371 = vadd.f32 %v5210, %v5370
        %v5372 = vpop.f32.mrf.mxu0
        %v5373 = vpop.f32.mrf.mxu0
        %v5374 = vadd.f32 %v5213, %v5373
        %v5375 = vpop.f32.mrf.mxu0
        %5376 = vmatprep.mubr.bf16.mxu0 0
        %5377 = vmatmul.mubr.bf16.gmra.mxu0 %v4906
        %v5378 = vpop.f32.mrf.mxu0
        %v5379 = vadd.f32 %v5218, %v5378
        %v5380 = vpop.f32.mrf.mxu0
        %v5381 = vpop.f32.mrf.mxu0
        %v5382 = vadd.f32 %v5221, %v5381
        %v5383 = vpop.f32.mrf.mxu0
        %5384 = vdwg.mxu0
        %v5385 = vadd.f32 %v4720, %v5259
        %v5386 = vadd.f32 %v4723, %v5262
        %v5387 = vadd.f32 %v4728, %v5267
        %v5388 = vadd.f32 %v4731, %v5270
        %v5389 = vadd.f32 %v4736, %v5275
        %v5390 = vadd.f32 %v4739, %v5278
        %v5391 = vadd.f32 %v4744, %v5283
        %v5392 = vadd.f32 %v4747, %v5286
        %v5393 = vadd.f32 %v4752, %v5291
        %v5394 = vadd.f32 %v4755, %v5294
        %v5395 = vadd.f32 %v4760, %v5299
        %v5396 = vadd.f32 %v4763, %v5302
        %v5397 = vadd.f32 %v4768, %v5307
        %v5398 = vadd.f32 %v4771, %v5310
        %v5399 = vadd.f32 %v4776, %v5315
        %v5400 = vadd.f32 %v4779, %v5318
        %v5401 = vadd.f32 %v4784, %v5323
        %v5402 = vadd.f32 %v4787, %v5326
        %v5403 = vadd.f32 %v4792, %v5331
        %v5404 = vadd.f32 %v4795, %v5334
        %v5405 = vadd.f32 %v4800, %v5339
        %v5406 = vadd.f32 %v4803, %v5342
        %v5407 = vadd.f32 %v4808, %v5347
        %v5408 = vadd.f32 %v4811, %v5350
        %v5409 = vadd.f32 %v4816, %v5355
        %v5410 = vadd.f32 %v4819, %v5358
        %v5411 = vadd.f32 %v4824, %v5363
        %v5412 = vadd.f32 %v4827, %v5366
        %v5413 = vadd.f32 %v4832, %v5371
        %v5414 = vadd.f32 %v4835, %v5374
        %v5415 = vadd.f32 %v4840, %v5379
        %v5416 = vadd.f32 %v4843, %v5382
        %v5417 = vld [vmem:[%s4] sm:$0x1]
        %v5419 = vlaneseq
        %v5420 = vshrl.u32 %v5419, 7
        %v5421 = vsub.s32 0, %v5420
        %v5422 = vrot.slane %v5417, %v5421
        %v5424 = vadd.f32 %v5385, %v5422
        %v5425 = vadd.f32 %v5386, %v5422
        %v5426 = vadd.f32 %v5387, %v5422
        %v5427 = vadd.f32 %v5388, %v5422
        %v5428 = vadd.f32 %v5389, %v5422
        %v5429 = vadd.f32 %v5390, %v5422
        %v5430 = vadd.f32 %v5391, %v5422
        %v5431 = vadd.f32 %v5392, %v5422
        %v5432 = vadd.f32 %v5393, %v5422
        %v5433 = vadd.f32 %v5394, %v5422
        %v5434 = vadd.f32 %v5395, %v5422
        %v5435 = vadd.f32 %v5396, %v5422
        %v5436 = vadd.f32 %v5397, %v5422
        %v5437 = vadd.f32 %v5398, %v5422
        %v5438 = vadd.f32 %v5399, %v5422
        %v5439 = vadd.f32 %v5400, %v5422
        %v5440 = vadd.f32 %v5401, %v5422
        %v5441 = vadd.f32 %v5402, %v5422
        %v5442 = vadd.f32 %v5403, %v5422
        %v5443 = vadd.f32 %v5404, %v5422
        %v5444 = vadd.f32 %v5405, %v5422
        %v5445 = vadd.f32 %v5406, %v5422
        %v5446 = vadd.f32 %v5407, %v5422
        %v5447 = vadd.f32 %v5408, %v5422
        %v5448 = vadd.f32 %v5409, %v5422
        %v5449 = vadd.f32 %v5410, %v5422
        %v5450 = vadd.f32 %v5411, %v5422
        %v5451 = vadd.f32 %v5412, %v5422
        %v5452 = vadd.f32 %v5413, %v5422
        %v5453 = vadd.f32 %v5414, %v5422
        %v5454 = vadd.f32 %v5415, %v5422
        %v5455 = vadd.f32 %v5416, %v5422
        %v5456 = vadd.f32 %v230, %v5424
        %v5457 = vadd.f32 %v231, %v5425
        %v5458 = vadd.f32 %v232, %v5426
        %v5459 = vadd.f32 %v233, %v5427
        %v5460 = vadd.f32 %v234, %v5428
        %v5461 = vadd.f32 %v235, %v5429
        %v5462 = vadd.f32 %v236, %v5430
        %v5463 = vadd.f32 %v237, %v5431
        %v5464 = vadd.f32 %v238, %v5432
        %v5465 = vadd.f32 %v239, %v5433
        %v5466 = vadd.f32 %v240, %v5434
        %v5467 = vadd.f32 %v241, %v5435
        %v5468 = vadd.f32 %v242, %v5436
        %v5469 = vadd.f32 %v243, %v5437
        %v5470 = vadd.f32 %v244, %v5438
        %v5471 = vadd.f32 %v245, %v5439
        %v5472 = vadd.f32 %v246, %v5440
        %v5473 = vadd.f32 %v247, %v5441
        %v5474 = vadd.f32 %v248, %v5442
        %v5475 = vadd.f32 %v249, %v5443
        %v5476 = vadd.f32 %v250, %v5444
        %v5477 = vadd.f32 %v251, %v5445
        %v5478 = vadd.f32 %v252, %v5446
        %v5479 = vadd.f32 %v253, %v5447
        %v5480 = vadd.f32 %v254, %v5448
        %v5481 = vadd.f32 %v255, %v5449
        %v5482 = vadd.f32 %v256, %v5450
        %v5483 = vadd.f32 %v257, %v5451
        %v5484 = vadd.f32 %v258, %v5452
        %v5485 = vadd.f32 %v259, %v5453
        %v5486 = vadd.f32 %v260, %v5454
        %v5487 = vadd.f32 %v261, %v5455
        %v5488 = vmax.f32 %v5456, 0.0
        %v5489 = vmax.f32 %v5457, 0.0
        %v5490 = vmax.f32 %v5458, 0.0
        %v5491 = vmax.f32 %v5459, 0.0
        %v5492 = vmax.f32 %v5460, 0.0
        %v5493 = vmax.f32 %v5461, 0.0
        %v5494 = vmax.f32 %v5462, 0.0
        %v5495 = vmax.f32 %v5463, 0.0
        %v5496 = vmax.f32 %v5464, 0.0
        %v5497 = vmax.f32 %v5465, 0.0
        %v5498 = vmax.f32 %v5466, 0.0
        %v5499 = vmax.f32 %v5467, 0.0
        %v5500 = vmax.f32 %v5468, 0.0
        %v5501 = vmax.f32 %v5469, 0.0
        %v5502 = vmax.f32 %v5470, 0.0
        %v5503 = vmax.f32 %v5471, 0.0
        %v5504 = vmax.f32 %v5472, 0.0
        %v5505 = vmax.f32 %v5473, 0.0
        %v5506 = vmax.f32 %v5474, 0.0
        %v5507 = vmax.f32 %v5475, 0.0
        %v5508 = vmax.f32 %v5476, 0.0
        %v5509 = vmax.f32 %v5477, 0.0
        %v5510 = vmax.f32 %v5478, 0.0
        %v5511 = vmax.f32 %v5479, 0.0
        %v5512 = vmax.f32 %v5480, 0.0
        %v5513 = vmax.f32 %v5481, 0.0
        %v5514 = vmax.f32 %v5482, 0.0
        %v5515 = vmax.f32 %v5483, 0.0
        %v5516 = vmax.f32 %v5484, 0.0
        %v5517 = vmax.f32 %v5485, 0.0
        %v5518 = vmax.f32 %v5486, 0.0
        %v5519 = vmax.f32 %v5487, 0.0
        %5520 = vst [vmem:[%s220] sm:$0xff] %v5488
        %5521 = vst [vmem:[%s220 + $0x8] sm:$0xff] %v5489
        %5522 = vst [vmem:[%s220 + $0x10] sm:$0xff] %v5490
        %5523 = vst [vmem:[%s220 + $0x18] sm:$0xff] %v5491
        %5524 = vst [vmem:[%s220 + $0x20] sm:$0xff] %v5492
        %5525 = vst [vmem:[%s220 + $0x28] sm:$0xff] %v5493
        %5526 = vst [vmem:[%s220 + $0x30] sm:$0xff] %v5494
        %5527 = vst [vmem:[%s220 + $0x38] sm:$0xff] %v5495
        %5528 = vst [vmem:[%s220 + $0x40] sm:$0xff] %v5496
        %5529 = vst [vmem:[%s220 + $0x48] sm:$0xff] %v5497
        %5530 = vst [vmem:[%s220 + $0x50] sm:$0xff] %v5498
        %5531 = vst [vmem:[%s220 + $0x58] sm:$0xff] %v5499
        %5532 = vst [vmem:[%s220 + $0x60] sm:$0xff] %v5500
        %5533 = vst [vmem:[%s220 + $0x68] sm:$0xff] %v5501
        %5534 = vst [vmem:[%s220 + $0x70] sm:$0xff] %v5502
        %5535 = vst [vmem:[%s220 + $0x78] sm:$0xff] %v5503
        %5536 = vst [vmem:[%s220 + $0x80] sm:$0xff] %v5504
        %5537 = vst [vmem:[%s220 + $0x88] sm:$0xff] %v5505
        %5538 = vst [vmem:[%s220 + $0x90] sm:$0xff] %v5506
        %5539 = vst [vmem:[%s220 + $0x98] sm:$0xff] %v5507
        %5540 = vst [vmem:[%s220 + $0xa0] sm:$0xff] %v5508
        %5541 = vst [vmem:[%s220 + $0xa8] sm:$0xff] %v5509
        %5542 = vst [vmem:[%s220 + $0xb0] sm:$0xff] %v5510
        %5543 = vst [vmem:[%s220 + $0xb8] sm:$0xff] %v5511
        %5544 = vst [vmem:[%s220 + $0xc0] sm:$0xff] %v5512
        %5545 = vst [vmem:[%s220 + $0xc8] sm:$0xff] %v5513
        %5546 = vst [vmem:[%s220 + $0xd0] sm:$0xff] %v5514
        %5547 = vst [vmem:[%s220 + $0xd8] sm:$0xff] %v5515
        %5548 = vst [vmem:[%s220 + $0xe0] sm:$0xff] %v5516
        %5549 = vst [vmem:[%s220 + $0xe8] sm:$0xff] %v5517
        %5550 = vst [vmem:[%s220 + $0xf0] sm:$0xff] %v5518
        %5551 = vst [vmem:[%s220 + $0xf8] sm:$0xff] %v5519
        %s5552 = sand.u32 %s137, 1
        %s5553 = scalar_lea.sflag [#allocation3], %s5552
        %s5554 = sand.u32 %s137, 1
        %s5555 = smul.addr %s5554, 256
        %s5556 = scalar_lea.vmem [#allocation2], %s5555
        // Predicated region
        $region41: #{_resblock_pallas_impl.1} parent=39 // pred_check
          %p5557 = pneg %p147
        $region42: #{_resblock_pallas_impl.1} parent=39 // pred_check_branch
          %5559 = sbr.rel (%p5557) target = $region44
        $region43: #{_resblock_pallas_impl.1} parent=39 // pred_region
          %s5560 = smul.u32 4, %s19
          %s5562 = ssub.s32 4096, 4096
          %5563 = vsyncadd %s5553, %s5562
          %s5564 = smul.addr %s5560, 8
          %s5565 = smul.addr %s5564, 128
          %s5566 = scalar_lea.hbm %s5, %s5565
          %s5567 = sshll.u32 %s5556, 4
          %s5568 = int_to_ptr.vmem [resolvable:$true] %s5567
          %5573 = dma.vmem_to_hbm [thread:$0]  %s5568, 4096, %s5566, %s5553, 128, 128, 8
        $region44: #{_resblock_pallas_impl.1} parent=39 // pred_fallthru
          _
      $region40: #{_resblock_pallas_impl.1} parent=5 // pred_fallthru
        _
      %p5574 = scmp.le.s32.totalorder 2, %s14
      // Predicated region
      $region45: #{_resblock_pallas_impl.1} parent=5 // pred_check
        %p5575 = pneg %p5574
      $region46: #{_resblock_pallas_impl.1} parent=5 // pred_check_branch
        %5577 = sbr.rel (%p5575) target = $region48
      $region47: #{_resblock_pallas_impl.1} parent=5 // pred_region
        %s5578 = ssub.s32 %s14, 2
        // Predicated region
        $region49: #{_resblock_pallas_impl.1} parent=47 // pred_check
          %p5579 = pneg %p153
        $region50: #{_resblock_pallas_impl.1} parent=47 // pred_check_branch
          %5581 = sbr.rel (%p5579) target = $region52
        $region51: #{_resblock_pallas_impl.1} parent=47 // pred_region
          %s5582 = sand.u32 %s138, 1
          %s5583 = scalar_lea.sflag [#allocation3], %s5582
          %s5584 = sand.u32 %s138, 1
          %s5585 = smul.addr %s5584, 256
          %s5586 = scalar_lea.vmem [#allocation2], %s5585
          %5587 = dma.done %s5583, 4096
        $region52: #{_resblock_pallas_impl.1} parent=47 // pred_fallthru
          _
      $region48: #{_resblock_pallas_impl.1} parent=5 // pred_fallthru
        _
    $region6: #{_resblock_pallas_impl.1} parent=1 // loop_footer
      %s18 = sadd.s32 1, %s14
    $region7: #{_resblock_pallas_impl.1} parent=1 // loop_footer_branch
      %13 = sbr.rel target = $region3
    $region8: #{_resblock_pallas_impl.1} parent=1 // loop_exit
      _
    %5588 = vsyncpa [#allocation3], 1
    %s5589 = scalar_lea.sflag [#allocation3], 1
    %5590 = vsyncpa %s5589, 1

</llo_original>
